<compile_context>
chip_gen: v7x
topology: tpu7x:2x2x1
jax: 0.10.0
libtpu: 0.0.40
codegen_flags: <defaults>
</compile_context>

<pallas_src>
import functools
import math

import jax
import jax.numpy as jnp
import numpy as np
from jax import lax
from jax.experimental import pallas as pl
from jax.experimental.pallas import tpu as pltpu

_BN_EPS = 1e-5


# ----------------------------------------------------------------------------
# small helpers (shared by kernel path and pure-JAX reference)
# ----------------------------------------------------------------------------

def _apply_act(y, name):
    if name == "relu":
        return jnp.maximum(y, 0.0)
    if name == "silu":
        return y * jax.nn.sigmoid(y)
    if name == "elu":
        # clamp before exp so the untaken branch cannot produce inf/NaN
        return jnp.where(y > 0, y, jnp.exp(jnp.minimum(y, 0.0)) - 1.0)
    if name == "gelu":
        return jax.nn.gelu(y, approximate=True)
    raise ValueError(name)


def _prep_constants(dset):
    # prep_x: z = x*127.5 + 127.5 then dataset affine  ==  x*scale + shift
    if dset == "cifar10":
        return 127.5 / 64.16736, (127.5 - 120.63838) / 64.16736
    return 1.0, 0.0


def _fold_conv(w, b, s, t):
    """Fold conv bias + eval-mode BN affine into the conv weight (numpy f32)."""
    w = np.asarray(w, np.float32)
    b = np.asarray(b, np.float32)
    s = np.asarray(s, np.float32)
    t = np.asarray(t, np.float32)
    wf = w * s.reshape((1,) * (w.ndim - 1) + (-1,))
    tf = b * s + t
    return wf, tf


def _pick_nb(n):
    """Largest batch block dividing n that still leaves >=2 parallel grid steps."""
    if n < 2:
        return 1
    best = 1
    for nb in range(1, n + 1):
        if n % nb == 0 and n // nb >= 2 and nb <= 64:
            best = nb
    return best


# ----------------------------------------------------------------------------
# trace-time weight transforms for the lane-dense banded formulation
# ----------------------------------------------------------------------------

def _band3x3(wf, width):
    """(3,3,Ci,Co) -> 3 banded (width*Ci, width*Co) matrices (one per kh)."""
    _, _, ci, co = wf.shape
    bands = np.zeros((3, width * ci, width * co), np.float32)
    for kh in range(3):
        for kw in range(3):
            for w in range(width):
                ws = w + kw - 1
                if 0 <= ws < width:
                    bands[kh, ws * ci:(ws + 1) * ci, w * co:(w + 1) * co] = wf[kh, kw]
    return bands


def _band1x1(w, width):
    """(Ci,Co) 1x1 conv -> block-diagonal (width*Ci, width*Co) matrix."""
    ci, co = w.shape
    band = np.zeros((width * ci, width * co), np.float32)
    for i in range(width):
        band[i * ci:(i + 1) * ci, i * co:(i + 1) * co] = w
    return band


def _shift_mats(nb, h):
    """Block-diagonal exact row-shift matrices (zero rows at the image border)."""
    m = nb * h
    sdn = np.zeros((m, m), np.float32)   # row r <- row r-1
    sup = np.zeros((m, m), np.float32)   # row r <- row r+1
    for r in range(m):
        if r % h != 0:
            sdn[r, r - 1] = 1.0
        if r % h != h - 1:
            sup[r, r + 1] = 1.0
    return sdn, sup


def _pool_mats(nb, h, width, c):
    """Row (R) and lane (P) matrices for a 2x2 average pool in lane-dense layout."""
    ho = h // 2
    rmat = np.zeros((nb * ho, nb * h), np.float32)
    for n in range(nb):
        for i in range(ho):
            rmat[n * ho + i, n * h + 2 * i] = 0.5
            rmat[n * ho + i, n * h + 2 * i + 1] = 0.5
    pmat = np.zeros((width * c, (width // 2) * c), np.float32)
    for wo in range(width // 2):
        for ch in range(c):
            pmat[(2 * wo) * c + ch, wo * c + ch] = 0.5
            pmat[(2 * wo + 1) * c + ch, wo * c + ch] = 0.5
    return rmat, pmat


def prepare_encoder(params, *, H, W, dset, nb):
    """Fold BN/bias/prep and build banded weights; returns (plan, arrays, out_shapes)."""
    ps, pt = _prep_constants(dset)
    ops, arrays, out_shapes, out_channels = [], [], [], []

    # prep_x affine folded into the 1x1 pre-process conv
    w_pre = np.asarray(params["pre_w"], np.float32)            # (Cin0, C0)
    b_pre = np.asarray(params["pre_b"], np.float32)            # (1, C0)
    w_pre_f = ps * w_pre
    b_pre_f = b_pre + pt * w_pre.sum(axis=0, keepdims=True)
    arrays.append(jnp.asarray(_band1x1(w_pre_f, W), jnp.bfloat16))
    arrays.append(jnp.asarray(np.tile(b_pre_f, (1, W)), jnp.float32))
    ops.append(dict(kind="conv1x1", n_arr=2))

    h, w_sp = H, W

    def add_resblock(p, h, w_sp, n_pool, emit):
        wf1, tf1 = _fold_conv(p["w1"], p["b1"], p["s1"], p["t1"])
        wf2, tf2 = _fold_conv(p["w2"], p["b2"], p["s2"], p["t2"])
        co = wf2.shape[3]
        sdn, sup = _shift_mats(nb, h)
        op_arrays = [jnp.asarray(sdn, jnp.bfloat16), jnp.asarray(sup, jnp.bfloat16)]
        for band in _band3x3(wf1, w_sp):
            op_arrays.append(jnp.asarray(band, jnp.bfloat16))
        op_arrays.append(jnp.asarray(np.tile(tf1, (1, w_sp)), jnp.float32))
        for band in _band3x3(wf2, w_sp):
            op_arrays.append(jnp.asarray(band, jnp.bfloat16))
        op_arrays.append(jnp.asarray(np.tile(tf2, (1, w_sp)), jnp.float32))
        has_skip = "wsk" in p
        if has_skip:
            op_arrays.append(jnp.asarray(
                _band1x1(np.asarray(p["wsk"], np.float32), w_sp), jnp.bfloat16))
            op_arrays.append(jnp.asarray(
                np.tile(np.asarray(p["bsk"], np.float32), (1, w_sp)), jnp.float32))
        hh, ww = h, w_sp
        for _ in range(n_pool):
            rmat, pmat = _pool_mats(nb, hh, ww, co)
            op_arrays.append(jnp.asarray(rmat, jnp.float32))
            op_arrays.append(jnp.asarray(pmat, jnp.bfloat16))
            hh //= 2
            ww //= 2
        arrays.extend(op_arrays)
        ops.append(dict(kind="resblock", has_skip=has_skip, n_pool=n_pool,
                        emit=emit, ho=hh, lo=ww * co, n_arr=len(op_arrays)))
        return hh, ww, co

    for p in params["pre_blocks"]:
        h, w_sp, _ = add_resblock(p, h, w_sp, 0, False)

    for enc in params["enc_blocks"]:
        pool_k = int(enc["pool_k"])
        assert pool_k & (pool_k - 1) == 0, "pool_k must be a power of two"
        n_pool = pool_k.bit_length() - 1
        blocks = enc["blocks"]
        co = None
        for j, p in enumerate(blocks):
            last = j == len(blocks) - 1
            h, w_sp, co = add_resblock(p, h, w_sp, n_pool if last else 0, last)
        out_shapes.append((h, w_sp * co))
        out_channels.append(co)

    plan = dict(ops=ops, n_in=1 + len(arrays), out_channels=out_channels)
    return plan, arrays, out_shapes


# ----------------------------------------------------------------------------
# the single fused Pallas kernel
# ----------------------------------------------------------------------------

def _encoder_kernel(*refs, plan, act, nb, h0, wc0):
    in_refs = refs[:plan["n_in"]]
    out_refs = refs[plan["n_in"]:]

    # lane-dense bf16 activations, kept as a value (VMEM/vregs) for all blocks
    d = in_refs[0][...].reshape(nb * h0, wc0)
    wi = 1
    oi = 0
    for op in plan["ops"]:
        it = iter(in_refs[wi:wi + op["n_arr"]])
        wi += op["n_arr"]

        if op["kind"] == "conv1x1":
            band = next(it)[...]
            bias = next(it)[...]
            y = jnp.dot(d, band, preferred_element_type=jnp.float32) + bias
            d = y.astype(jnp.bfloat16)
            continue

        # ---- EncoderResBlock: conv3x3+BN+act, conv3x3+BN+act, residual ------
        sdn = next(it)[...]
        sup = next(it)[...]

        def conv3x3(x):
            # row-shifted copies via exact 0/1 block-diagonal matmuls (no relayouts)
            x_m1 = jnp.dot(sdn, x, preferred_element_type=jnp.float32).astype(jnp.bfloat16)
            x_p1 = jnp.dot(sup, x, preferred_element_type=jnp.float32).astype(jnp.bfloat16)
            b0 = next(it)[...]
            b1 = next(it)[...]
            b2 = next(it)[...]
            bias = next(it)[...]
            acc = jnp.dot(x_m1, b0, preferred_element_type=jnp.float32)
            acc = acc + jnp.dot(x, b1, preferred_element_type=jnp.float32)
            acc = acc + jnp.dot(x_p1, b2, preferred_element_type=jnp.float32)
            return acc + bias

        h1 = _apply_act(conv3x3(d), act).astype(jnp.bfloat16)
        pre2 = conv3x3(h1)
        if op["has_skip"]:
            bsk = next(it)[...]
            tsk = next(it)[...]
            skip = jnp.dot(d, bsk, preferred_element_type=jnp.float32) + tsk
        else:
            skip = d.astype(jnp.float32)
        y = _apply_act(pre2, act) + skip                     # (nb*H, W*Cout) f32

        # ---- fused AvgPool2d(2) epilogue(s), expressed as two tiny matmuls --
        for _ in range(op["n_pool"]):
            rmat = next(it)[...]
            pmat = next(it)[...]
            inner = jnp.dot(y.astype(jnp.bfloat16), pmat,
                            preferred_element_type=jnp.float32)
            y = jnp.dot(rmat, inner, preferred_element_type=jnp.float32)

        if op["emit"]:
            out_refs[oi][...] = y.reshape(nb, op["ho"], op["lo"])
            oi += 1
        d = y.astype(jnp.bfloat16)


def _rep_spec(shape):
    nd = len(shape)
    return pl.BlockSpec(shape, lambda n, _nd=nd: (0,) * _nd)


def encoder_pallas(x_lane, arrays, plan, out_shapes, *, nb, act):
    n, h, wc0 = x_lane.shape
    in_specs = [pl.BlockSpec((nb, h, wc0), lambda i: (i, 0, 0))]
    in_specs += [_rep_spec(a.shape) for a in arrays]
    out_specs = tuple(pl.BlockSpec((nb, ho, lo), lambda i: (i, 0, 0))
                      for ho, lo in out_shapes)
    out_shape = tuple(jax.ShapeDtypeStruct((n, ho, lo), jnp.float32)
                      for ho, lo in out_shapes)
    kern = functools.partial(_encoder_kernel, plan=plan, act=act,
                             nb=nb, h0=h, wc0=wc0)
    return pl.pallas_call(
        kern,
        grid=(n // nb,),
        in_specs=in_specs,
        out_specs=out_specs,
        out_shape=out_shape,
        compiler_params=pltpu.CompilerParams(
            dimension_semantics=("parallel",)),
    )(x_lane, *arrays)


# ----------------------------------------------------------------------------
# forward pass (SmallLadderEncoder.forward)
# ----------------------------------------------------------------------------

def small_ladder_encoder_forward(x_nchw, params, dset="mnist", activation="relu"):
    n, cin0, h, w = x_nchw.shape
    nb = _pick_nb(n)
    x = jnp.transpose(x_nchw, (0, 2, 3, 1)).astype(jnp.float32)
    x_lane = x.reshape(n, h, w * cin0).astype(jnp.bfloat16)   # lane-dense bf16

    plan, arrays, out_shapes = prepare_encoder(params, H=h, W=w, dset=dset, nb=nb)
    outs = encoder_pallas(x_lane, arrays, plan, out_shapes, nb=nb, act=activation)

    s_enc, i = [], 0
    for k, (ho, lo) in enumerate(out_shapes):
        while params["latent_scales"][i] == 0:
            i += 1
        num_latents = params["latent_scales"][i]
        co = plan["out_channels"][k]
        o = outs[k].reshape(n, ho, lo // co, co)
        o = jnp.transpose(o, (0, 3, 1, 2)).astype(jnp.float32)   # back to NCHW
        for _ in range(num_latents):
            s_enc.append(o)
        i += 1
    return s_enc


# ----------------------------------------------------------------------------
# parameter construction (deterministic, synthetic)
# ----------------------------------------------------------------------------

def _bn_affine(c):
    # eval-mode BN with mean=0, var=1, gamma=1, beta=0
    scale = jnp.full((1, c), 1.0 / math.sqrt(1.0 + _BN_EPS), jnp.float32)
    shift = jnp.zeros((1, c), jnp.float32)
    return scale, shift


def _make_erb(key, cin, cmid, cout):
    k1, k2, k3, k4, k5, k6 = jax.random.split(key, 6)
    p = {"w1": 0.1 * jax.random.normal(k1, (3, 3, cin, cmid), jnp.float32),
         "b1": 0.05 * jax.random.normal(k2, (1, cmid), jnp.float32),
         "w2": 0.1 * jax.random.normal(k3, (3, 3, cmid, cout), jnp.float32),
         "b2": 0.05 * jax.random.normal(k4, (1, cout), jnp.float32)}
    p["s1"], p["t1"] = _bn_affine(cmid)
    p["s2"], p["t2"] = _bn_affine(cout)
    if cin != cout:
        p["wsk"] = 0.1 * jax.random.normal(k5, (cin, cout), jnp.float32)
        p["bsk"] = 0.05 * jax.random.normal(k6, (1, cout), jnp.float32)
    return p


def make_params(key, *, num_ch, scale_ch_mult, block_ch_mult, data_ch,
                num_init_blocks, latent_scales, num_blocks_per_scale,
                start_scale_at_x):
    num_ch_list = [num_ch]
    for _ in range(len(latent_scales) - 1):
        num_ch_list.append(int(num_ch_list[-1] * scale_ch_mult))

    keys = jax.random.split(key, 64)
    ki = iter(range(64))

    params = {
        "num_ch": num_ch_list,
        "latent_scales": list(latent_scales),
        "pre_w": 0.1 * jax.random.normal(keys[next(ki)],
                                         (data_ch, num_ch_list[0]), jnp.float32),
        "pre_b": 0.05 * jax.random.normal(keys[next(ki)],
                                          (1, num_ch_list[0]), jnp.float32),
        "pre_blocks": [],
        "enc_blocks": [],
    }
    c0 = num_ch_list[0]
    for _ in range(num_init_blocks):
        params["pre_blocks"].append(
            _make_erb(keys[next(ki)], c0, int(c0 * block_ch_mult), c0))

    # SmallLadderEncoder.init_encoder_blocks
    pool_k = 1 if start_scale_at_x else 2
    for s_num, s in enumerate(latent_scales):
        if s > 0:
            blocks = []
            for i in range(num_blocks_per_scale):
                in_ch, out_ch = num_ch_list[s_num], num_ch_list[s_num]
                if s_num > 0 and i == 0:
                    in_ch = num_ch_list[s_num - 1]
                blocks.append(_make_erb(keys[next(ki)], in_ch,
                                        int(in_ch * block_ch_mult), out_ch))
            params["enc_blocks"].append({"blocks": blocks, "pool_k": pool_k})
            pool_k = 1
        pool_k *= 2
    return params


# ----------------------------------------------------------------------------
# pure-JAX reference (identical bf16 / f32 precision points, XLA ops)
# ----------------------------------------------------------------------------

def _ref_conv3x3(xb, wf, tf):
    y = lax.conv_general_dilated(
        xb, jnp.asarray(wf).astype(jnp.bfloat16), (1, 1), "SAME",
        dimension_numbers=("NHWC", "HWIO", "NHWC"),
        preferred_element_type=jnp.float32)
    return y + jnp.asarray(tf, jnp.float32).reshape(1, 1, 1, -1)


def _ref_resblock(db, p, act):
    wf1, tf1 = _fold_conv(p["w1"], p["b1"], p["s1"], p["t1"])
    wf2, tf2 = _fold_conv(p["w2"], p["b2"], p["s2"], p["t2"])
    h1 = _apply_act(_ref_conv3x3(db, wf1, tf1), act).astype(jnp.bfloat16)
    pre2 = _ref_conv3x3(h1, wf2, tf2)
    if "wsk" in p:
        skip = jnp.einsum("nhwc,co->nhwo", db,
                          jnp.asarray(p["wsk"]).astype(jnp.bfloat16),
                          preferred_element_type=jnp.float32)
        skip = skip + jnp.asarray(p["bsk"], jnp.float32).reshape(1, 1, 1, -1)
    else:
        skip = db.astype(jnp.float32)
    return _apply_act(pre2, act) + skip


def _ref_pool_step(y):
    yb = y.astype(jnp.bfloat16).astype(jnp.float32)
    n, h, w, c = yb.shape
    yr = yb.reshape(n, h // 2, 2, w // 2, 2, c)
    return 0.25 * (yr[:, :, 0, :, 0, :] + yr[:, :, 0, :, 1, :]
                   + yr[:, :, 1, :, 0, :] + yr[:, :, 1, :, 1, :])


def reference_forward(x_nchw, params, dset="mnist", activation="relu"):
    ps, pt = _prep_constants(dset)
    x = jnp.transpose(x_nchw, (0, 2, 3, 1)).astype(jnp.float32)
    xb = x.astype(jnp.bfloat16)

    w_pre = np.asarray(params["pre_w"], np.float32)
    b_pre = np.asarray(params["pre_b"], np.float32)
    w_pre_f = jnp.asarray(ps * w_pre, jnp.float32).astype(jnp.bfloat16)
    b_pre_f = jnp.asarray(b_pre + pt * w_pre.sum(axis=0, keepdims=True), jnp.float32)

    d = jnp.einsum("nhwc,co->nhwo", xb, w_pre_f,
                   preferred_element_type=jnp.float32)
    d = (d + b_pre_f.reshape(1, 1, 1, -1)).astype(jnp.bfloat16)
    for p in params["pre_blocks"]:
        d = _ref_resblock(d, p, activation).astype(jnp.bfloat16)

    s_enc, i = [], 0
    for enc in params["enc_blocks"]:
        while params["latent_scales"][i] == 0:
            i += 1
        num_latents = params["latent_scales"][i]
        blocks = enc["blocks"]
        y = None
        for j, p in enumerate(blocks):
            y = _ref_resblock(d, p, activation)          # f32
            if j == len(blocks) - 1:
                k = int(enc["pool_k"])
                while k > 1:
                    y = _ref_pool_step(y)
                    k //= 2
            d = y.astype(jnp.bfloat16)
        out = jnp.transpose(y, (0, 3, 1, 2)).astype(jnp.float32)
        for _ in range(num_latents):
            s_enc.append(out)
        i += 1
    return s_enc


# ----------------------------------------------------------------------------
# main
# ----------------------------------------------------------------------------

if __name__ == "__main__":
    key = jax.random.PRNGKey(0)
    k_x, k_p = jax.random.split(key)

    # small config consistent with the module signature
    cfg = dict(num_ch=8, scale_ch_mult=2.0, block_ch_mult=1.0, data_ch=4,
               num_init_blocks=1, latent_scales=[1, 1],
               num_blocks_per_scale=1, start_scale_at_x=False)
    dset = "mnist"
    activation = "relu"

    params = make_params(k_p, **cfg)

    # PyTorch-style NCHW input: (batch=2, channels=4, 16x16)
    x = jax.random.normal(k_x, (2, 4, 16, 16), jnp.float32)

    outs = small_ladder_encoder_forward(x, params, dset=dset,
                                        activation=activation)
    outs = [jax.block_until_ready(o) for o in outs]

    refs = reference_forward(x, params, dset=dset, activation=activation)
    assert len(outs) == len(refs)
    for o, r in zip(outs, refs):
        assert o.shape == r.shape, (o.shape, r.shape)
        np.testing.assert_allclose(np.asarray(o), np.asarray(r),
                                   rtol=2e-3, atol=2e-3)

    print("KERNEL_OK")
</pallas_src>

<mosaic_0001>
module attributes {stable_mosaic.version = 11 : i64} {
  func.func @_encoder_kernel(%arg0: i32, %arg1: memref<1x16x64xbf16, #tpu.memory_space<vmem>>, %arg2: memref<64x128xbf16, #tpu.memory_space<vmem>>, %arg3: memref<1x128xf32, #tpu.memory_space<vmem>>, %arg4: memref<16x16xbf16, #tpu.memory_space<vmem>>, %arg5: memref<16x16xbf16, #tpu.memory_space<vmem>>, %arg6: memref<128x128xbf16, #tpu.memory_space<vmem>>, %arg7: memref<128x128xbf16, #tpu.memory_space<vmem>>, %arg8: memref<128x128xbf16, #tpu.memory_space<vmem>>, %arg9: memref<1x128xf32, #tpu.memory_space<vmem>>, %arg10: memref<128x128xbf16, #tpu.memory_space<vmem>>, %arg11: memref<128x128xbf16, #tpu.memory_space<vmem>>, %arg12: memref<128x128xbf16, #tpu.memory_space<vmem>>, %arg13: memref<1x128xf32, #tpu.memory_space<vmem>>, %arg14: memref<16x16xbf16, #tpu.memory_space<vmem>>, %arg15: memref<16x16xbf16, #tpu.memory_space<vmem>>, %arg16: memref<128x128xbf16, #tpu.memory_space<vmem>>, %arg17: memref<128x128xbf16, #tpu.memory_space<vmem>>, %arg18: memref<128x128xbf16, #tpu.memory_space<vmem>>, %arg19: memref<1x128xf32, #tpu.memory_space<vmem>>, %arg20: memref<128x128xbf16, #tpu.memory_space<vmem>>, %arg21: memref<128x128xbf16, #tpu.memory_space<vmem>>, %arg22: memref<128x128xbf16, #tpu.memory_space<vmem>>, %arg23: memref<1x128xf32, #tpu.memory_space<vmem>>, %arg24: memref<8x16xf32, #tpu.memory_space<vmem>>, %arg25: memref<128x64xbf16, #tpu.memory_space<vmem>>, %arg26: memref<8x8xbf16, #tpu.memory_space<vmem>>, %arg27: memref<8x8xbf16, #tpu.memory_space<vmem>>, %arg28: memref<64x64xbf16, #tpu.memory_space<vmem>>, %arg29: memref<64x64xbf16, #tpu.memory_space<vmem>>, %arg30: memref<64x64xbf16, #tpu.memory_space<vmem>>, %arg31: memref<1x64xf32, #tpu.memory_space<vmem>>, %arg32: memref<64x128xbf16, #tpu.memory_space<vmem>>, %arg33: memref<64x128xbf16, #tpu.memory_space<vmem>>, %arg34: memref<64x128xbf16, #tpu.memory_space<vmem>>, %arg35: memref<1x128xf32, #tpu.memory_space<vmem>>, %arg36: memref<64x128xbf16, #tpu.memory_space<vmem>>, %arg37: memref<1x128xf32, #tpu.memory_space<vmem>>, %arg38: memref<4x8xf32, #tpu.memory_space<vmem>>, %arg39: memref<128x64xbf16, #tpu.memory_space<vmem>>, %arg40: memref<1x8x64xf32, #tpu.memory_space<vmem>>, %arg41: memref<1x4x64xf32, #tpu.memory_space<vmem>>) attributes {dimension_semantics = [#tpu.dimension_semantics<parallel>], iteration_bounds = array<i64: 2>, scalar_prefetch = 0 : i64, scratch_operands = 0 : i64, tpu.core_type = #tpu.core_type<tc>, window_params = [{transform_indices = @transform_0, window_bounds = array<i64: 1, 16, 64>}, {pipeline_mode = #tpu.pipeline_mode<synchronous>, transform_indices = @transform_1, window_bounds = array<i64: 64, 128>}, {pipeline_mode = #tpu.pipeline_mode<synchronous>, transform_indices = @transform_2, window_bounds = array<i64: 1, 128>}, {pipeline_mode = #tpu.pipeline_mode<synchronous>, transform_indices = @transform_3, window_bounds = array<i64: 16, 16>}, {pipeline_mode = #tpu.pipeline_mode<synchronous>, transform_indices = @transform_4, window_bounds = array<i64: 16, 16>}, {pipeline_mode = #tpu.pipeline_mode<synchronous>, transform_indices = @transform_5, window_bounds = array<i64: 128, 128>}, {pipeline_mode = #tpu.pipeline_mode<synchronous>, transform_indices = @transform_6, window_bounds = array<i64: 128, 128>}, {pipeline_mode = #tpu.pipeline_mode<synchronous>, transform_indices = @transform_7, window_bounds = array<i64: 128, 128>}, {pipeline_mode = #tpu.pipeline_mode<synchronous>, transform_indices = @transform_8, window_bounds = array<i64: 1, 128>}, {pipeline_mode = #tpu.pipeline_mode<synchronous>, transform_indices = @transform_9, window_bounds = array<i64: 128, 128>}, {pipeline_mode = #tpu.pipeline_mode<synchronous>, transform_indices = @transform_10, window_bounds = array<i64: 128, 128>}, {pipeline_mode = #tpu.pipeline_mode<synchronous>, transform_indices = @transform_11, window_bounds = array<i64: 128, 128>}, {pipeline_mode = #tpu.pipeline_mode<synchronous>, transform_indices = @transform_12, window_bounds = array<i64: 1, 128>}, {pipeline_mode = #tpu.pipeline_mode<synchronous>, transform_indices = @transform_13, window_bounds = array<i64: 16, 16>}, {pipeline_mode = #tpu.pipeline_mode<synchronous>, transform_indices = @transform_14, window_bounds = array<i64: 16, 16>}, {pipeline_mode = #tpu.pipeline_mode<synchronous>, transform_indices = @transform_15, window_bounds = array<i64: 128, 128>}, {pipeline_mode = #tpu.pipeline_mode<synchronous>, transform_indices = @transform_16, window_bounds = array<i64: 128, 128>}, {pipeline_mode = #tpu.pipeline_mode<synchronous>, transform_indices = @transform_17, window_bounds = array<i64: 128, 128>}, {pipeline_mode = #tpu.pipeline_mode<synchronous>, transform_indices = @transform_18, window_bounds = array<i64: 1, 128>}, {pipeline_mode = #tpu.pipeline_mode<synchronous>, transform_indices = @transform_19, window_bounds = array<i64: 128, 128>}, {pipeline_mode = #tpu.pipeline_mode<synchronous>, transform_indices = @transform_20, window_bounds = array<i64: 128, 128>}, {pipeline_mode = #tpu.pipeline_mode<synchronous>, transform_indices = @transform_21, window_bounds = array<i64: 128, 128>}, {pipeline_mode = #tpu.pipeline_mode<synchronous>, transform_indices = @transform_22, window_bounds = array<i64: 1, 128>}, {pipeline_mode = #tpu.pipeline_mode<synchronous>, transform_indices = @transform_23, window_bounds = array<i64: 8, 16>}, {pipeline_mode = #tpu.pipeline_mode<synchronous>, transform_indices = @transform_24, window_bounds = array<i64: 128, 64>}, {pipeline_mode = #tpu.pipeline_mode<synchronous>, transform_indices = @transform_25, window_bounds = array<i64: 8, 8>}, {pipeline_mode = #tpu.pipeline_mode<synchronous>, transform_indices = @transform_26, window_bounds = array<i64: 8, 8>}, {pipeline_mode = #tpu.pipeline_mode<synchronous>, transform_indices = @transform_27, window_bounds = array<i64: 64, 64>}, {pipeline_mode = #tpu.pipeline_mode<synchronous>, transform_indices = @transform_28, window_bounds = array<i64: 64, 64>}, {pipeline_mode = #tpu.pipeline_mode<synchronous>, transform_indices = @transform_29, window_bounds = array<i64: 64, 64>}, {pipeline_mode = #tpu.pipeline_mode<synchronous>, transform_indices = @transform_30, window_bounds = array<i64: 1, 64>}, {pipeline_mode = #tpu.pipeline_mode<synchronous>, transform_indices = @transform_31, window_bounds = array<i64: 64, 128>}, {pipeline_mode = #tpu.pipeline_mode<synchronous>, transform_indices = @transform_32, window_bounds = array<i64: 64, 128>}, {pipeline_mode = #tpu.pipeline_mode<synchronous>, transform_indices = @transform_33, window_bounds = array<i64: 64, 128>}, {pipeline_mode = #tpu.pipeline_mode<synchronous>, transform_indices = @transform_34, window_bounds = array<i64: 1, 128>}, {pipeline_mode = #tpu.pipeline_mode<synchronous>, transform_indices = @transform_35, window_bounds = array<i64: 64, 128>}, {pipeline_mode = #tpu.pipeline_mode<synchronous>, transform_indices = @transform_36, window_bounds = array<i64: 1, 128>}, {pipeline_mode = #tpu.pipeline_mode<synchronous>, transform_indices = @transform_37, window_bounds = array<i64: 4, 8>}, {pipeline_mode = #tpu.pipeline_mode<synchronous>, transform_indices = @transform_38, window_bounds = array<i64: 128, 64>}, {transform_indices = @transform_39, window_bounds = array<i64: 1, 8, 64>}, {transform_indices = @transform_40, window_bounds = array<i64: 1, 4, 64>}]} {
    %c0 = arith.constant 0 : index
    %c0_0 = arith.constant 0 : index
    %c0_1 = arith.constant 0 : index
    %0 = vector.load %arg1[%c0, %c0_0, %c0_1] : memref<1x16x64xbf16, #tpu.memory_space<vmem>>, vector<1x16x64xbf16>
    %1 = vector.shape_cast %0 : vector<1x16x64xbf16> to vector<16x64xbf16>
    %c0_2 = arith.constant 0 : index
    %c0_3 = arith.constant 0 : index
    %2 = vector.load %arg2[%c0_2, %c0_3] : memref<64x128xbf16, #tpu.memory_space<vmem>>, vector<64x128xbf16>
    %c0_4 = arith.constant 0 : index
    %c0_5 = arith.constant 0 : index
    %3 = vector.load %arg3[%c0_4, %c0_5] : memref<1x128xf32, #tpu.memory_space<vmem>>, vector<1x128xf32>
    %cst = arith.constant dense<0.000000e+00> : vector<16x128xf32>
    %4 = tpu.matmul %1, %2, %cst {dimension_numbers = #tpu.dot_dimension_numbers<[1], [0], [0], [1], [0, 0, 1, 1], [], []>} : vector<16x64xbf16>, vector<64x128xbf16>, vector<16x128xf32> -> vector<16x128xf32>
    %5 = vector.broadcast %3 : vector<1x128xf32> to vector<16x128xf32>
    %6 = arith.addf %4, %5 : vector<16x128xf32>
    %7 = arith.truncf %6 : vector<16x128xf32> to vector<16x128xbf16>
    %c0_6 = arith.constant 0 : index
    %c0_7 = arith.constant 0 : index
    %8 = vector.load %arg4[%c0_6, %c0_7] : memref<16x16xbf16, #tpu.memory_space<vmem>>, vector<16x16xbf16>
    %c0_8 = arith.constant 0 : index
    %c0_9 = arith.constant 0 : index
    %9 = vector.load %arg5[%c0_8, %c0_9] : memref<16x16xbf16, #tpu.memory_space<vmem>>, vector<16x16xbf16>
    %cst_10 = arith.constant dense<0.000000e+00> : vector<16x128xf32>
    %10 = tpu.matmul %8, %7, %cst_10 {dimension_numbers = #tpu.dot_dimension_numbers<[1], [0], [0], [1], [0, 0, 1, 1], [], []>} : vector<16x16xbf16>, vector<16x128xbf16>, vector<16x128xf32> -> vector<16x128xf32>
    %11 = arith.truncf %10 : vector<16x128xf32> to vector<16x128xbf16>
    %cst_11 = arith.constant dense<0.000000e+00> : vector<16x128xf32>
    %12 = tpu.matmul %9, %7, %cst_11 {dimension_numbers = #tpu.dot_dimension_numbers<[1], [0], [0], [1], [0, 0, 1, 1], [], []>} : vector<16x16xbf16>, vector<16x128xbf16>, vector<16x128xf32> -> vector<16x128xf32>
    %13 = arith.truncf %12 : vector<16x128xf32> to vector<16x128xbf16>
    %c0_12 = arith.constant 0 : index
    %c0_13 = arith.constant 0 : index
    %14 = vector.load %arg6[%c0_12, %c0_13] : memref<128x128xbf16, #tpu.memory_space<vmem>>, vector<128x128xbf16>
    %c0_14 = arith.constant 0 : index
    %c0_15 = arith.constant 0 : index
    %15 = vector.load %arg7[%c0_14, %c0_15] : memref<128x128xbf16, #tpu.memory_space<vmem>>, vector<128x128xbf16>
    %c0_16 = arith.constant 0 : index
    %c0_17 = arith.constant 0 : index
    %16 = vector.load %arg8[%c0_16, %c0_17] : memref<128x128xbf16, #tpu.memory_space<vmem>>, vector<128x128xbf16>
    %c0_18 = arith.constant 0 : index
    %c0_19 = arith.constant 0 : index
    %17 = vector.load %arg9[%c0_18, %c0_19] : memref<1x128xf32, #tpu.memory_space<vmem>>, vector<1x128xf32>
    %cst_20 = arith.constant dense<0.000000e+00> : vector<16x128xf32>
    %18 = tpu.matmul %11, %14, %cst_20 {dimension_numbers = #tpu.dot_dimension_numbers<[1], [0], [0], [1], [0, 0, 1, 1], [], []>} : vector<16x128xbf16>, vector<128x128xbf16>, vector<16x128xf32> -> vector<16x128xf32>
    %cst_21 = arith.constant dense<0.000000e+00> : vector<16x128xf32>
    %19 = tpu.matmul %7, %15, %cst_21 {dimension_numbers = #tpu.dot_dimension_numbers<[1], [0], [0], [1], [0, 0, 1, 1], [], []>} : vector<16x128xbf16>, vector<128x128xbf16>, vector<16x128xf32> -> vector<16x128xf32>
    %20 = arith.addf %18, %19 : vector<16x128xf32>
    %cst_22 = arith.constant dense<0.000000e+00> : vector<16x128xf32>
    %21 = tpu.matmul %13, %16, %cst_22 {dimension_numbers = #tpu.dot_dimension_numbers<[1], [0], [0], [1], [0, 0, 1, 1], [], []>} : vector<16x128xbf16>, vector<128x128xbf16>, vector<16x128xf32> -> vector<16x128xf32>
    %22 = arith.addf %20, %21 : vector<16x128xf32>
    %23 = vector.broadcast %17 : vector<1x128xf32> to vector<16x128xf32>
    %24 = arith.addf %22, %23 : vector<16x128xf32>
    %cst_23 = arith.constant 0.000000e+00 : f32
    %25 = vector.broadcast %cst_23 : f32 to vector<16x128xf32>
    %26 = arith.maximumf %24, %25 : vector<16x128xf32>
    %27 = arith.truncf %26 : vector<16x128xf32> to vector<16x128xbf16>
    %cst_24 = arith.constant dense<0.000000e+00> : vector<16x128xf32>
    %28 = tpu.matmul %8, %27, %cst_24 {dimension_numbers = #tpu.dot_dimension_numbers<[1], [0], [0], [1], [0, 0, 1, 1], [], []>} : vector<16x16xbf16>, vector<16x128xbf16>, vector<16x128xf32> -> vector<16x128xf32>
    %29 = arith.truncf %28 : vector<16x128xf32> to vector<16x128xbf16>
    %cst_25 = arith.constant dense<0.000000e+00> : vector<16x128xf32>
    %30 = tpu.matmul %9, %27, %cst_25 {dimension_numbers = #tpu.dot_dimension_numbers<[1], [0], [0], [1], [0, 0, 1, 1], [], []>} : vector<16x16xbf16>, vector<16x128xbf16>, vector<16x128xf32> -> vector<16x128xf32>
    %31 = arith.truncf %30 : vector<16x128xf32> to vector<16x128xbf16>
    %c0_26 = arith.constant 0 : index
    %c0_27 = arith.constant 0 : index
    %32 = vector.load %arg10[%c0_26, %c0_27] : memref<128x128xbf16, #tpu.memory_space<vmem>>, vector<128x128xbf16>
    %c0_28 = arith.constant 0 : index
    %c0_29 = arith.constant 0 : index
    %33 = vector.load %arg11[%c0_28, %c0_29] : memref<128x128xbf16, #tpu.memory_space<vmem>>, vector<128x128xbf16>
    %c0_30 = arith.constant 0 : index
    %c0_31 = arith.constant 0 : index
    %34 = vector.load %arg12[%c0_30, %c0_31] : memref<128x128xbf16, #tpu.memory_space<vmem>>, vector<128x128xbf16>
    %c0_32 = arith.constant 0 : index
    %c0_33 = arith.constant 0 : index
    %35 = vector.load %arg13[%c0_32, %c0_33] : memref<1x128xf32, #tpu.memory_space<vmem>>, vector<1x128xf32>
    %cst_34 = arith.constant dense<0.000000e+00> : vector<16x128xf32>
    %36 = tpu.matmul %29, %32, %cst_34 {dimension_numbers = #tpu.dot_dimension_numbers<[1], [0], [0], [1], [0, 0, 1, 1], [], []>} : vector<16x128xbf16>, vector<128x128xbf16>, vector<16x128xf32> -> vector<16x128xf32>
    %cst_35 = arith.constant dense<0.000000e+00> : vector<16x128xf32>
    %37 = tpu.matmul %27, %33, %cst_35 {dimension_numbers = #tpu.dot_dimension_numbers<[1], [0], [0], [1], [0, 0, 1, 1], [], []>} : vector<16x128xbf16>, vector<128x128xbf16>, vector<16x128xf32> -> vector<16x128xf32>
    %38 = arith.addf %36, %37 : vector<16x128xf32>
    %cst_36 = arith.constant dense<0.000000e+00> : vector<16x128xf32>
    %39 = tpu.matmul %31, %34, %cst_36 {dimension_numbers = #tpu.dot_dimension_numbers<[1], [0], [0], [1], [0, 0, 1, 1], [], []>} : vector<16x128xbf16>, vector<128x128xbf16>, vector<16x128xf32> -> vector<16x128xf32>
    %40 = arith.addf %38, %39 : vector<16x128xf32>
    %41 = vector.broadcast %35 : vector<1x128xf32> to vector<16x128xf32>
    %42 = arith.addf %40, %41 : vector<16x128xf32>
    %43 = arith.extf %7 : vector<16x128xbf16> to vector<16x128xf32>
    %cst_37 = arith.constant 0.000000e+00 : f32
    %44 = vector.broadcast %cst_37 : f32 to vector<16x128xf32>
    %45 = arith.maximumf %42, %44 : vector<16x128xf32>
    %46 = arith.addf %45, %43 : vector<16x128xf32>
    %47 = arith.truncf %46 : vector<16x128xf32> to vector<16x128xbf16>
    %c0_38 = arith.constant 0 : index
    %c0_39 = arith.constant 0 : index
    %48 = vector.load %arg14[%c0_38, %c0_39] : memref<16x16xbf16, #tpu.memory_space<vmem>>, vector<16x16xbf16>
    %c0_40 = arith.constant 0 : index
    %c0_41 = arith.constant 0 : index
    %49 = vector.load %arg15[%c0_40, %c0_41] : memref<16x16xbf16, #tpu.memory_space<vmem>>, vector<16x16xbf16>
    %cst_42 = arith.constant dense<0.000000e+00> : vector<16x128xf32>
    %50 = tpu.matmul %48, %47, %cst_42 {dimension_numbers = #tpu.dot_dimension_numbers<[1], [0], [0], [1], [0, 0, 1, 1], [], []>} : vector<16x16xbf16>, vector<16x128xbf16>, vector<16x128xf32> -> vector<16x128xf32>
    %51 = arith.truncf %50 : vector<16x128xf32> to vector<16x128xbf16>
    %cst_43 = arith.constant dense<0.000000e+00> : vector<16x128xf32>
    %52 = tpu.matmul %49, %47, %cst_43 {dimension_numbers = #tpu.dot_dimension_numbers<[1], [0], [0], [1], [0, 0, 1, 1], [], []>} : vector<16x16xbf16>, vector<16x128xbf16>, vector<16x128xf32> -> vector<16x128xf32>
    %53 = arith.truncf %52 : vector<16x128xf32> to vector<16x128xbf16>
    %c0_44 = arith.constant 0 : index
    %c0_45 = arith.constant 0 : index
    %54 = vector.load %arg16[%c0_44, %c0_45] : memref<128x128xbf16, #tpu.memory_space<vmem>>, vector<128x128xbf16>
    %c0_46 = arith.constant 0 : index
    %c0_47 = arith.constant 0 : index
    %55 = vector.load %arg17[%c0_46, %c0_47] : memref<128x128xbf16, #tpu.memory_space<vmem>>, vector<128x128xbf16>
    %c0_48 = arith.constant 0 : index
    %c0_49 = arith.constant 0 : index
    %56 = vector.load %arg18[%c0_48, %c0_49] : memref<128x128xbf16, #tpu.memory_space<vmem>>, vector<128x128xbf16>
    %c0_50 = arith.constant 0 : index
    %c0_51 = arith.constant 0 : index
    %57 = vector.load %arg19[%c0_50, %c0_51] : memref<1x128xf32, #tpu.memory_space<vmem>>, vector<1x128xf32>
    %cst_52 = arith.constant dense<0.000000e+00> : vector<16x128xf32>
    %58 = tpu.matmul %51, %54, %cst_52 {dimension_numbers = #tpu.dot_dimension_numbers<[1], [0], [0], [1], [0, 0, 1, 1], [], []>} : vector<16x128xbf16>, vector<128x128xbf16>, vector<16x128xf32> -> vector<16x128xf32>
    %cst_53 = arith.constant dense<0.000000e+00> : vector<16x128xf32>
    %59 = tpu.matmul %47, %55, %cst_53 {dimension_numbers = #tpu.dot_dimension_numbers<[1], [0], [0], [1], [0, 0, 1, 1], [], []>} : vector<16x128xbf16>, vector<128x128xbf16>, vector<16x128xf32> -> vector<16x128xf32>
    %60 = arith.addf %58, %59 : vector<16x128xf32>
    %cst_54 = arith.constant dense<0.000000e+00> : vector<16x128xf32>
    %61 = tpu.matmul %53, %56, %cst_54 {dimension_numbers = #tpu.dot_dimension_numbers<[1], [0], [0], [1], [0, 0, 1, 1], [], []>} : vector<16x128xbf16>, vector<128x128xbf16>, vector<16x128xf32> -> vector<16x128xf32>
    %62 = arith.addf %60, %61 : vector<16x128xf32>
    %63 = vector.broadcast %57 : vector<1x128xf32> to vector<16x128xf32>
    %64 = arith.addf %62, %63 : vector<16x128xf32>
    %cst_55 = arith.constant 0.000000e+00 : f32
    %65 = vector.broadcast %cst_55 : f32 to vector<16x128xf32>
    %66 = arith.maximumf %64, %65 : vector<16x128xf32>
    %67 = arith.truncf %66 : vector<16x128xf32> to vector<16x128xbf16>
    %cst_56 = arith.constant dense<0.000000e+00> : vector<16x128xf32>
    %68 = tpu.matmul %48, %67, %cst_56 {dimension_numbers = #tpu.dot_dimension_numbers<[1], [0], [0], [1], [0, 0, 1, 1], [], []>} : vector<16x16xbf16>, vector<16x128xbf16>, vector<16x128xf32> -> vector<16x128xf32>
    %69 = arith.truncf %68 : vector<16x128xf32> to vector<16x128xbf16>
    %cst_57 = arith.constant dense<0.000000e+00> : vector<16x128xf32>
    %70 = tpu.matmul %49, %67, %cst_57 {dimension_numbers = #tpu.dot_dimension_numbers<[1], [0], [0], [1], [0, 0, 1, 1], [], []>} : vector<16x16xbf16>, vector<16x128xbf16>, vector<16x128xf32> -> vector<16x128xf32>
    %71 = arith.truncf %70 : vector<16x128xf32> to vector<16x128xbf16>
    %c0_58 = arith.constant 0 : index
    %c0_59 = arith.constant 0 : index
    %72 = vector.load %arg20[%c0_58, %c0_59] : memref<128x128xbf16, #tpu.memory_space<vmem>>, vector<128x128xbf16>
    %c0_60 = arith.constant 0 : index
    %c0_61 = arith.constant 0 : index
    %73 = vector.load %arg21[%c0_60, %c0_61] : memref<128x128xbf16, #tpu.memory_space<vmem>>, vector<128x128xbf16>
    %c0_62 = arith.constant 0 : index
    %c0_63 = arith.constant 0 : index
    %74 = vector.load %arg22[%c0_62, %c0_63] : memref<128x128xbf16, #tpu.memory_space<vmem>>, vector<128x128xbf16>
    %c0_64 = arith.constant 0 : index
    %c0_65 = arith.constant 0 : index
    %75 = vector.load %arg23[%c0_64, %c0_65] : memref<1x128xf32, #tpu.memory_space<vmem>>, vector<1x128xf32>
    %cst_66 = arith.constant dense<0.000000e+00> : vector<16x128xf32>
    %76 = tpu.matmul %69, %72, %cst_66 {dimension_numbers = #tpu.dot_dimension_numbers<[1], [0], [0], [1], [0, 0, 1, 1], [], []>} : vector<16x128xbf16>, vector<128x128xbf16>, vector<16x128xf32> -> vector<16x128xf32>
    %cst_67 = arith.constant dense<0.000000e+00> : vector<16x128xf32>
    %77 = tpu.matmul %67, %73, %cst_67 {dimension_numbers = #tpu.dot_dimension_numbers<[1], [0], [0], [1], [0, 0, 1, 1], [], []>} : vector<16x128xbf16>, vector<128x128xbf16>, vector<16x128xf32> -> vector<16x128xf32>
    %78 = arith.addf %76, %77 : vector<16x128xf32>
    %cst_68 = arith.constant dense<0.000000e+00> : vector<16x128xf32>
    %79 = tpu.matmul %71, %74, %cst_68 {dimension_numbers = #tpu.dot_dimension_numbers<[1], [0], [0], [1], [0, 0, 1, 1], [], []>} : vector<16x128xbf16>, vector<128x128xbf16>, vector<16x128xf32> -> vector<16x128xf32>
    %80 = arith.addf %78, %79 : vector<16x128xf32>
    %81 = vector.broadcast %75 : vector<1x128xf32> to vector<16x128xf32>
    %82 = arith.addf %80, %81 : vector<16x128xf32>
    %83 = arith.extf %47 : vector<16x128xbf16> to vector<16x128xf32>
    %cst_69 = arith.constant 0.000000e+00 : f32
    %84 = vector.broadcast %cst_69 : f32 to vector<16x128xf32>
    %85 = arith.maximumf %82, %84 : vector<16x128xf32>
    %86 = arith.addf %85, %83 : vector<16x128xf32>
    %c0_70 = arith.constant 0 : index
    %c0_71 = arith.constant 0 : index
    %87 = vector.load %arg24[%c0_70, %c0_71] : memref<8x16xf32, #tpu.memory_space<vmem>>, vector<8x16xf32>
    %c0_72 = arith.constant 0 : index
    %c0_73 = arith.constant 0 : index
    %88 = vector.load %arg25[%c0_72, %c0_73] : memref<128x64xbf16, #tpu.memory_space<vmem>>, vector<128x64xbf16>
    %89 = arith.truncf %86 : vector<16x128xf32> to vector<16x128xbf16>
    %cst_74 = arith.constant dense<0.000000e+00> : vector<16x64xf32>
    %90 = tpu.matmul %89, %88, %cst_74 {dimension_numbers = #tpu.dot_dimension_numbers<[1], [0], [0], [1], [0, 0, 1, 1], [], []>} : vector<16x128xbf16>, vector<128x64xbf16>, vector<16x64xf32> -> vector<16x64xf32>
    %cst_75 = arith.constant dense<0.000000e+00> : vector<8x64xf32>
    %91 = tpu.matmul %87, %90, %cst_75 {dimension_numbers = #tpu.dot_dimension_numbers<[1], [0], [0], [1], [0, 0, 1, 1], [], []>} : vector<8x16xf32>, vector<16x64xf32>, vector<8x64xf32> -> vector<8x64xf32>
    %92 = vector.shape_cast %91 : vector<8x64xf32> to vector<1x8x64xf32>
    %c0_76 = arith.constant 0 : index
    %c0_77 = arith.constant 0 : index
    %c0_78 = arith.constant 0 : index
    %93 = vector.load %arg40[%c0_76, %c0_77, %c0_78] : memref<1x8x64xf32, #tpu.memory_space<vmem>>, vector<1x8x64xf32>
    tpu.vector_store %arg40[%c0_76, %c0_77, %c0_78], %92 {strides = array<i32>} : memref<1x8x64xf32, #tpu.memory_space<vmem>>, vector<1x8x64xf32>,
    %94 = arith.truncf %91 : vector<8x64xf32> to vector<8x64xbf16>
    %c0_79 = arith.constant 0 : index
    %c0_80 = arith.constant 0 : index
    %95 = vector.load %arg26[%c0_79, %c0_80] : memref<8x8xbf16, #tpu.memory_space<vmem>>, vector<8x8xbf16>
    %c0_81 = arith.constant 0 : index
    %c0_82 = arith.constant 0 : index
    %96 = vector.load %arg27[%c0_81, %c0_82] : memref<8x8xbf16, #tpu.memory_space<vmem>>, vector<8x8xbf16>
    %cst_83 = arith.constant dense<0.000000e+00> : vector<8x64xf32>
    %97 = tpu.matmul %95, %94, %cst_83 {dimension_numbers = #tpu.dot_dimension_numbers<[1], [0], [0], [1], [0, 0, 1, 1], [], []>} : vector<8x8xbf16>, vector<8x64xbf16>, vector<8x64xf32> -> vector<8x64xf32>
    %98 = arith.truncf %97 : vector<8x64xf32> to vector<8x64xbf16>
    %cst_84 = arith.constant dense<0.000000e+00> : vector<8x64xf32>
    %99 = tpu.matmul %96, %94, %cst_84 {dimension_numbers = #tpu.dot_dimension_numbers<[1], [0], [0], [1], [0, 0, 1, 1], [], []>} : vector<8x8xbf16>, vector<8x64xbf16>, vector<8x64xf32> -> vector<8x64xf32>
    %100 = arith.truncf %99 : vector<8x64xf32> to vector<8x64xbf16>
    %c0_85 = arith.constant 0 : index
    %c0_86 = arith.constant 0 : index
    %101 = vector.load %arg28[%c0_85, %c0_86] : memref<64x64xbf16, #tpu.memory_space<vmem>>, vector<64x64xbf16>
    %c0_87 = arith.constant 0 : index
    %c0_88 = arith.constant 0 : index
    %102 = vector.load %arg29[%c0_87, %c0_88] : memref<64x64xbf16, #tpu.memory_space<vmem>>, vector<64x64xbf16>
    %c0_89 = arith.constant 0 : index
    %c0_90 = arith.constant 0 : index
    %103 = vector.load %arg30[%c0_89, %c0_90] : memref<64x64xbf16, #tpu.memory_space<vmem>>, vector<64x64xbf16>
    %c0_91 = arith.constant 0 : index
    %c0_92 = arith.constant 0 : index
    %104 = vector.load %arg31[%c0_91, %c0_92] : memref<1x64xf32, #tpu.memory_space<vmem>>, vector<1x64xf32>
    %cst_93 = arith.constant dense<0.000000e+00> : vector<8x64xf32>
    %105 = tpu.matmul %98, %101, %cst_93 {dimension_numbers = #tpu.dot_dimension_numbers<[1], [0], [0], [1], [0, 0, 1, 1], [], []>} : vector<8x64xbf16>, vector<64x64xbf16>, vector<8x64xf32> -> vector<8x64xf32>
    %cst_94 = arith.constant dense<0.000000e+00> : vector<8x64xf32>
    %106 = tpu.matmul %94, %102, %cst_94 {dimension_numbers = #tpu.dot_dimension_numbers<[1], [0], [0], [1], [0, 0, 1, 1], [], []>} : vector<8x64xbf16>, vector<64x64xbf16>, vector<8x64xf32> -> vector<8x64xf32>
    %107 = arith.addf %105, %106 : vector<8x64xf32>
    %cst_95 = arith.constant dense<0.000000e+00> : vector<8x64xf32>
    %108 = tpu.matmul %100, %103, %cst_95 {dimension_numbers = #tpu.dot_dimension_numbers<[1], [0], [0], [1], [0, 0, 1, 1], [], []>} : vector<8x64xbf16>, vector<64x64xbf16>, vector<8x64xf32> -> vector<8x64xf32>
    %109 = arith.addf %107, %108 : vector<8x64xf32>
    %110 = vector.broadcast %104 : vector<1x64xf32> to vector<8x64xf32>
    %111 = arith.addf %109, %110 : vector<8x64xf32>
    %cst_96 = arith.constant 0.000000e+00 : f32
    %112 = vector.broadcast %cst_96 : f32 to vector<8x64xf32>
    %113 = arith.maximumf %111, %112 : vector<8x64xf32>
    %114 = arith.truncf %113 : vector<8x64xf32> to vector<8x64xbf16>
    %cst_97 = arith.constant dense<0.000000e+00> : vector<8x64xf32>
    %115 = tpu.matmul %95, %114, %cst_97 {dimension_numbers = #tpu.dot_dimension_numbers<[1], [0], [0], [1], [0, 0, 1, 1], [], []>} : vector<8x8xbf16>, vector<8x64xbf16>, vector<8x64xf32> -> vector<8x64xf32>
    %116 = arith.truncf %115 : vector<8x64xf32> to vector<8x64xbf16>
    %cst_98 = arith.constant dense<0.000000e+00> : vector<8x64xf32>
    %117 = tpu.matmul %96, %114, %cst_98 {dimension_numbers = #tpu.dot_dimension_numbers<[1], [0], [0], [1], [0, 0, 1, 1], [], []>} : vector<8x8xbf16>, vector<8x64xbf16>, vector<8x64xf32> -> vector<8x64xf32>
    %118 = arith.truncf %117 : vector<8x64xf32> to vector<8x64xbf16>
    %c0_99 = arith.constant 0 : index
    %c0_100 = arith.constant 0 : index
    %119 = vector.load %arg32[%c0_99, %c0_100] : memref<64x128xbf16, #tpu.memory_space<vmem>>, vector<64x128xbf16>
    %c0_101 = arith.constant 0 : index
    %c0_102 = arith.constant 0 : index
    %120 = vector.load %arg33[%c0_101, %c0_102] : memref<64x128xbf16, #tpu.memory_space<vmem>>, vector<64x128xbf16>
    %c0_103 = arith.constant 0 : index
    %c0_104 = arith.constant 0 : index
    %121 = vector.load %arg34[%c0_103, %c0_104] : memref<64x128xbf16, #tpu.memory_space<vmem>>, vector<64x128xbf16>
    %c0_105 = arith.constant 0 : index
    %c0_106 = arith.constant 0 : index
    %122 = vector.load %arg35[%c0_105, %c0_106] : memref<1x128xf32, #tpu.memory_space<vmem>>, vector<1x128xf32>
    %cst_107 = arith.constant dense<0.000000e+00> : vector<8x128xf32>
    %123 = tpu.matmul %116, %119, %cst_107 {dimension_numbers = #tpu.dot_dimension_numbers<[1], [0], [0], [1], [0, 0, 1, 1], [], []>} : vector<8x64xbf16>, vector<64x128xbf16>, vector<8x128xf32> -> vector<8x128xf32>
    %cst_108 = arith.constant dense<0.000000e+00> : vector<8x128xf32>
    %124 = tpu.matmul %114, %120, %cst_108 {dimension_numbers = #tpu.dot_dimension_numbers<[1], [0], [0], [1], [0, 0, 1, 1], [], []>} : vector<8x64xbf16>, vector<64x128xbf16>, vector<8x128xf32> -> vector<8x128xf32>
    %125 = arith.addf %123, %124 : vector<8x128xf32>
    %cst_109 = arith.constant dense<0.000000e+00> : vector<8x128xf32>
    %126 = tpu.matmul %118, %121, %cst_109 {dimension_numbers = #tpu.dot_dimension_numbers<[1], [0], [0], [1], [0, 0, 1, 1], [], []>} : vector<8x64xbf16>, vector<64x128xbf16>, vector<8x128xf32> -> vector<8x128xf32>
    %127 = arith.addf %125, %126 : vector<8x128xf32>
    %128 = vector.broadcast %122 : vector<1x128xf32> to vector<8x128xf32>
    %129 = arith.addf %127, %128 : vector<8x128xf32>
    %c0_110 = arith.constant 0 : index
    %c0_111 = arith.constant 0 : index
    %130 = vector.load %arg36[%c0_110, %c0_111] : memref<64x128xbf16, #tpu.memory_space<vmem>>, vector<64x128xbf16>
    %c0_112 = arith.constant 0 : index
    %c0_113 = arith.constant 0 : index
    %131 = vector.load %arg37[%c0_112, %c0_113] : memref<1x128xf32, #tpu.memory_space<vmem>>, vector<1x128xf32>
    %cst_114 = arith.constant dense<0.000000e+00> : vector<8x128xf32>
    %132 = tpu.matmul %94, %130, %cst_114 {dimension_numbers = #tpu.dot_dimension_numbers<[1], [0], [0], [1], [0, 0, 1, 1], [], []>} : vector<8x64xbf16>, vector<64x128xbf16>, vector<8x128xf32> -> vector<8x128xf32>
    %133 = vector.broadcast %131 : vector<1x128xf32> to vector<8x128xf32>
    %134 = arith.addf %132, %133 : vector<8x128xf32>
    %cst_115 = arith.constant 0.000000e+00 : f32
    %135 = vector.broadcast %cst_115 : f32 to vector<8x128xf32>
    %136 = arith.maximumf %129, %135 : vector<8x128xf32>
    %137 = arith.addf %136, %134 : vector<8x128xf32>
    %c0_116 = arith.constant 0 : index
    %c0_117 = arith.constant 0 : index
    %138 = vector.load %arg38[%c0_116, %c0_117] : memref<4x8xf32, #tpu.memory_space<vmem>>, vector<4x8xf32>
    %c0_118 = arith.constant 0 : index
    %c0_119 = arith.constant 0 : index
    %139 = vector.load %arg39[%c0_118, %c0_119] : memref<128x64xbf16, #tpu.memory_space<vmem>>, vector<128x64xbf16>
    %140 = arith.truncf %137 : vector<8x128xf32> to vector<8x128xbf16>
    %cst_120 = arith.constant dense<0.000000e+00> : vector<8x64xf32>
    %141 = tpu.matmul %140, %139, %cst_120 {dimension_numbers = #tpu.dot_dimension_numbers<[1], [0], [0], [1], [0, 0, 1, 1], [], []>} : vector<8x128xbf16>, vector<128x64xbf16>, vector<8x64xf32> -> vector<8x64xf32>
    %cst_121 = arith.constant dense<0.000000e+00> : vector<4x64xf32>
    %142 = tpu.matmul %138, %141, %cst_121 {dimension_numbers = #tpu.dot_dimension_numbers<[1], [0], [0], [1], [0, 0, 1, 1], [], []>} : vector<4x8xf32>, vector<8x64xf32>, vector<4x64xf32> -> vector<4x64xf32>
    %143 = vector.shape_cast %142 : vector<4x64xf32> to vector<1x4x64xf32>
    %c0_122 = arith.constant 0 : index
    %c0_123 = arith.constant 0 : index
    %c0_124 = arith.constant 0 : index
    %144 = vector.load %arg41[%c0_122, %c0_123, %c0_124] : memref<1x4x64xf32, #tpu.memory_space<vmem>>, vector<1x4x64xf32>
    tpu.vector_store %arg41[%c0_122, %c0_123, %c0_124], %143 {strides = array<i32>} : memref<1x4x64xf32, #tpu.memory_space<vmem>>, vector<1x4x64xf32>,
    return
  }
  func.func @transform_0(%arg0: i32) -> (i32, i32, i32) {
    %c0_i32 = arith.constant 0 : i32
    %c0_i32_0 = arith.constant 0 : i32
    %c0_i32_1 = arith.constant 0 : i32
    return %arg0, %c0_i32, %c0_i32_0 : i32, i32, i32
  }
  func.func @transform_1(%arg0: i32) -> (i32, i32) {
    %c0_i32 = arith.constant 0 : i32
    %c0_i32_0 = arith.constant 0 : i32
    %c0_i32_1 = arith.constant 0 : i32
    return %c0_i32, %c0_i32_0 : i32, i32
  }
  func.func @transform_2(%arg0: i32) -> (i32, i32) {
    %c0_i32 = arith.constant 0 : i32
    %c0_i32_0 = arith.constant 0 : i32
    %c0_i32_1 = arith.constant 0 : i32
    return %c0_i32, %c0_i32_0 : i32, i32
  }
  func.func @transform_3(%arg0: i32) -> (i32, i32) {
    %c0_i32 = arith.constant 0 : i32
    %c0_i32_0 = arith.constant 0 : i32
    %c0_i32_1 = arith.constant 0 : i32
    return %c0_i32, %c0_i32_0 : i32, i32
  }
  func.func @transform_4(%arg0: i32) -> (i32, i32) {
    %c0_i32 = arith.constant 0 : i32
    %c0_i32_0 = arith.constant 0 : i32
    %c0_i32_1 = arith.constant 0 : i32
    return %c0_i32, %c0_i32_0 : i32, i32
  }
  func.func @transform_5(%arg0: i32) -> (i32, i32) {
    %c0_i32 = arith.constant 0 : i32
    %c0_i32_0 = arith.constant 0 : i32
    %c0_i32_1 = arith.constant 0 : i32
    return %c0_i32, %c0_i32_0 : i32, i32
  }
  func.func @transform_6(%arg0: i32) -> (i32, i32) {
    %c0_i32 = arith.constant 0 : i32
    %c0_i32_0 = arith.constant 0 : i32
    %c0_i32_1 = arith.constant 0 : i32
    return %c0_i32, %c0_i32_0 : i32, i32
  }
  func.func @transform_7(%arg0: i32) -> (i32, i32) {
    %c0_i32 = arith.constant 0 : i32
    %c0_i32_0 = arith.constant 0 : i32
    %c0_i32_1 = arith.constant 0 : i32
    return %c0_i32, %c0_i32_0 : i32, i32
  }
  func.func @transform_8(%arg0: i32) -> (i32, i32) {
    %c0_i32 = arith.constant 0 : i32
    %c0_i32_0 = arith.constant 0 : i32
    %c0_i32_1 = arith.constant 0 : i32
    return %c0_i32, %c0_i32_0 : i32, i32
  }
  func.func @transform_9(%arg0: i32) -> (i32, i32) {
    %c0_i32 = arith.constant 0 : i32
    %c0_i32_0 = arith.constant 0 : i32
    %c0_i32_1 = arith.constant 0 : i32
    return %c0_i32, %c0_i32_0 : i32, i32
  }
  func.func @transform_10(%arg0: i32) -> (i32, i32) {
    %c0_i32 = arith.constant 0 : i32
    %c0_i32_0 = arith.constant 0 : i32
    %c0_i32_1 = arith.constant 0 : i32
    return %c0_i32, %c0_i32_0 : i32, i32
  }
  func.func @transform_11(%arg0: i32) -> (i32, i32) {
    %c0_i32 = arith.constant 0 : i32
    %c0_i32_0 = arith.constant 0 : i32
    %c0_i32_1 = arith.constant 0 : i32
    return %c0_i32, %c0_i32_0 : i32, i32
  }
  func.func @transform_12(%arg0: i32) -> (i32, i32) {
    %c0_i32 = arith.constant 0 : i32
    %c0_i32_0 = arith.constant 0 : i32
    %c0_i32_1 = arith.constant 0 : i32
    return %c0_i32, %c0_i32_0 : i32, i32
  }
  func.func @transform_13(%arg0: i32) -> (i32, i32) {
    %c0_i32 = arith.constant 0 : i32
    %c0_i32_0 = arith.constant 0 : i32
    %c0_i32_1 = arith.constant 0 : i32
    return %c0_i32, %c0_i32_0 : i32, i32
  }
  func.func @transform_14(%arg0: i32) -> (i32, i32) {
    %c0_i32 = arith.constant 0 : i32
    %c0_i32_0 = arith.constant 0 : i32
    %c0_i32_1 = arith.constant 0 : i32
    return %c0_i32, %c0_i32_0 : i32, i32
  }
  func.func @transform_15(%arg0: i32) -> (i32, i32) {
    %c0_i32 = arith.constant 0 : i32
    %c0_i32_0 = arith.constant 0 : i32
    %c0_i32_1 = arith.constant 0 : i32
    return %c0_i32, %c0_i32_0 : i32, i32
  }
  func.func @transform_16(%arg0: i32) -> (i32, i32) {
    %c0_i32 = arith.constant 0 : i32
    %c0_i32_0 = arith.constant 0 : i32
    %c0_i32_1 = arith.constant 0 : i32
    return %c0_i32, %c0_i32_0 : i32, i32
  }
  func.func @transform_17(%arg0: i32) -> (i32, i32) {
    %c0_i32 = arith.constant 0 : i32
    %c0_i32_0 = arith.constant 0 : i32
    %c0_i32_1 = arith.constant 0 : i32
    return %c0_i32, %c0_i32_0 : i32, i32
  }
  func.func @transform_18(%arg0: i32) -> (i32, i32) {
    %c0_i32 = arith.constant 0 : i32
    %c0_i32_0 = arith.constant 0 : i32
    %c0_i32_1 = arith.constant 0 : i32
    return %c0_i32, %c0_i32_0 : i32, i32
  }
  func.func @transform_19(%arg0: i32) -> (i32, i32) {
    %c0_i32 = arith.constant 0 : i32
    %c0_i32_0 = arith.constant 0 : i32
    %c0_i32_1 = arith.constant 0 : i32
    return %c0_i32, %c0_i32_0 : i32, i32
  }
  func.func @transform_20(%arg0: i32) -> (i32, i32) {
    %c0_i32 = arith.constant 0 : i32
    %c0_i32_0 = arith.constant 0 : i32
    %c0_i32_1 = arith.constant 0 : i32
    return %c0_i32, %c0_i32_0 : i32, i32
  }
  func.func @transform_21(%arg0: i32) -> (i32, i32) {
    %c0_i32 = arith.constant 0 : i32
    %c0_i32_0 = arith.constant 0 : i32
    %c0_i32_1 = arith.constant 0 : i32
    return %c0_i32, %c0_i32_0 : i32, i32
  }
  func.func @transform_22(%arg0: i32) -> (i32, i32) {
    %c0_i32 = arith.constant 0 : i32
    %c0_i32_0 = arith.constant 0 : i32
    %c0_i32_1 = arith.constant 0 : i32
    return %c0_i32, %c0_i32_0 : i32, i32
  }
  func.func @transform_23(%arg0: i32) -> (i32, i32) {
    %c0_i32 = arith.constant 0 : i32
    %c0_i32_0 = arith.constant 0 : i32
    %c0_i32_1 = arith.constant 0 : i32
    return %c0_i32, %c0_i32_0 : i32, i32
  }
  func.func @transform_24(%arg0: i32) -> (i32, i32) {
    %c0_i32 = arith.constant 0 : i32
    %c0_i32_0 = arith.constant 0 : i32
    %c0_i32_1 = arith.constant 0 : i32
    return %c0_i32, %c0_i32_0 : i32, i32
  }
  func.func @transform_25(%arg0: i32) -> (i32, i32) {
    %c0_i32 = arith.constant 0 : i32
    %c0_i32_0 = arith.constant 0 : i32
    %c0_i32_1 = arith.constant 0 : i32
    return %c0_i32, %c0_i32_0 : i32, i32
  }
  func.func @transform_26(%arg0: i32) -> (i32, i32) {
    %c0_i32 = arith.constant 0 : i32
    %c0_i32_0 = arith.constant 0 : i32
    %c0_i32_1 = arith.constant 0 : i32
    return %c0_i32, %c0_i32_0 : i32, i32
  }
  func.func @transform_27(%arg0: i32) -> (i32, i32) {
    %c0_i32 = arith.constant 0 : i32
    %c0_i32_0 = arith.constant 0 : i32
    %c0_i32_1 = arith.constant 0 : i32
    return %c0_i32, %c0_i32_0 : i32, i32
  }
  func.func @transform_28(%arg0: i32) -> (i32, i32) {
    %c0_i32 = arith.constant 0 : i32
    %c0_i32_0 = arith.constant 0 : i32
    %c0_i32_1 = arith.constant 0 : i32
    return %c0_i32, %c0_i32_0 : i32, i32
  }
  func.func @transform_29(%arg0: i32) -> (i32, i32) {
    %c0_i32 = arith.constant 0 : i32
    %c0_i32_0 = arith.constant 0 : i32
    %c0_i32_1 = arith.constant 0 : i32
    return %c0_i32, %c0_i32_0 : i32, i32
  }
  func.func @transform_30(%arg0: i32) -> (i32, i32) {
    %c0_i32 = arith.constant 0 : i32
    %c0_i32_0 = arith.constant 0 : i32
    %c0_i32_1 = arith.constant 0 : i32
    return %c0_i32, %c0_i32_0 : i32, i32
  }
  func.func @transform_31(%arg0: i32) -> (i32, i32) {
    %c0_i32 = arith.constant 0 : i32
    %c0_i32_0 = arith.constant 0 : i32
    %c0_i32_1 = arith.constant 0 : i32
    return %c0_i32, %c0_i32_0 : i32, i32
  }
  func.func @transform_32(%arg0: i32) -> (i32, i32) {
    %c0_i32 = arith.constant 0 : i32
    %c0_i32_0 = arith.constant 0 : i32
    %c0_i32_1 = arith.constant 0 : i32
    return %c0_i32, %c0_i32_0 : i32, i32
  }
  func.func @transform_33(%arg0: i32) -> (i32, i32) {
    %c0_i32 = arith.constant 0 : i32
    %c0_i32_0 = arith.constant 0 : i32
    %c0_i32_1 = arith.constant 0 : i32
    return %c0_i32, %c0_i32_0 : i32, i32
  }
  func.func @transform_34(%arg0: i32) -> (i32, i32) {
    %c0_i32 = arith.constant 0 : i32
    %c0_i32_0 = arith.constant 0 : i32
    %c0_i32_1 = arith.constant 0 : i32
    return %c0_i32, %c0_i32_0 : i32, i32
  }
  func.func @transform_35(%arg0: i32) -> (i32, i32) {
    %c0_i32 = arith.constant 0 : i32
    %c0_i32_0 = arith.constant 0 : i32
    %c0_i32_1 = arith.constant 0 : i32
    return %c0_i32, %c0_i32_0 : i32, i32
  }
  func.func @transform_36(%arg0: i32) -> (i32, i32) {
    %c0_i32 = arith.constant 0 : i32
    %c0_i32_0 = arith.constant 0 : i32
    %c0_i32_1 = arith.constant 0 : i32
    return %c0_i32, %c0_i32_0 : i32, i32
  }
  func.func @transform_37(%arg0: i32) -> (i32, i32) {
    %c0_i32 = arith.constant 0 : i32
    %c0_i32_0 = arith.constant 0 : i32
    %c0_i32_1 = arith.constant 0 : i32
    return %c0_i32, %c0_i32_0 : i32, i32
  }
  func.func @transform_38(%arg0: i32) -> (i32, i32) {
    %c0_i32 = arith.constant 0 : i32
    %c0_i32_0 = arith.constant 0 : i32
    %c0_i32_1 = arith.constant 0 : i32
    return %c0_i32, %c0_i32_0 : i32, i32
  }
  func.func @transform_39(%arg0: i32) -> (i32, i32, i32) {
    %c0_i32 = arith.constant 0 : i32
    %c0_i32_0 = arith.constant 0 : i32
    %c0_i32_1 = arith.constant 0 : i32
    return %arg0, %c0_i32, %c0_i32_0 : i32, i32, i32
  }
  func.func @transform_40(%arg0: i32) -> (i32, i32, i32) {
    %c0_i32 = arith.constant 0 : i32
    %c0_i32_0 = arith.constant 0 : i32
    %c0_i32_1 = arith.constant 0 : i32
    return %arg0, %c0_i32, %c0_i32_0 : i32, i32, i32
  }
}

</mosaic_0001>

<llo_original>
// kernel: tpu_custom_call.1
$region0: #{tpu_custom_call.1}
  #allocation0 [shape = 'u32[]', space=smem, size = 0x4, offset = 0x4, fixed_abs, tag = 'smem constant byte address 0x4 - core index']
  #allocation1 [shape = 'u32[144,128]{1,0:T(1,128)}', space=vmem, size = 0x12000, scoped, tag = 'internal scratch']
  %s0 = inlined_call_operand.smem [shape: u32[41], index: -1, kind: input, shape index: {}]
  %s1 = sld [smem:[%s0]]
  %s2 = scalar_lea.smem %s0, 1
  %s3 = sld [smem:[%s2]]
  %s4 = scalar_lea.smem %s0, 2
  %s5 = sld [smem:[%s4]]
  %s6 = scalar_lea.smem %s0, 3
  %s7 = sld [smem:[%s6]]
  %s8 = scalar_lea.smem %s0, 4
  %s9 = sld [smem:[%s8]]
  %s10 = scalar_lea.smem %s0, 5
  %s11 = sld [smem:[%s10]]
  %s12 = scalar_lea.smem %s0, 6
  %s13 = sld [smem:[%s12]]
  %s14 = scalar_lea.smem %s0, 7
  %s15 = sld [smem:[%s14]]
  %s16 = scalar_lea.smem %s0, 8
  %s17 = sld [smem:[%s16]]
  %s18 = scalar_lea.smem %s0, 9
  %s19 = sld [smem:[%s18]]
  %s20 = scalar_lea.smem %s0, 10
  %s21 = sld [smem:[%s20]]
  %s22 = scalar_lea.smem %s0, 11
  %s23 = sld [smem:[%s22]]
  %s24 = scalar_lea.smem %s0, 12
  %s25 = sld [smem:[%s24]]
  %s26 = scalar_lea.smem %s0, 13
  %s27 = sld [smem:[%s26]]
  %s28 = scalar_lea.smem %s0, 14
  %s29 = sld [smem:[%s28]]
  %s30 = scalar_lea.smem %s0, 15
  %s31 = sld [smem:[%s30]]
  %s32 = scalar_lea.smem %s0, 16
  %s33 = sld [smem:[%s32]]
  %s34 = scalar_lea.smem %s0, 17
  %s35 = sld [smem:[%s34]]
  %s36 = scalar_lea.smem %s0, 18
  %s37 = sld [smem:[%s36]]
  %s38 = scalar_lea.smem %s0, 19
  %s39 = sld [smem:[%s38]]
  %s40 = scalar_lea.smem %s0, 20
  %s41 = sld [smem:[%s40]]
  %s42 = scalar_lea.smem %s0, 21
  %s43 = sld [smem:[%s42]]
  %s44 = scalar_lea.smem %s0, 22
  %s45 = sld [smem:[%s44]]
  %s46 = scalar_lea.smem %s0, 23
  %s47 = sld [smem:[%s46]]
  %s48 = scalar_lea.smem %s0, 24
  %s49 = sld [smem:[%s48]]
  %s50 = scalar_lea.smem %s0, 25
  %s51 = sld [smem:[%s50]]
  %s52 = scalar_lea.smem %s0, 26
  %s53 = sld [smem:[%s52]]
  %s54 = scalar_lea.smem %s0, 27
  %s55 = sld [smem:[%s54]]
  %s56 = scalar_lea.smem %s0, 28
  %s57 = sld [smem:[%s56]]
  %s58 = scalar_lea.smem %s0, 29
  %s59 = sld [smem:[%s58]]
  %s60 = scalar_lea.smem %s0, 30
  %s61 = sld [smem:[%s60]]
  %s62 = scalar_lea.smem %s0, 31
  %s63 = sld [smem:[%s62]]
  %s64 = scalar_lea.smem %s0, 32
  %s65 = sld [smem:[%s64]]
  %s66 = scalar_lea.smem %s0, 33
  %s67 = sld [smem:[%s66]]
  %s68 = scalar_lea.smem %s0, 34
  %s69 = sld [smem:[%s68]]
  %s70 = scalar_lea.smem %s0, 35
  %s71 = sld [smem:[%s70]]
  %s72 = scalar_lea.smem %s0, 36
  %s73 = sld [smem:[%s72]]
  %s74 = scalar_lea.smem %s0, 37
  %s75 = sld [smem:[%s74]]
  %s76 = scalar_lea.smem %s0, 38
  %s77 = sld [smem:[%s76]]
  %s78 = scalar_lea.smem %s0, 39
  %s79 = sld [smem:[%s78]]
  %s80 = scalar_lea.smem %s0, 40
  %s81 = sld [smem:[%s80]]
  %82 = xla_tuple %s79, %s81
  %s83 = sld [smem:[#allocation0]]
  $region317: #{tpu_custom_call.1} parent=0
    _
  %s85 = ssub.s32 1, %s83
  %s86 = scalar_select 0, %s85, %s83
  $region1: #{tpu_custom_call.1} parent=0
    #allocation2 [shape = 'u8[8192]{0}', space=vmem, size = 0x2000, scoped, tag = 'input window, operand 0']
    #allocation3 [shape = 's32[2]{0}', space=sflag, size = 0x8, scoped, tag = 'scoped memory for tpu_custom_call.1']
    #allocation4 [shape = 's32[2]{0}', space=sflag, size = 0x8, scoped, tag = 'scoped memory for tpu_custom_call.1']
    #allocation5 [shape = 'u8[16384]{0}', space=vmem, size = 0x4000, scoped, tag = 'input window, operand 1, single buffered']
    #allocation6 [shape = 's32[1]{0}', space=sflag, size = 0x4, scoped, tag = 'scoped memory for tpu_custom_call.1']
    #allocation7 [shape = 'u8[512]{0}', space=vmem, size = 0x400, scoped, tag = 'input window, operand 2, single buffered']
    #allocation8 [shape = 'u8[4096]{0}', space=vmem, size = 0x1000, scoped, tag = 'input window, operand 3, single buffered']
    #allocation9 [shape = 's32[1]{0}', space=sflag, size = 0x4, scoped, tag = 'scoped memory for tpu_custom_call.1']
    #allocation10 [shape = 'u8[4096]{0}', space=vmem, size = 0x1000, scoped, tag = 'input window, operand 4, single buffered']
    #allocation11 [shape = 'u8[512]{0}', space=vmem, size = 0x400, scoped, tag = 'input window, operand 8, single buffered']
    #allocation12 [shape = 's32[1]{0}', space=sflag, size = 0x4, scoped, tag = 'scoped memory for tpu_custom_call.1']
    #allocation13 [shape = 'u8[32768]{0}', space=vmem, size = 0x8000, scoped, tag = 'input window, operand 9, single buffered']
    #allocation14 [shape = 'u8[32768]{0}', space=vmem, size = 0x8000, scoped, tag = 'input window, operand 10, single buffered']
    #allocation15 [shape = 's32[1]{0}', space=sflag, size = 0x4, scoped, tag = 'scoped memory for tpu_custom_call.1']
    #allocation16 [shape = 'u8[32768]{0}', space=vmem, size = 0x8000, scoped, tag = 'input window, operand 11, single buffered']
    #allocation17 [shape = 'u8[512]{0}', space=vmem, size = 0x400, scoped, tag = 'input window, operand 12, single buffered']
    #allocation18 [shape = 's32[1]{0}', space=sflag, size = 0x4, scoped, tag = 'scoped memory for tpu_custom_call.1']
    #allocation19 [shape = 'u8[4096]{0}', space=vmem, size = 0x1000, scoped, tag = 'input window, operand 13, single buffered']
    #allocation20 [shape = 'u8[4096]{0}', space=vmem, size = 0x1000, scoped, tag = 'input window, operand 14, single buffered']
    #allocation21 [shape = 's32[1]{0}', space=sflag, size = 0x4, scoped, tag = 'scoped memory for tpu_custom_call.1']
    #allocation22 [shape = 'u8[32768]{0}', space=vmem, size = 0x8000, scoped, tag = 'input window, operand 15, single buffered']
    #allocation23 [shape = 'u8[32768]{0}', space=vmem, size = 0x8000, scoped, tag = 'input window, operand 16, single buffered']
    #allocation24 [shape = 's32[1]{0}', space=sflag, size = 0x4, scoped, tag = 'scoped memory for tpu_custom_call.1']
    #allocation25 [shape = 'u8[512]{0}', space=vmem, size = 0x400, scoped, tag = 'input window, operand 18, single buffered']
    #allocation26 [shape = 'u8[32768]{0}', space=vmem, size = 0x8000, scoped, tag = 'input window, operand 19, single buffered']
    #allocation27 [shape = 's32[1]{0}', space=sflag, size = 0x4, scoped, tag = 'scoped memory for tpu_custom_call.1']
    #allocation28 [shape = 'u8[32768]{0}', space=vmem, size = 0x8000, scoped, tag = 'input window, operand 20, single buffered']
    #allocation29 [shape = 'u8[32768]{0}', space=vmem, size = 0x8000, scoped, tag = 'input window, operand 21, single buffered']
    #allocation30 [shape = 's32[1]{0}', space=sflag, size = 0x4, scoped, tag = 'scoped memory for tpu_custom_call.1']
    #allocation31 [shape = 'u8[512]{0}', space=vmem, size = 0x400, scoped, tag = 'input window, operand 22, single buffered']
    #allocation32 [shape = 'u8[4096]{0}', space=vmem, size = 0x1000, scoped, tag = 'input window, operand 23, single buffered']
    #allocation33 [shape = 's32[1]{0}', space=sflag, size = 0x4, scoped, tag = 'scoped memory for tpu_custom_call.1']
    #allocation34 [shape = 'u8[2048]{0}', space=vmem, size = 0x800, scoped, tag = 'input window, operand 25, single buffered']
    #allocation35 [shape = 'u8[2048]{0}', space=vmem, size = 0x800, scoped, tag = 'input window, operand 26, single buffered']
    #allocation36 [shape = 's32[1]{0}', space=sflag, size = 0x4, scoped, tag = 'scoped memory for tpu_custom_call.1']
    #allocation37 [shape = 'u8[16384]{0}', space=vmem, size = 0x4000, scoped, tag = 'input window, operand 27, single buffered']
    #allocation38 [shape = 'u8[16384]{0}', space=vmem, size = 0x4000, scoped, tag = 'input window, operand 28, single buffered']
    #allocation39 [shape = 's32[1]{0}', space=sflag, size = 0x4, scoped, tag = 'scoped memory for tpu_custom_call.1']
    #allocation40 [shape = 'u8[16384]{0}', space=vmem, size = 0x4000, scoped, tag = 'input window, operand 29, single buffered']
    #allocation41 [shape = 'u8[512]{0}', space=vmem, size = 0x400, scoped, tag = 'input window, operand 30, single buffered']
    #allocation42 [shape = 's32[1]{0}', space=sflag, size = 0x4, scoped, tag = 'scoped memory for tpu_custom_call.1']
    #allocation43 [shape = 'u8[16384]{0}', space=vmem, size = 0x4000, scoped, tag = 'input window, operand 31, single buffered']
    #allocation44 [shape = 'u8[16384]{0}', space=vmem, size = 0x4000, scoped, tag = 'input window, operand 32, single buffered']
    #allocation45 [shape = 's32[1]{0}', space=sflag, size = 0x4, scoped, tag = 'scoped memory for tpu_custom_call.1']
    #allocation46 [shape = 'u8[16384]{0}', space=vmem, size = 0x4000, scoped, tag = 'input window, operand 33, single buffered']
    #allocation47 [shape = 'u8[512]{0}', space=vmem, size = 0x400, scoped, tag = 'input window, operand 34, single buffered']
    #allocation48 [shape = 's32[1]{0}', space=sflag, size = 0x4, scoped, tag = 'scoped memory for tpu_custom_call.1']
    #allocation49 [shape = 'u8[8192]{0}', space=vmem, size = 0x2000, scoped, tag = 'output window, operand 0']
    #allocation50 [shape = 'u8[4096]{0}', space=vmem, size = 0x1000, scoped, tag = 'output window, operand 1']
    #allocation51 [shape = 's32[2]{0}', space=sflag, size = 0x8, scoped, tag = 'scoped memory for tpu_custom_call.1']
    %87 = vsyncpa [#allocation3], 0
    %s88 = scalar_lea.sflag [#allocation3], 1
    %89 = vsyncpa %s88, 0
    %90 = vsyncpa [#allocation6], 0
    %91 = vsyncpa [#allocation9], 0
    %92 = vsyncpa [#allocation12], 0
    %93 = vsyncpa [#allocation15], 0
    %94 = vsyncpa [#allocation18], 0
    %95 = vsyncpa [#allocation21], 0
    %96 = vsyncpa [#allocation24], 0
    %97 = vsyncpa [#allocation27], 0
    %98 = vsyncpa [#allocation30], 0
    %99 = vsyncpa [#allocation33], 0
    %100 = vsyncpa [#allocation36], 0
    %101 = vsyncpa [#allocation39], 0
    %102 = vsyncpa [#allocation42], 0
    %103 = vsyncpa [#allocation45], 0
    %104 = vsyncpa [#allocation48], 0
    %105 = vsyncpa [#allocation4], 0
    %s106 = scalar_lea.sflag [#allocation4], 1
    %107 = vsyncpa %s106, 0
    %108 = vsyncpa [#allocation51], 0
    %s109 = scalar_lea.sflag [#allocation51], 1
    %110 = vsyncpa %s109, 0
    loop: start=0, step=1, limit=4
    $region2: #{tpu_custom_call.1} parent=1 // loop_pre_header
      _
    $region3: #{tpu_custom_call.1} parent=1 // loop_header
      %s112 = sphi 0, %s116
      %p113 = scmp.ge.s32.totalorder %s112, 4
      %s122 = sphi 0, %s124
      %s125 = sphi 0, %s122
      %s126 = sphi 0, %s125
      %s142 = sphi 0, %s126
      %s146 = sphi 0, %s146
      %s148 = sphi 0, %s146
      %s149 = sphi 0, %s148
      %s163 = sphi 0, %s149
      %s167 = sphi 0, %s167
      %s169 = sphi 0, %s167
      %s170 = sphi 0, %s169
      %s184 = sphi 0, %s170
      %s188 = sphi 0, %s188
      %s190 = sphi 0, %s188
      %s191 = sphi 0, %s190
      %s205 = sphi 0, %s191
      %s209 = sphi 0, %s209
      %s211 = sphi 0, %s209
      %s212 = sphi 0, %s211
      %s226 = sphi 0, %s212
      %s230 = sphi 0, %s230
      %s232 = sphi 0, %s230
      %s233 = sphi 0, %s232
      %s247 = sphi 0, %s233
      %s251 = sphi 0, %s251
      %s253 = sphi 0, %s251
      %s254 = sphi 0, %s253
      %s268 = sphi 0, %s254
      %s272 = sphi 0, %s272
      %s274 = sphi 0, %s272
      %s275 = sphi 0, %s274
      %s289 = sphi 0, %s275
      %s293 = sphi 0, %s293
      %s295 = sphi 0, %s293
      %s296 = sphi 0, %s295
      %s310 = sphi 0, %s296
      %s314 = sphi 0, %s314
      %s316 = sphi 0, %s314
      %s317 = sphi 0, %s316
      %s331 = sphi 0, %s317
      %s335 = sphi 0, %s335
      %s337 = sphi 0, %s335
      %s338 = sphi 0, %s337
      %s352 = sphi 0, %s338
      %s356 = sphi 0, %s356
      %s358 = sphi 0, %s356
      %s359 = sphi 0, %s358
      %s373 = sphi 0, %s359
      %s377 = sphi 0, %s377
      %s379 = sphi 0, %s377
      %s380 = sphi 0, %s379
      %s394 = sphi 0, %s380
      %s398 = sphi 0, %s398
      %s400 = sphi 0, %s398
      %s401 = sphi 0, %s400
      %s415 = sphi 0, %s401
      %s419 = sphi 0, %s419
      %s421 = sphi 0, %s419
      %s422 = sphi 0, %s421
      %s436 = sphi 0, %s422
      %s440 = sphi 0, %s440
      %s442 = sphi 0, %s440
      %s443 = sphi 0, %s442
      %s457 = sphi 0, %s443
      %s461 = sphi 0, %s461
      %s463 = sphi 0, %s461
      %s464 = sphi 0, %s463
      %s478 = sphi 0, %s464
      %s482 = sphi 0, %s482
      %s484 = sphi 0, %s482
      %s485 = sphi 0, %s484
      %s499 = sphi 0, %s485
      %s503 = sphi 0, %s503
      %s505 = sphi 0, %s503
      %s506 = sphi 0, %s505
      %s520 = sphi 0, %s506
      %s524 = sphi 0, %s524
      %s526 = sphi 0, %s524
      %s527 = sphi 0, %s526
      %s541 = sphi 0, %s527
      %s545 = sphi 0, %s545
      %s547 = sphi 0, %s545
      %s548 = sphi 0, %s547
      %s562 = sphi 0, %s548
      %s566 = sphi 0, %s566
      %s568 = sphi 0, %s566
      %s569 = sphi 0, %s568
      %s583 = sphi 0, %s569
      %s587 = sphi 0, %s587
      %s589 = sphi 0, %s587
      %s590 = sphi 0, %s589
      %s604 = sphi 0, %s590
      %s608 = sphi 0, %s608
      %s610 = sphi 0, %s608
      %s611 = sphi 0, %s610
      %s625 = sphi 0, %s611
      %s629 = sphi 0, %s629
      %s631 = sphi 0, %s629
      %s632 = sphi 0, %s631
      %s646 = sphi 0, %s632
      %s650 = sphi 0, %s650
      %s652 = sphi 0, %s650
      %s653 = sphi 0, %s652
      %s667 = sphi 0, %s653
      %s671 = sphi 0, %s671
      %s673 = sphi 0, %s671
      %s674 = sphi 0, %s673
      %s688 = sphi 0, %s674
      %s692 = sphi 0, %s692
      %s694 = sphi 0, %s692
      %s695 = sphi 0, %s694
      %s709 = sphi 0, %s695
      %s713 = sphi 0, %s713
      %s715 = sphi 0, %s713
      %s716 = sphi 0, %s715
      %s730 = sphi 0, %s716
      %s734 = sphi 0, %s734
      %s736 = sphi 0, %s734
      %s737 = sphi 0, %s736
      %s751 = sphi 0, %s737
      %s755 = sphi 0, %s755
      %s757 = sphi 0, %s755
      %s758 = sphi 0, %s757
      %s772 = sphi 0, %s758
      %s776 = sphi 0, %s776
      %s778 = sphi 0, %s776
      %s779 = sphi 0, %s778
      %s793 = sphi 0, %s779
      %s797 = sphi 0, %s797
      %s799 = sphi 0, %s797
      %s800 = sphi 0, %s799
      %s814 = sphi 0, %s800
      %s818 = sphi 0, %s818
      %s820 = sphi 0, %s818
      %s821 = sphi 0, %s820
      %s835 = sphi 0, %s821
      %s839 = sphi 0, %s839
      %s841 = sphi 0, %s839
      %s842 = sphi 0, %s841
      %s856 = sphi 0, %s842
      %s860 = sphi 0, %s860
      %s862 = sphi 0, %s860
      %s863 = sphi 0, %s862
      %s877 = sphi 0, %s863
      %s881 = sphi 0, %s881
      %s883 = sphi 0, %s881
      %s884 = sphi 0, %s883
      %s898 = sphi 0, %s884
      %s902 = sphi 0, %s902
      %s904 = sphi 0, %s902
      %s905 = sphi 0, %s904
      %s919 = sphi 0, %s905
      %s923 = sphi 0, %s923
      %s925 = sphi 0, %s923
      %s926 = sphi 0, %s925
      %s940 = sphi 0, %s926
      %s946 = sphi 0, %s948
      %s949 = sphi 0, %s946
      %s950 = sphi 0, %s949
      %s966 = sphi 0, %s950
      %s972 = sphi 0, %s974
      %s975 = sphi 0, %s972
      %s976 = sphi 0, %s975
      %s992 = sphi 0, %s976
    $region4: #{tpu_custom_call.1} parent=1 // loop_header_branch
      %115 = sbr.rel (%p113) target = $region8
    $region5: #{tpu_custom_call.1} parent=1 // loop_body
      %s117 = ssub.s32 %s112, 1
      %s118 = ssub.s32 %s112, 2
      %s119 = sadd.s32 %s112, 1
      %s120 = ssub.s32 %s112, %s119
      %p121 = scmp.eq.s32.totalorder %s120, 0
      %s123 = sadd.s32 %s122, 1
      %s124 = scalar_select %p121, %s122, %s123
      %p127 = pneg %p121
      %p128 = scmp.eq.s32.totalorder %s112, 1
      %p129 = por %p127, %p128
      %p130 = scmp.ne.s32.totalorder %s122, %s125
      %p131 = scmp.eq.s32.totalorder %s112, 0
      %p132 = por %p130, %p131
      %p133 = scmp.ne.s32.totalorder %s122, %s125
      %p134 = scmp.eq.s32.totalorder %s117, 1
      %p135 = por %p133, %p134
      %p136 = scmp.ne.s32.totalorder %s125, %s126
      %p137 = scmp.eq.s32.totalorder %s117, 0
      %p138 = por %p136, %p137
      %p139 = scmp.ne.s32.totalorder %s125, %s126
      %p140 = scmp.eq.s32.totalorder %s118, 1
      %p141 = por %p139, %p140
      %p143 = scmp.ne.s32.totalorder %s126, %s142
      %p144 = scmp.eq.s32.totalorder %s118, 0
      %p145 = por %p143, %p144
      %s147 = sadd.s32 %s146, 1
      %p150 = scmp.eq.s32.totalorder %s112, 1
      %p151 = scmp.ne.s32.totalorder %s146, %s148
      %p152 = scmp.eq.s32.totalorder %s112, 0
      %p153 = por %p151, %p152
      %p154 = scmp.ne.s32.totalorder %s146, %s148
      %p155 = scmp.eq.s32.totalorder %s117, 1
      %p156 = por %p154, %p155
      %p157 = scmp.ne.s32.totalorder %s148, %s149
      %p158 = scmp.eq.s32.totalorder %s117, 0
      %p159 = por %p157, %p158
      %p160 = scmp.ne.s32.totalorder %s148, %s149
      %p161 = scmp.eq.s32.totalorder %s118, 1
      %p162 = por %p160, %p161
      %p164 = scmp.ne.s32.totalorder %s149, %s163
      %p165 = scmp.eq.s32.totalorder %s118, 0
      %p166 = por %p164, %p165
      %s168 = sadd.s32 %s167, 1
      %p171 = scmp.eq.s32.totalorder %s112, 1
      %p172 = scmp.ne.s32.totalorder %s167, %s169
      %p173 = scmp.eq.s32.totalorder %s112, 0
      %p174 = por %p172, %p173
      %p175 = scmp.ne.s32.totalorder %s167, %s169
      %p176 = scmp.eq.s32.totalorder %s117, 1
      %p177 = por %p175, %p176
      %p178 = scmp.ne.s32.totalorder %s169, %s170
      %p179 = scmp.eq.s32.totalorder %s117, 0
      %p180 = por %p178, %p179
      %p181 = scmp.ne.s32.totalorder %s169, %s170
      %p182 = scmp.eq.s32.totalorder %s118, 1
      %p183 = por %p181, %p182
      %p185 = scmp.ne.s32.totalorder %s170, %s184
      %p186 = scmp.eq.s32.totalorder %s118, 0
      %p187 = por %p185, %p186
      %s189 = sadd.s32 %s188, 1
      %p192 = scmp.eq.s32.totalorder %s112, 1
      %p193 = scmp.ne.s32.totalorder %s188, %s190
      %p194 = scmp.eq.s32.totalorder %s112, 0
      %p195 = por %p193, %p194
      %p196 = scmp.ne.s32.totalorder %s188, %s190
      %p197 = scmp.eq.s32.totalorder %s117, 1
      %p198 = por %p196, %p197
      %p199 = scmp.ne.s32.totalorder %s190, %s191
      %p200 = scmp.eq.s32.totalorder %s117, 0
      %p201 = por %p199, %p200
      %p202 = scmp.ne.s32.totalorder %s190, %s191
      %p203 = scmp.eq.s32.totalorder %s118, 1
      %p204 = por %p202, %p203
      %p206 = scmp.ne.s32.totalorder %s191, %s205
      %p207 = scmp.eq.s32.totalorder %s118, 0
      %p208 = por %p206, %p207
      %s210 = sadd.s32 %s209, 1
      %p213 = scmp.eq.s32.totalorder %s112, 1
      %p214 = scmp.ne.s32.totalorder %s209, %s211
      %p215 = scmp.eq.s32.totalorder %s112, 0
      %p216 = por %p214, %p215
      %p217 = scmp.ne.s32.totalorder %s209, %s211
      %p218 = scmp.eq.s32.totalorder %s117, 1
      %p219 = por %p217, %p218
      %p220 = scmp.ne.s32.totalorder %s211, %s212
      %p221 = scmp.eq.s32.totalorder %s117, 0
      %p222 = por %p220, %p221
      %p223 = scmp.ne.s32.totalorder %s211, %s212
      %p224 = scmp.eq.s32.totalorder %s118, 1
      %p225 = por %p223, %p224
      %p227 = scmp.ne.s32.totalorder %s212, %s226
      %p228 = scmp.eq.s32.totalorder %s118, 0
      %p229 = por %p227, %p228
      %s231 = sadd.s32 %s230, 1
      %p234 = scmp.eq.s32.totalorder %s112, 1
      %p235 = scmp.ne.s32.totalorder %s230, %s232
      %p236 = scmp.eq.s32.totalorder %s112, 0
      %p237 = por %p235, %p236
      %p238 = scmp.ne.s32.totalorder %s230, %s232
      %p239 = scmp.eq.s32.totalorder %s117, 1
      %p240 = por %p238, %p239
      %p241 = scmp.ne.s32.totalorder %s232, %s233
      %p242 = scmp.eq.s32.totalorder %s117, 0
      %p243 = por %p241, %p242
      %p244 = scmp.ne.s32.totalorder %s232, %s233
      %p245 = scmp.eq.s32.totalorder %s118, 1
      %p246 = por %p244, %p245
      %p248 = scmp.ne.s32.totalorder %s233, %s247
      %p249 = scmp.eq.s32.totalorder %s118, 0
      %p250 = por %p248, %p249
      %s252 = sadd.s32 %s251, 1
      %p255 = scmp.eq.s32.totalorder %s112, 1
      %p256 = scmp.ne.s32.totalorder %s251, %s253
      %p257 = scmp.eq.s32.totalorder %s112, 0
      %p258 = por %p256, %p257
      %p259 = scmp.ne.s32.totalorder %s251, %s253
      %p260 = scmp.eq.s32.totalorder %s117, 1
      %p261 = por %p259, %p260
      %p262 = scmp.ne.s32.totalorder %s253, %s254
      %p263 = scmp.eq.s32.totalorder %s117, 0
      %p264 = por %p262, %p263
      %p265 = scmp.ne.s32.totalorder %s253, %s254
      %p266 = scmp.eq.s32.totalorder %s118, 1
      %p267 = por %p265, %p266
      %p269 = scmp.ne.s32.totalorder %s254, %s268
      %p270 = scmp.eq.s32.totalorder %s118, 0
      %p271 = por %p269, %p270
      %s273 = sadd.s32 %s272, 1
      %p276 = scmp.eq.s32.totalorder %s112, 1
      %p277 = scmp.ne.s32.totalorder %s272, %s274
      %p278 = scmp.eq.s32.totalorder %s112, 0
      %p279 = por %p277, %p278
      %p280 = scmp.ne.s32.totalorder %s272, %s274
      %p281 = scmp.eq.s32.totalorder %s117, 1
      %p282 = por %p280, %p281
      %p283 = scmp.ne.s32.totalorder %s274, %s275
      %p284 = scmp.eq.s32.totalorder %s117, 0
      %p285 = por %p283, %p284
      %p286 = scmp.ne.s32.totalorder %s274, %s275
      %p287 = scmp.eq.s32.totalorder %s118, 1
      %p288 = por %p286, %p287
      %p290 = scmp.ne.s32.totalorder %s275, %s289
      %p291 = scmp.eq.s32.totalorder %s118, 0
      %p292 = por %p290, %p291
      %s294 = sadd.s32 %s293, 1
      %p297 = scmp.eq.s32.totalorder %s112, 1
      %p298 = scmp.ne.s32.totalorder %s293, %s295
      %p299 = scmp.eq.s32.totalorder %s112, 0
      %p300 = por %p298, %p299
      %p301 = scmp.ne.s32.totalorder %s293, %s295
      %p302 = scmp.eq.s32.totalorder %s117, 1
      %p303 = por %p301, %p302
      %p304 = scmp.ne.s32.totalorder %s295, %s296
      %p305 = scmp.eq.s32.totalorder %s117, 0
      %p306 = por %p304, %p305
      %p307 = scmp.ne.s32.totalorder %s295, %s296
      %p308 = scmp.eq.s32.totalorder %s118, 1
      %p309 = por %p307, %p308
      %p311 = scmp.ne.s32.totalorder %s296, %s310
      %p312 = scmp.eq.s32.totalorder %s118, 0
      %p313 = por %p311, %p312
      %s315 = sadd.s32 %s314, 1
      %p318 = scmp.eq.s32.totalorder %s112, 1
      %p319 = scmp.ne.s32.totalorder %s314, %s316
      %p320 = scmp.eq.s32.totalorder %s112, 0
      %p321 = por %p319, %p320
      %p322 = scmp.ne.s32.totalorder %s314, %s316
      %p323 = scmp.eq.s32.totalorder %s117, 1
      %p324 = por %p322, %p323
      %p325 = scmp.ne.s32.totalorder %s316, %s317
      %p326 = scmp.eq.s32.totalorder %s117, 0
      %p327 = por %p325, %p326
      %p328 = scmp.ne.s32.totalorder %s316, %s317
      %p329 = scmp.eq.s32.totalorder %s118, 1
      %p330 = por %p328, %p329
      %p332 = scmp.ne.s32.totalorder %s317, %s331
      %p333 = scmp.eq.s32.totalorder %s118, 0
      %p334 = por %p332, %p333
      %s336 = sadd.s32 %s335, 1
      %p339 = scmp.eq.s32.totalorder %s112, 1
      %p340 = scmp.ne.s32.totalorder %s335, %s337
      %p341 = scmp.eq.s32.totalorder %s112, 0
      %p342 = por %p340, %p341
      %p343 = scmp.ne.s32.totalorder %s335, %s337
      %p344 = scmp.eq.s32.totalorder %s117, 1
      %p345 = por %p343, %p344
      %p346 = scmp.ne.s32.totalorder %s337, %s338
      %p347 = scmp.eq.s32.totalorder %s117, 0
      %p348 = por %p346, %p347
      %p349 = scmp.ne.s32.totalorder %s337, %s338
      %p350 = scmp.eq.s32.totalorder %s118, 1
      %p351 = por %p349, %p350
      %p353 = scmp.ne.s32.totalorder %s338, %s352
      %p354 = scmp.eq.s32.totalorder %s118, 0
      %p355 = por %p353, %p354
      %s357 = sadd.s32 %s356, 1
      %p360 = scmp.eq.s32.totalorder %s112, 1
      %p361 = scmp.ne.s32.totalorder %s356, %s358
      %p362 = scmp.eq.s32.totalorder %s112, 0
      %p363 = por %p361, %p362
      %p364 = scmp.ne.s32.totalorder %s356, %s358
      %p365 = scmp.eq.s32.totalorder %s117, 1
      %p366 = por %p364, %p365
      %p367 = scmp.ne.s32.totalorder %s358, %s359
      %p368 = scmp.eq.s32.totalorder %s117, 0
      %p369 = por %p367, %p368
      %p370 = scmp.ne.s32.totalorder %s358, %s359
      %p371 = scmp.eq.s32.totalorder %s118, 1
      %p372 = por %p370, %p371
      %p374 = scmp.ne.s32.totalorder %s359, %s373
      %p375 = scmp.eq.s32.totalorder %s118, 0
      %p376 = por %p374, %p375
      %s378 = sadd.s32 %s377, 1
      %p381 = scmp.eq.s32.totalorder %s112, 1
      %p382 = scmp.ne.s32.totalorder %s377, %s379
      %p383 = scmp.eq.s32.totalorder %s112, 0
      %p384 = por %p382, %p383
      %p385 = scmp.ne.s32.totalorder %s377, %s379
      %p386 = scmp.eq.s32.totalorder %s117, 1
      %p387 = por %p385, %p386
      %p388 = scmp.ne.s32.totalorder %s379, %s380
      %p389 = scmp.eq.s32.totalorder %s117, 0
      %p390 = por %p388, %p389
      %p391 = scmp.ne.s32.totalorder %s379, %s380
      %p392 = scmp.eq.s32.totalorder %s118, 1
      %p393 = por %p391, %p392
      %p395 = scmp.ne.s32.totalorder %s380, %s394
      %p396 = scmp.eq.s32.totalorder %s118, 0
      %p397 = por %p395, %p396
      %s399 = sadd.s32 %s398, 1
      %p402 = scmp.eq.s32.totalorder %s112, 1
      %p403 = scmp.ne.s32.totalorder %s398, %s400
      %p404 = scmp.eq.s32.totalorder %s112, 0
      %p405 = por %p403, %p404
      %p406 = scmp.ne.s32.totalorder %s398, %s400
      %p407 = scmp.eq.s32.totalorder %s117, 1
      %p408 = por %p406, %p407
      %p409 = scmp.ne.s32.totalorder %s400, %s401
      %p410 = scmp.eq.s32.totalorder %s117, 0
      %p411 = por %p409, %p410
      %p412 = scmp.ne.s32.totalorder %s400, %s401
      %p413 = scmp.eq.s32.totalorder %s118, 1
      %p414 = por %p412, %p413
      %p416 = scmp.ne.s32.totalorder %s401, %s415
      %p417 = scmp.eq.s32.totalorder %s118, 0
      %p418 = por %p416, %p417
      %s420 = sadd.s32 %s419, 1
      %p423 = scmp.eq.s32.totalorder %s112, 1
      %p424 = scmp.ne.s32.totalorder %s419, %s421
      %p425 = scmp.eq.s32.totalorder %s112, 0
      %p426 = por %p424, %p425
      %p427 = scmp.ne.s32.totalorder %s419, %s421
      %p428 = scmp.eq.s32.totalorder %s117, 1
      %p429 = por %p427, %p428
      %p430 = scmp.ne.s32.totalorder %s421, %s422
      %p431 = scmp.eq.s32.totalorder %s117, 0
      %p432 = por %p430, %p431
      %p433 = scmp.ne.s32.totalorder %s421, %s422
      %p434 = scmp.eq.s32.totalorder %s118, 1
      %p435 = por %p433, %p434
      %p437 = scmp.ne.s32.totalorder %s422, %s436
      %p438 = scmp.eq.s32.totalorder %s118, 0
      %p439 = por %p437, %p438
      %s441 = sadd.s32 %s440, 1
      %p444 = scmp.eq.s32.totalorder %s112, 1
      %p445 = scmp.ne.s32.totalorder %s440, %s442
      %p446 = scmp.eq.s32.totalorder %s112, 0
      %p447 = por %p445, %p446
      %p448 = scmp.ne.s32.totalorder %s440, %s442
      %p449 = scmp.eq.s32.totalorder %s117, 1
      %p450 = por %p448, %p449
      %p451 = scmp.ne.s32.totalorder %s442, %s443
      %p452 = scmp.eq.s32.totalorder %s117, 0
      %p453 = por %p451, %p452
      %p454 = scmp.ne.s32.totalorder %s442, %s443
      %p455 = scmp.eq.s32.totalorder %s118, 1
      %p456 = por %p454, %p455
      %p458 = scmp.ne.s32.totalorder %s443, %s457
      %p459 = scmp.eq.s32.totalorder %s118, 0
      %p460 = por %p458, %p459
      %s462 = sadd.s32 %s461, 1
      %p465 = scmp.eq.s32.totalorder %s112, 1
      %p466 = scmp.ne.s32.totalorder %s461, %s463
      %p467 = scmp.eq.s32.totalorder %s112, 0
      %p468 = por %p466, %p467
      %p469 = scmp.ne.s32.totalorder %s461, %s463
      %p470 = scmp.eq.s32.totalorder %s117, 1
      %p471 = por %p469, %p470
      %p472 = scmp.ne.s32.totalorder %s463, %s464
      %p473 = scmp.eq.s32.totalorder %s117, 0
      %p474 = por %p472, %p473
      %p475 = scmp.ne.s32.totalorder %s463, %s464
      %p476 = scmp.eq.s32.totalorder %s118, 1
      %p477 = por %p475, %p476
      %p479 = scmp.ne.s32.totalorder %s464, %s478
      %p480 = scmp.eq.s32.totalorder %s118, 0
      %p481 = por %p479, %p480
      %s483 = sadd.s32 %s482, 1
      %p486 = scmp.eq.s32.totalorder %s112, 1
      %p487 = scmp.ne.s32.totalorder %s482, %s484
      %p488 = scmp.eq.s32.totalorder %s112, 0
      %p489 = por %p487, %p488
      %p490 = scmp.ne.s32.totalorder %s482, %s484
      %p491 = scmp.eq.s32.totalorder %s117, 1
      %p492 = por %p490, %p491
      %p493 = scmp.ne.s32.totalorder %s484, %s485
      %p494 = scmp.eq.s32.totalorder %s117, 0
      %p495 = por %p493, %p494
      %p496 = scmp.ne.s32.totalorder %s484, %s485
      %p497 = scmp.eq.s32.totalorder %s118, 1
      %p498 = por %p496, %p497
      %p500 = scmp.ne.s32.totalorder %s485, %s499
      %p501 = scmp.eq.s32.totalorder %s118, 0
      %p502 = por %p500, %p501
      %s504 = sadd.s32 %s503, 1
      %p507 = scmp.eq.s32.totalorder %s112, 1
      %p508 = scmp.ne.s32.totalorder %s503, %s505
      %p509 = scmp.eq.s32.totalorder %s112, 0
      %p510 = por %p508, %p509
      %p511 = scmp.ne.s32.totalorder %s503, %s505
      %p512 = scmp.eq.s32.totalorder %s117, 1
      %p513 = por %p511, %p512
      %p514 = scmp.ne.s32.totalorder %s505, %s506
      %p515 = scmp.eq.s32.totalorder %s117, 0
      %p516 = por %p514, %p515
      %p517 = scmp.ne.s32.totalorder %s505, %s506
      %p518 = scmp.eq.s32.totalorder %s118, 1
      %p519 = por %p517, %p518
      %p521 = scmp.ne.s32.totalorder %s506, %s520
      %p522 = scmp.eq.s32.totalorder %s118, 0
      %p523 = por %p521, %p522
      %s525 = sadd.s32 %s524, 1
      %p528 = scmp.eq.s32.totalorder %s112, 1
      %p529 = scmp.ne.s32.totalorder %s524, %s526
      %p530 = scmp.eq.s32.totalorder %s112, 0
      %p531 = por %p529, %p530
      %p532 = scmp.ne.s32.totalorder %s524, %s526
      %p533 = scmp.eq.s32.totalorder %s117, 1
      %p534 = por %p532, %p533
      %p535 = scmp.ne.s32.totalorder %s526, %s527
      %p536 = scmp.eq.s32.totalorder %s117, 0
      %p537 = por %p535, %p536
      %p538 = scmp.ne.s32.totalorder %s526, %s527
      %p539 = scmp.eq.s32.totalorder %s118, 1
      %p540 = por %p538, %p539
      %p542 = scmp.ne.s32.totalorder %s527, %s541
      %p543 = scmp.eq.s32.totalorder %s118, 0
      %p544 = por %p542, %p543
      %s546 = sadd.s32 %s545, 1
      %p549 = scmp.eq.s32.totalorder %s112, 1
      %p550 = scmp.ne.s32.totalorder %s545, %s547
      %p551 = scmp.eq.s32.totalorder %s112, 0
      %p552 = por %p550, %p551
      %p553 = scmp.ne.s32.totalorder %s545, %s547
      %p554 = scmp.eq.s32.totalorder %s117, 1
      %p555 = por %p553, %p554
      %p556 = scmp.ne.s32.totalorder %s547, %s548
      %p557 = scmp.eq.s32.totalorder %s117, 0
      %p558 = por %p556, %p557
      %p559 = scmp.ne.s32.totalorder %s547, %s548
      %p560 = scmp.eq.s32.totalorder %s118, 1
      %p561 = por %p559, %p560
      %p563 = scmp.ne.s32.totalorder %s548, %s562
      %p564 = scmp.eq.s32.totalorder %s118, 0
      %p565 = por %p563, %p564
      %s567 = sadd.s32 %s566, 1
      %p570 = scmp.eq.s32.totalorder %s112, 1
      %p571 = scmp.ne.s32.totalorder %s566, %s568
      %p572 = scmp.eq.s32.totalorder %s112, 0
      %p573 = por %p571, %p572
      %p574 = scmp.ne.s32.totalorder %s566, %s568
      %p575 = scmp.eq.s32.totalorder %s117, 1
      %p576 = por %p574, %p575
      %p577 = scmp.ne.s32.totalorder %s568, %s569
      %p578 = scmp.eq.s32.totalorder %s117, 0
      %p579 = por %p577, %p578
      %p580 = scmp.ne.s32.totalorder %s568, %s569
      %p581 = scmp.eq.s32.totalorder %s118, 1
      %p582 = por %p580, %p581
      %p584 = scmp.ne.s32.totalorder %s569, %s583
      %p585 = scmp.eq.s32.totalorder %s118, 0
      %p586 = por %p584, %p585
      %s588 = sadd.s32 %s587, 1
      %p591 = scmp.eq.s32.totalorder %s112, 1
      %p592 = scmp.ne.s32.totalorder %s587, %s589
      %p593 = scmp.eq.s32.totalorder %s112, 0
      %p594 = por %p592, %p593
      %p595 = scmp.ne.s32.totalorder %s587, %s589
      %p596 = scmp.eq.s32.totalorder %s117, 1
      %p597 = por %p595, %p596
      %p598 = scmp.ne.s32.totalorder %s589, %s590
      %p599 = scmp.eq.s32.totalorder %s117, 0
      %p600 = por %p598, %p599
      %p601 = scmp.ne.s32.totalorder %s589, %s590
      %p602 = scmp.eq.s32.totalorder %s118, 1
      %p603 = por %p601, %p602
      %p605 = scmp.ne.s32.totalorder %s590, %s604
      %p606 = scmp.eq.s32.totalorder %s118, 0
      %p607 = por %p605, %p606
      %s609 = sadd.s32 %s608, 1
      %p612 = scmp.eq.s32.totalorder %s112, 1
      %p613 = scmp.ne.s32.totalorder %s608, %s610
      %p614 = scmp.eq.s32.totalorder %s112, 0
      %p615 = por %p613, %p614
      %p616 = scmp.ne.s32.totalorder %s608, %s610
      %p617 = scmp.eq.s32.totalorder %s117, 1
      %p618 = por %p616, %p617
      %p619 = scmp.ne.s32.totalorder %s610, %s611
      %p620 = scmp.eq.s32.totalorder %s117, 0
      %p621 = por %p619, %p620
      %p622 = scmp.ne.s32.totalorder %s610, %s611
      %p623 = scmp.eq.s32.totalorder %s118, 1
      %p624 = por %p622, %p623
      %p626 = scmp.ne.s32.totalorder %s611, %s625
      %p627 = scmp.eq.s32.totalorder %s118, 0
      %p628 = por %p626, %p627
      %s630 = sadd.s32 %s629, 1
      %p633 = scmp.eq.s32.totalorder %s112, 1
      %p634 = scmp.ne.s32.totalorder %s629, %s631
      %p635 = scmp.eq.s32.totalorder %s112, 0
      %p636 = por %p634, %p635
      %p637 = scmp.ne.s32.totalorder %s629, %s631
      %p638 = scmp.eq.s32.totalorder %s117, 1
      %p639 = por %p637, %p638
      %p640 = scmp.ne.s32.totalorder %s631, %s632
      %p641 = scmp.eq.s32.totalorder %s117, 0
      %p642 = por %p640, %p641
      %p643 = scmp.ne.s32.totalorder %s631, %s632
      %p644 = scmp.eq.s32.totalorder %s118, 1
      %p645 = por %p643, %p644
      %p647 = scmp.ne.s32.totalorder %s632, %s646
      %p648 = scmp.eq.s32.totalorder %s118, 0
      %p649 = por %p647, %p648
      %s651 = sadd.s32 %s650, 1
      %p654 = scmp.eq.s32.totalorder %s112, 1
      %p655 = scmp.ne.s32.totalorder %s650, %s652
      %p656 = scmp.eq.s32.totalorder %s112, 0
      %p657 = por %p655, %p656
      %p658 = scmp.ne.s32.totalorder %s650, %s652
      %p659 = scmp.eq.s32.totalorder %s117, 1
      %p660 = por %p658, %p659
      %p661 = scmp.ne.s32.totalorder %s652, %s653
      %p662 = scmp.eq.s32.totalorder %s117, 0
      %p663 = por %p661, %p662
      %p664 = scmp.ne.s32.totalorder %s652, %s653
      %p665 = scmp.eq.s32.totalorder %s118, 1
      %p666 = por %p664, %p665
      %p668 = scmp.ne.s32.totalorder %s653, %s667
      %p669 = scmp.eq.s32.totalorder %s118, 0
      %p670 = por %p668, %p669
      %s672 = sadd.s32 %s671, 1
      %p675 = scmp.eq.s32.totalorder %s112, 1
      %p676 = scmp.ne.s32.totalorder %s671, %s673
      %p677 = scmp.eq.s32.totalorder %s112, 0
      %p678 = por %p676, %p677
      %p679 = scmp.ne.s32.totalorder %s671, %s673
      %p680 = scmp.eq.s32.totalorder %s117, 1
      %p681 = por %p679, %p680
      %p682 = scmp.ne.s32.totalorder %s673, %s674
      %p683 = scmp.eq.s32.totalorder %s117, 0
      %p684 = por %p682, %p683
      %p685 = scmp.ne.s32.totalorder %s673, %s674
      %p686 = scmp.eq.s32.totalorder %s118, 1
      %p687 = por %p685, %p686
      %p689 = scmp.ne.s32.totalorder %s674, %s688
      %p690 = scmp.eq.s32.totalorder %s118, 0
      %p691 = por %p689, %p690
      %s693 = sadd.s32 %s692, 1
      %p696 = scmp.eq.s32.totalorder %s112, 1
      %p697 = scmp.ne.s32.totalorder %s692, %s694
      %p698 = scmp.eq.s32.totalorder %s112, 0
      %p699 = por %p697, %p698
      %p700 = scmp.ne.s32.totalorder %s692, %s694
      %p701 = scmp.eq.s32.totalorder %s117, 1
      %p702 = por %p700, %p701
      %p703 = scmp.ne.s32.totalorder %s694, %s695
      %p704 = scmp.eq.s32.totalorder %s117, 0
      %p705 = por %p703, %p704
      %p706 = scmp.ne.s32.totalorder %s694, %s695
      %p707 = scmp.eq.s32.totalorder %s118, 1
      %p708 = por %p706, %p707
      %p710 = scmp.ne.s32.totalorder %s695, %s709
      %p711 = scmp.eq.s32.totalorder %s118, 0
      %p712 = por %p710, %p711
      %s714 = sadd.s32 %s713, 1
      %p717 = scmp.eq.s32.totalorder %s112, 1
      %p718 = scmp.ne.s32.totalorder %s713, %s715
      %p719 = scmp.eq.s32.totalorder %s112, 0
      %p720 = por %p718, %p719
      %p721 = scmp.ne.s32.totalorder %s713, %s715
      %p722 = scmp.eq.s32.totalorder %s117, 1
      %p723 = por %p721, %p722
      %p724 = scmp.ne.s32.totalorder %s715, %s716
      %p725 = scmp.eq.s32.totalorder %s117, 0
      %p726 = por %p724, %p725
      %p727 = scmp.ne.s32.totalorder %s715, %s716
      %p728 = scmp.eq.s32.totalorder %s118, 1
      %p729 = por %p727, %p728
      %p731 = scmp.ne.s32.totalorder %s716, %s730
      %p732 = scmp.eq.s32.totalorder %s118, 0
      %p733 = por %p731, %p732
      %s735 = sadd.s32 %s734, 1
      %p738 = scmp.eq.s32.totalorder %s112, 1
      %p739 = scmp.ne.s32.totalorder %s734, %s736
      %p740 = scmp.eq.s32.totalorder %s112, 0
      %p741 = por %p739, %p740
      %p742 = scmp.ne.s32.totalorder %s734, %s736
      %p743 = scmp.eq.s32.totalorder %s117, 1
      %p744 = por %p742, %p743
      %p745 = scmp.ne.s32.totalorder %s736, %s737
      %p746 = scmp.eq.s32.totalorder %s117, 0
      %p747 = por %p745, %p746
      %p748 = scmp.ne.s32.totalorder %s736, %s737
      %p749 = scmp.eq.s32.totalorder %s118, 1
      %p750 = por %p748, %p749
      %p752 = scmp.ne.s32.totalorder %s737, %s751
      %p753 = scmp.eq.s32.totalorder %s118, 0
      %p754 = por %p752, %p753
      %s756 = sadd.s32 %s755, 1
      %p759 = scmp.eq.s32.totalorder %s112, 1
      %p760 = scmp.ne.s32.totalorder %s755, %s757
      %p761 = scmp.eq.s32.totalorder %s112, 0
      %p762 = por %p760, %p761
      %p763 = scmp.ne.s32.totalorder %s755, %s757
      %p764 = scmp.eq.s32.totalorder %s117, 1
      %p765 = por %p763, %p764
      %p766 = scmp.ne.s32.totalorder %s757, %s758
      %p767 = scmp.eq.s32.totalorder %s117, 0
      %p768 = por %p766, %p767
      %p769 = scmp.ne.s32.totalorder %s757, %s758
      %p770 = scmp.eq.s32.totalorder %s118, 1
      %p771 = por %p769, %p770
      %p773 = scmp.ne.s32.totalorder %s758, %s772
      %p774 = scmp.eq.s32.totalorder %s118, 0
      %p775 = por %p773, %p774
      %s777 = sadd.s32 %s776, 1
      %p780 = scmp.eq.s32.totalorder %s112, 1
      %p781 = scmp.ne.s32.totalorder %s776, %s778
      %p782 = scmp.eq.s32.totalorder %s112, 0
      %p783 = por %p781, %p782
      %p784 = scmp.ne.s32.totalorder %s776, %s778
      %p785 = scmp.eq.s32.totalorder %s117, 1
      %p786 = por %p784, %p785
      %p787 = scmp.ne.s32.totalorder %s778, %s779
      %p788 = scmp.eq.s32.totalorder %s117, 0
      %p789 = por %p787, %p788
      %p790 = scmp.ne.s32.totalorder %s778, %s779
      %p791 = scmp.eq.s32.totalorder %s118, 1
      %p792 = por %p790, %p791
      %p794 = scmp.ne.s32.totalorder %s779, %s793
      %p795 = scmp.eq.s32.totalorder %s118, 0
      %p796 = por %p794, %p795
      %s798 = sadd.s32 %s797, 1
      %p801 = scmp.eq.s32.totalorder %s112, 1
      %p802 = scmp.ne.s32.totalorder %s797, %s799
      %p803 = scmp.eq.s32.totalorder %s112, 0
      %p804 = por %p802, %p803
      %p805 = scmp.ne.s32.totalorder %s797, %s799
      %p806 = scmp.eq.s32.totalorder %s117, 1
      %p807 = por %p805, %p806
      %p808 = scmp.ne.s32.totalorder %s799, %s800
      %p809 = scmp.eq.s32.totalorder %s117, 0
      %p810 = por %p808, %p809
      %p811 = scmp.ne.s32.totalorder %s799, %s800
      %p812 = scmp.eq.s32.totalorder %s118, 1
      %p813 = por %p811, %p812
      %p815 = scmp.ne.s32.totalorder %s800, %s814
      %p816 = scmp.eq.s32.totalorder %s118, 0
      %p817 = por %p815, %p816
      %s819 = sadd.s32 %s818, 1
      %p822 = scmp.eq.s32.totalorder %s112, 1
      %p823 = scmp.ne.s32.totalorder %s818, %s820
      %p824 = scmp.eq.s32.totalorder %s112, 0
      %p825 = por %p823, %p824
      %p826 = scmp.ne.s32.totalorder %s818, %s820
      %p827 = scmp.eq.s32.totalorder %s117, 1
      %p828 = por %p826, %p827
      %p829 = scmp.ne.s32.totalorder %s820, %s821
      %p830 = scmp.eq.s32.totalorder %s117, 0
      %p831 = por %p829, %p830
      %p832 = scmp.ne.s32.totalorder %s820, %s821
      %p833 = scmp.eq.s32.totalorder %s118, 1
      %p834 = por %p832, %p833
      %p836 = scmp.ne.s32.totalorder %s821, %s835
      %p837 = scmp.eq.s32.totalorder %s118, 0
      %p838 = por %p836, %p837
      %s840 = sadd.s32 %s839, 1
      %p843 = scmp.eq.s32.totalorder %s112, 1
      %p844 = scmp.ne.s32.totalorder %s839, %s841
      %p845 = scmp.eq.s32.totalorder %s112, 0
      %p846 = por %p844, %p845
      %p847 = scmp.ne.s32.totalorder %s839, %s841
      %p848 = scmp.eq.s32.totalorder %s117, 1
      %p849 = por %p847, %p848
      %p850 = scmp.ne.s32.totalorder %s841, %s842
      %p851 = scmp.eq.s32.totalorder %s117, 0
      %p852 = por %p850, %p851
      %p853 = scmp.ne.s32.totalorder %s841, %s842
      %p854 = scmp.eq.s32.totalorder %s118, 1
      %p855 = por %p853, %p854
      %p857 = scmp.ne.s32.totalorder %s842, %s856
      %p858 = scmp.eq.s32.totalorder %s118, 0
      %p859 = por %p857, %p858
      %s861 = sadd.s32 %s860, 1
      %p864 = scmp.eq.s32.totalorder %s112, 1
      %p865 = scmp.ne.s32.totalorder %s860, %s862
      %p866 = scmp.eq.s32.totalorder %s112, 0
      %p867 = por %p865, %p866
      %p868 = scmp.ne.s32.totalorder %s860, %s862
      %p869 = scmp.eq.s32.totalorder %s117, 1
      %p870 = por %p868, %p869
      %p871 = scmp.ne.s32.totalorder %s862, %s863
      %p872 = scmp.eq.s32.totalorder %s117, 0
      %p873 = por %p871, %p872
      %p874 = scmp.ne.s32.totalorder %s862, %s863
      %p875 = scmp.eq.s32.totalorder %s118, 1
      %p876 = por %p874, %p875
      %p878 = scmp.ne.s32.totalorder %s863, %s877
      %p879 = scmp.eq.s32.totalorder %s118, 0
      %p880 = por %p878, %p879
      %s882 = sadd.s32 %s881, 1
      %p885 = scmp.eq.s32.totalorder %s112, 1
      %p886 = scmp.ne.s32.totalorder %s881, %s883
      %p887 = scmp.eq.s32.totalorder %s112, 0
      %p888 = por %p886, %p887
      %p889 = scmp.ne.s32.totalorder %s881, %s883
      %p890 = scmp.eq.s32.totalorder %s117, 1
      %p891 = por %p889, %p890
      %p892 = scmp.ne.s32.totalorder %s883, %s884
      %p893 = scmp.eq.s32.totalorder %s117, 0
      %p894 = por %p892, %p893
      %p895 = scmp.ne.s32.totalorder %s883, %s884
      %p896 = scmp.eq.s32.totalorder %s118, 1
      %p897 = por %p895, %p896
      %p899 = scmp.ne.s32.totalorder %s884, %s898
      %p900 = scmp.eq.s32.totalorder %s118, 0
      %p901 = por %p899, %p900
      %s903 = sadd.s32 %s902, 1
      %p906 = scmp.eq.s32.totalorder %s112, 1
      %p907 = scmp.ne.s32.totalorder %s902, %s904
      %p908 = scmp.eq.s32.totalorder %s112, 0
      %p909 = por %p907, %p908
      %p910 = scmp.ne.s32.totalorder %s902, %s904
      %p911 = scmp.eq.s32.totalorder %s117, 1
      %p912 = por %p910, %p911
      %p913 = scmp.ne.s32.totalorder %s904, %s905
      %p914 = scmp.eq.s32.totalorder %s117, 0
      %p915 = por %p913, %p914
      %p916 = scmp.ne.s32.totalorder %s904, %s905
      %p917 = scmp.eq.s32.totalorder %s118, 1
      %p918 = por %p916, %p917
      %p920 = scmp.ne.s32.totalorder %s905, %s919
      %p921 = scmp.eq.s32.totalorder %s118, 0
      %p922 = por %p920, %p921
      %s924 = sadd.s32 %s923, 1
      %p927 = scmp.eq.s32.totalorder %s112, 1
      %p928 = scmp.ne.s32.totalorder %s923, %s925
      %p929 = scmp.eq.s32.totalorder %s112, 0
      %p930 = por %p928, %p929
      %p931 = scmp.ne.s32.totalorder %s923, %s925
      %p932 = scmp.eq.s32.totalorder %s117, 1
      %p933 = por %p931, %p932
      %p934 = scmp.ne.s32.totalorder %s925, %s926
      %p935 = scmp.eq.s32.totalorder %s117, 0
      %p936 = por %p934, %p935
      %p937 = scmp.ne.s32.totalorder %s925, %s926
      %p938 = scmp.eq.s32.totalorder %s118, 1
      %p939 = por %p937, %p938
      %p941 = scmp.ne.s32.totalorder %s926, %s940
      %p942 = scmp.eq.s32.totalorder %s118, 0
      %p943 = por %p941, %p942
      %s944 = ssub.s32 %s112, %s119
      %p945 = scmp.eq.s32.totalorder %s944, 0
      %s947 = sadd.s32 %s946, 1
      %s948 = scalar_select %p945, %s946, %s947
      %p951 = pneg %p945
      %p952 = scmp.eq.s32.totalorder %s112, 1
      %p953 = por %p951, %p952
      %p954 = scmp.ne.s32.totalorder %s946, %s949
      %p955 = scmp.eq.s32.totalorder %s112, 0
      %p956 = por %p954, %p955
      %p957 = scmp.ne.s32.totalorder %s946, %s949
      %p958 = scmp.eq.s32.totalorder %s117, 1
      %p959 = por %p957, %p958
      %p960 = scmp.ne.s32.totalorder %s949, %s950
      %p961 = scmp.eq.s32.totalorder %s117, 0
      %p962 = por %p960, %p961
      %p963 = scmp.ne.s32.totalorder %s949, %s950
      %p964 = scmp.eq.s32.totalorder %s118, 1
      %p965 = por %p963, %p964
      %p967 = scmp.ne.s32.totalorder %s950, %s966
      %p968 = scmp.eq.s32.totalorder %s118, 0
      %p969 = por %p967, %p968
      %s970 = ssub.s32 %s112, %s119
      %p971 = scmp.eq.s32.totalorder %s970, 0
      %s973 = sadd.s32 %s972, 1
      %s974 = scalar_select %p971, %s972, %s973
      %p977 = pneg %p971
      %p978 = scmp.eq.s32.totalorder %s112, 1
      %p979 = por %p977, %p978
      %p980 = scmp.ne.s32.totalorder %s972, %s975
      %p981 = scmp.eq.s32.totalorder %s112, 0
      %p982 = por %p980, %p981
      %p983 = scmp.ne.s32.totalorder %s972, %s975
      %p984 = scmp.eq.s32.totalorder %s117, 1
      %p985 = por %p983, %p984
      %p986 = scmp.ne.s32.totalorder %s975, %s976
      %p987 = scmp.eq.s32.totalorder %s117, 0
      %p988 = por %p986, %p987
      %p989 = scmp.ne.s32.totalorder %s975, %s976
      %p990 = scmp.eq.s32.totalorder %s118, 1
      %p991 = por %p989, %p990
      %p993 = scmp.ne.s32.totalorder %s976, %s992
      %p994 = scmp.eq.s32.totalorder %s118, 0
      %p995 = por %p993, %p994
      %p996 = scmp.le.s32.totalorder 1, %s112
      %p997 = scmp.lt.s32.totalorder %s112, 3
      %p998 = pnand %p996, %p997
      %p999 = pneg %p998
      // Predicated region
      $region9: #{tpu_custom_call.1} parent=5 // pred_check
        _
      $region10: #{tpu_custom_call.1} parent=5 // pred_check_branch
        %1001 = sbr.rel (%p998) target = $region12
      $region11: #{tpu_custom_call.1} parent=5 // pred_region
        %s1002 = ssub.s32 %s112, 1
        // Predicated region
        $region13: #{tpu_custom_call.1} parent=11 // pred_check
          %p1003 = pneg %p159
        $region14: #{tpu_custom_call.1} parent=11 // pred_check_branch
          %1005 = sbr.rel (%p1003) target = $region16
        $region15: #{tpu_custom_call.1} parent=11 // pred_region
          %s1007 = ssub.s32 512, 512
          %1008 = vsyncadd [#allocation6], %s1007
          %s1009 = sshll.u32 [#allocation5], 4
          %s1010 = int_to_ptr.vmem [resolvable:$true] %s1009
          %1015 = dma.hbm_to_vmem [thread:$0]  %s3, 512, %s1010, [#allocation6], 64, 64, 4
        $region16: #{tpu_custom_call.1} parent=11 // pred_fallthru
          _
        // Predicated region
        $region17: #{tpu_custom_call.1} parent=11 // pred_check
          %p1016 = pneg %p180
        $region18: #{tpu_custom_call.1} parent=11 // pred_check_branch
          %1018 = sbr.rel (%p1016) target = $region20
        $region19: #{tpu_custom_call.1} parent=11 // pred_region
          %s1020 = ssub.s32 16, 16
          %1021 = vsyncadd [#allocation6], %s1020
          %s1023 = sshll.u32 [#allocation7], 4
          %s1024 = int_to_ptr.vmem [resolvable:$true] %s1023
          %1026 = dma.hbm_to_vmem [thread:$0]  %s5, 16, %s1024, [#allocation6]
        $region20: #{tpu_custom_call.1} parent=11 // pred_fallthru
          _
        // Predicated region
        $region21: #{tpu_custom_call.1} parent=11 // pred_check
          %p1027 = pneg %p201
        $region22: #{tpu_custom_call.1} parent=11 // pred_check_branch
          %1029 = sbr.rel (%p1027) target = $region24
        $region23: #{tpu_custom_call.1} parent=11 // pred_region
          %s1031 = ssub.s32 128, 128
          %1032 = vsyncadd [#allocation9], %s1031
          %s1033 = sshll.u32 [#allocation8], 4
          %s1034 = int_to_ptr.vmem [resolvable:$true] %s1033
          %1039 = dma.hbm_to_vmem [thread:$0]  %s7, 128, %s1034, [#allocation9], 64, 64, 4
        $region24: #{tpu_custom_call.1} parent=11 // pred_fallthru
          _
        // Predicated region
        $region25: #{tpu_custom_call.1} parent=11 // pred_check
          %p1040 = pneg %p222
        $region26: #{tpu_custom_call.1} parent=11 // pred_check_branch
          %1042 = sbr.rel (%p1040) target = $region28
        $region27: #{tpu_custom_call.1} parent=11 // pred_region
          %s1044 = ssub.s32 128, 128
          %1045 = vsyncadd [#allocation9], %s1044
          %s1046 = sshll.u32 [#allocation10], 4
          %s1047 = int_to_ptr.vmem [resolvable:$true] %s1046
          %1052 = dma.hbm_to_vmem [thread:$0]  %s9, 128, %s1047, [#allocation9], 64, 64, 4
        $region28: #{tpu_custom_call.1} parent=11 // pred_fallthru
          _
        // Predicated region
        $region29: #{tpu_custom_call.1} parent=11 // pred_check
          %p1053 = pneg %p243
        $region30: #{tpu_custom_call.1} parent=11 // pred_check_branch
          %1055 = sbr.rel (%p1053) target = $region32
        $region31: #{tpu_custom_call.1} parent=11 // pred_region
          _
        $region32: #{tpu_custom_call.1} parent=11 // pred_fallthru
          _
        // Predicated region
        $region33: #{tpu_custom_call.1} parent=11 // pred_check
          %p1056 = pneg %p264
        $region34: #{tpu_custom_call.1} parent=11 // pred_check_branch
          %1058 = sbr.rel (%p1056) target = $region36
        $region35: #{tpu_custom_call.1} parent=11 // pred_region
          _
        $region36: #{tpu_custom_call.1} parent=11 // pred_fallthru
          _
        // Predicated region
        $region37: #{tpu_custom_call.1} parent=11 // pred_check
          %p1059 = pneg %p285
        $region38: #{tpu_custom_call.1} parent=11 // pred_check_branch
          %1061 = sbr.rel (%p1059) target = $region40
        $region39: #{tpu_custom_call.1} parent=11 // pred_region
          _
        $region40: #{tpu_custom_call.1} parent=11 // pred_fallthru
          _
        // Predicated region
        $region41: #{tpu_custom_call.1} parent=11 // pred_check
          %p1062 = pneg %p306
        $region42: #{tpu_custom_call.1} parent=11 // pred_check_branch
          %1064 = sbr.rel (%p1062) target = $region44
        $region43: #{tpu_custom_call.1} parent=11 // pred_region
          %s1066 = ssub.s32 16, 16
          %1067 = vsyncadd [#allocation12], %s1066
          %s1069 = sshll.u32 [#allocation11], 4
          %s1070 = int_to_ptr.vmem [resolvable:$true] %s1069
          %1072 = dma.hbm_to_vmem [thread:$0]  %s17, 16, %s1070, [#allocation12]
        $region44: #{tpu_custom_call.1} parent=11 // pred_fallthru
          _
        // Predicated region
        $region45: #{tpu_custom_call.1} parent=11 // pred_check
          %p1073 = pneg %p327
        $region46: #{tpu_custom_call.1} parent=11 // pred_check_branch
          %1075 = sbr.rel (%p1073) target = $region48
        $region47: #{tpu_custom_call.1} parent=11 // pred_region
          %s1077 = ssub.s32 1024, 1024
          %1078 = vsyncadd [#allocation12], %s1077
          %s1079 = sshll.u32 [#allocation13], 4
          %s1080 = int_to_ptr.vmem [resolvable:$true] %s1079
          %1085 = dma.hbm_to_vmem [thread:$0]  %s19, 1024, %s1080, [#allocation12], 64, 64, 4
        $region48: #{tpu_custom_call.1} parent=11 // pred_fallthru
          _
        // Predicated region
        $region49: #{tpu_custom_call.1} parent=11 // pred_check
          %p1086 = pneg %p348
        $region50: #{tpu_custom_call.1} parent=11 // pred_check_branch
          %1088 = sbr.rel (%p1086) target = $region52
        $region51: #{tpu_custom_call.1} parent=11 // pred_region
          %s1090 = ssub.s32 1024, 1024
          %1091 = vsyncadd [#allocation15], %s1090
          %s1092 = sshll.u32 [#allocation14], 4
          %s1093 = int_to_ptr.vmem [resolvable:$true] %s1092
          %1098 = dma.hbm_to_vmem [thread:$0]  %s21, 1024, %s1093, [#allocation15], 64, 64, 4
        $region52: #{tpu_custom_call.1} parent=11 // pred_fallthru
          _
        // Predicated region
        $region53: #{tpu_custom_call.1} parent=11 // pred_check
          %p1099 = pneg %p369
        $region54: #{tpu_custom_call.1} parent=11 // pred_check_branch
          %1101 = sbr.rel (%p1099) target = $region56
        $region55: #{tpu_custom_call.1} parent=11 // pred_region
          %s1103 = ssub.s32 1024, 1024
          %1104 = vsyncadd [#allocation15], %s1103
          %s1105 = sshll.u32 [#allocation16], 4
          %s1106 = int_to_ptr.vmem [resolvable:$true] %s1105
          %1111 = dma.hbm_to_vmem [thread:$0]  %s23, 1024, %s1106, [#allocation15], 64, 64, 4
        $region56: #{tpu_custom_call.1} parent=11 // pred_fallthru
          _
        // Predicated region
        $region57: #{tpu_custom_call.1} parent=11 // pred_check
          %p1112 = pneg %p390
        $region58: #{tpu_custom_call.1} parent=11 // pred_check_branch
          %1114 = sbr.rel (%p1112) target = $region60
        $region59: #{tpu_custom_call.1} parent=11 // pred_region
          %s1116 = ssub.s32 16, 16
          %1117 = vsyncadd [#allocation18], %s1116
          %s1119 = sshll.u32 [#allocation17], 4
          %s1120 = int_to_ptr.vmem [resolvable:$true] %s1119
          %1122 = dma.hbm_to_vmem [thread:$0]  %s25, 16, %s1120, [#allocation18]
        $region60: #{tpu_custom_call.1} parent=11 // pred_fallthru
          _
        // Predicated region
        $region61: #{tpu_custom_call.1} parent=11 // pred_check
          %p1123 = pneg %p411
        $region62: #{tpu_custom_call.1} parent=11 // pred_check_branch
          %1125 = sbr.rel (%p1123) target = $region64
        $region63: #{tpu_custom_call.1} parent=11 // pred_region
          %s1127 = ssub.s32 128, 128
          %1128 = vsyncadd [#allocation18], %s1127
          %s1129 = sshll.u32 [#allocation19], 4
          %s1130 = int_to_ptr.vmem [resolvable:$true] %s1129
          %1135 = dma.hbm_to_vmem [thread:$0]  %s27, 128, %s1130, [#allocation18], 64, 64, 4
        $region64: #{tpu_custom_call.1} parent=11 // pred_fallthru
          _
        // Predicated region
        $region65: #{tpu_custom_call.1} parent=11 // pred_check
          %p1136 = pneg %p432
        $region66: #{tpu_custom_call.1} parent=11 // pred_check_branch
          %1138 = sbr.rel (%p1136) target = $region68
        $region67: #{tpu_custom_call.1} parent=11 // pred_region
          %s1140 = ssub.s32 128, 128
          %1141 = vsyncadd [#allocation21], %s1140
          %s1142 = sshll.u32 [#allocation20], 4
          %s1143 = int_to_ptr.vmem [resolvable:$true] %s1142
          %1148 = dma.hbm_to_vmem [thread:$0]  %s29, 128, %s1143, [#allocation21], 64, 64, 4
        $region68: #{tpu_custom_call.1} parent=11 // pred_fallthru
          _
        // Predicated region
        $region69: #{tpu_custom_call.1} parent=11 // pred_check
          %p1149 = pneg %p453
        $region70: #{tpu_custom_call.1} parent=11 // pred_check_branch
          %1151 = sbr.rel (%p1149) target = $region72
        $region71: #{tpu_custom_call.1} parent=11 // pred_region
          %s1153 = ssub.s32 1024, 1024
          %1154 = vsyncadd [#allocation21], %s1153
          %s1155 = sshll.u32 [#allocation22], 4
          %s1156 = int_to_ptr.vmem [resolvable:$true] %s1155
          %1161 = dma.hbm_to_vmem [thread:$0]  %s31, 1024, %s1156, [#allocation21], 64, 64, 4
        $region72: #{tpu_custom_call.1} parent=11 // pred_fallthru
          _
        // Predicated region
        $region73: #{tpu_custom_call.1} parent=11 // pred_check
          %p1162 = pneg %p474
        $region74: #{tpu_custom_call.1} parent=11 // pred_check_branch
          %1164 = sbr.rel (%p1162) target = $region76
        $region75: #{tpu_custom_call.1} parent=11 // pred_region
          %s1166 = ssub.s32 1024, 1024
          %1167 = vsyncadd [#allocation24], %s1166
          %s1168 = sshll.u32 [#allocation23], 4
          %s1169 = int_to_ptr.vmem [resolvable:$true] %s1168
          %1174 = dma.hbm_to_vmem [thread:$0]  %s33, 1024, %s1169, [#allocation24], 64, 64, 4
        $region76: #{tpu_custom_call.1} parent=11 // pred_fallthru
          _
        // Predicated region
        $region77: #{tpu_custom_call.1} parent=11 // pred_check
          %p1175 = pneg %p495
        $region78: #{tpu_custom_call.1} parent=11 // pred_check_branch
          %1177 = sbr.rel (%p1175) target = $region80
        $region79: #{tpu_custom_call.1} parent=11 // pred_region
          _
        $region80: #{tpu_custom_call.1} parent=11 // pred_fallthru
          _
        // Predicated region
        $region81: #{tpu_custom_call.1} parent=11 // pred_check
          %p1178 = pneg %p516
        $region82: #{tpu_custom_call.1} parent=11 // pred_check_branch
          %1180 = sbr.rel (%p1178) target = $region84
        $region83: #{tpu_custom_call.1} parent=11 // pred_region
          %s1182 = ssub.s32 16, 16
          %1183 = vsyncadd [#allocation24], %s1182
          %s1185 = sshll.u32 [#allocation25], 4
          %s1186 = int_to_ptr.vmem [resolvable:$true] %s1185
          %1188 = dma.hbm_to_vmem [thread:$0]  %s37, 16, %s1186, [#allocation24]
        $region84: #{tpu_custom_call.1} parent=11 // pred_fallthru
          _
        // Predicated region
        $region85: #{tpu_custom_call.1} parent=11 // pred_check
          %p1189 = pneg %p537
        $region86: #{tpu_custom_call.1} parent=11 // pred_check_branch
          %1191 = sbr.rel (%p1189) target = $region88
        $region87: #{tpu_custom_call.1} parent=11 // pred_region
          %s1193 = ssub.s32 1024, 1024
          %1194 = vsyncadd [#allocation27], %s1193
          %s1195 = sshll.u32 [#allocation26], 4
          %s1196 = int_to_ptr.vmem [resolvable:$true] %s1195
          %1201 = dma.hbm_to_vmem [thread:$0]  %s39, 1024, %s1196, [#allocation27], 64, 64, 4
        $region88: #{tpu_custom_call.1} parent=11 // pred_fallthru
          _
        // Predicated region
        $region89: #{tpu_custom_call.1} parent=11 // pred_check
          %p1202 = pneg %p558
        $region90: #{tpu_custom_call.1} parent=11 // pred_check_branch
          %1204 = sbr.rel (%p1202) target = $region92
        $region91: #{tpu_custom_call.1} parent=11 // pred_region
          %s1206 = ssub.s32 1024, 1024
          %1207 = vsyncadd [#allocation27], %s1206
          %s1208 = sshll.u32 [#allocation28], 4
          %s1209 = int_to_ptr.vmem [resolvable:$true] %s1208
          %1214 = dma.hbm_to_vmem [thread:$0]  %s41, 1024, %s1209, [#allocation27], 64, 64, 4
        $region92: #{tpu_custom_call.1} parent=11 // pred_fallthru
          _
        // Predicated region
        $region93: #{tpu_custom_call.1} parent=11 // pred_check
          %p1215 = pneg %p579
        $region94: #{tpu_custom_call.1} parent=11 // pred_check_branch
          %1217 = sbr.rel (%p1215) target = $region96
        $region95: #{tpu_custom_call.1} parent=11 // pred_region
          %s1219 = ssub.s32 1024, 1024
          %1220 = vsyncadd [#allocation30], %s1219
          %s1221 = sshll.u32 [#allocation29], 4
          %s1222 = int_to_ptr.vmem [resolvable:$true] %s1221
          %1227 = dma.hbm_to_vmem [thread:$0]  %s43, 1024, %s1222, [#allocation30], 64, 64, 4
        $region96: #{tpu_custom_call.1} parent=11 // pred_fallthru
          _
        // Predicated region
        $region97: #{tpu_custom_call.1} parent=11 // pred_check
          %p1228 = pneg %p600
        $region98: #{tpu_custom_call.1} parent=11 // pred_check_branch
          %1230 = sbr.rel (%p1228) target = $region100
        $region99: #{tpu_custom_call.1} parent=11 // pred_region
          %s1232 = ssub.s32 16, 16
          %1233 = vsyncadd [#allocation30], %s1232
          %s1235 = sshll.u32 [#allocation31], 4
          %s1236 = int_to_ptr.vmem [resolvable:$true] %s1235
          %1238 = dma.hbm_to_vmem [thread:$0]  %s45, 16, %s1236, [#allocation30]
        $region100: #{tpu_custom_call.1} parent=11 // pred_fallthru
          _
        // Predicated region
        $region101: #{tpu_custom_call.1} parent=11 // pred_check
          %p1239 = pneg %p621
        $region102: #{tpu_custom_call.1} parent=11 // pred_check_branch
          %1241 = sbr.rel (%p1239) target = $region104
        $region103: #{tpu_custom_call.1} parent=11 // pred_region
          %s1243 = ssub.s32 128, 128
          %1244 = vsyncadd [#allocation33], %s1243
          %s1246 = sshll.u32 [#allocation32], 4
          %s1247 = int_to_ptr.vmem [resolvable:$true] %s1246
          %1249 = dma.hbm_to_vmem [thread:$0]  %s47, 128, %s1247, [#allocation33]
        $region104: #{tpu_custom_call.1} parent=11 // pred_fallthru
          _
        // Predicated region
        $region105: #{tpu_custom_call.1} parent=11 // pred_check
          %p1250 = pneg %p642
        $region106: #{tpu_custom_call.1} parent=11 // pred_check_branch
          %1252 = sbr.rel (%p1250) target = $region108
        $region107: #{tpu_custom_call.1} parent=11 // pred_region
          _
        $region108: #{tpu_custom_call.1} parent=11 // pred_fallthru
          _
        // Predicated region
        $region109: #{tpu_custom_call.1} parent=11 // pred_check
          %p1253 = pneg %p663
        $region110: #{tpu_custom_call.1} parent=11 // pred_check_branch
          %1255 = sbr.rel (%p1253) target = $region112
        $region111: #{tpu_custom_call.1} parent=11 // pred_region
          %s1257 = ssub.s32 64, 64
          %1258 = vsyncadd [#allocation33], %s1257
          %s1260 = sshll.u32 [#allocation34], 4
          %s1261 = int_to_ptr.vmem [resolvable:$true] %s1260
          %1263 = dma.hbm_to_vmem [thread:$0]  %s51, 64, %s1261, [#allocation33]
        $region112: #{tpu_custom_call.1} parent=11 // pred_fallthru
          _
        // Predicated region
        $region113: #{tpu_custom_call.1} parent=11 // pred_check
          %p1264 = pneg %p684
        $region114: #{tpu_custom_call.1} parent=11 // pred_check_branch
          %1266 = sbr.rel (%p1264) target = $region116
        $region115: #{tpu_custom_call.1} parent=11 // pred_region
          %s1268 = ssub.s32 64, 64
          %1269 = vsyncadd [#allocation36], %s1268
          %s1271 = sshll.u32 [#allocation35], 4
          %s1272 = int_to_ptr.vmem [resolvable:$true] %s1271
          %1274 = dma.hbm_to_vmem [thread:$0]  %s53, 64, %s1272, [#allocation36]
        $region116: #{tpu_custom_call.1} parent=11 // pred_fallthru
          _
        // Predicated region
        $region117: #{tpu_custom_call.1} parent=11 // pred_check
          %p1275 = pneg %p705
        $region118: #{tpu_custom_call.1} parent=11 // pred_check_branch
          %1277 = sbr.rel (%p1275) target = $region120
        $region119: #{tpu_custom_call.1} parent=11 // pred_region
          %s1279 = ssub.s32 512, 512
          %1280 = vsyncadd [#allocation36], %s1279
          %s1281 = sshll.u32 [#allocation37], 4
          %s1282 = int_to_ptr.vmem [resolvable:$true] %s1281
          %1287 = dma.hbm_to_vmem [thread:$0]  %s55, 512, %s1282, [#allocation36], 64, 64, 4
        $region120: #{tpu_custom_call.1} parent=11 // pred_fallthru
          _
        // Predicated region
        $region121: #{tpu_custom_call.1} parent=11 // pred_check
          %p1288 = pneg %p726
        $region122: #{tpu_custom_call.1} parent=11 // pred_check_branch
          %1290 = sbr.rel (%p1288) target = $region124
        $region123: #{tpu_custom_call.1} parent=11 // pred_region
          %s1292 = ssub.s32 512, 512
          %1293 = vsyncadd [#allocation39], %s1292
          %s1294 = sshll.u32 [#allocation38], 4
          %s1295 = int_to_ptr.vmem [resolvable:$true] %s1294
          %1300 = dma.hbm_to_vmem [thread:$0]  %s57, 512, %s1295, [#allocation39], 64, 64, 4
        $region124: #{tpu_custom_call.1} parent=11 // pred_fallthru
          _
        // Predicated region
        $region125: #{tpu_custom_call.1} parent=11 // pred_check
          %p1301 = pneg %p747
        $region126: #{tpu_custom_call.1} parent=11 // pred_check_branch
          %1303 = sbr.rel (%p1301) target = $region128
        $region127: #{tpu_custom_call.1} parent=11 // pred_region
          %s1305 = ssub.s32 512, 512
          %1306 = vsyncadd [#allocation39], %s1305
          %s1307 = sshll.u32 [#allocation40], 4
          %s1308 = int_to_ptr.vmem [resolvable:$true] %s1307
          %1313 = dma.hbm_to_vmem [thread:$0]  %s59, 512, %s1308, [#allocation39], 64, 64, 4
        $region128: #{tpu_custom_call.1} parent=11 // pred_fallthru
          _
        // Predicated region
        $region129: #{tpu_custom_call.1} parent=11 // pred_check
          %p1314 = pneg %p768
        $region130: #{tpu_custom_call.1} parent=11 // pred_check_branch
          %1316 = sbr.rel (%p1314) target = $region132
        $region131: #{tpu_custom_call.1} parent=11 // pred_region
          %s1318 = ssub.s32 16, 16
          %1319 = vsyncadd [#allocation42], %s1318
          %s1321 = sshll.u32 [#allocation41], 4
          %s1322 = int_to_ptr.vmem [resolvable:$true] %s1321
          %1324 = dma.hbm_to_vmem [thread:$0]  %s61, 16, %s1322, [#allocation42]
        $region132: #{tpu_custom_call.1} parent=11 // pred_fallthru
          _
        // Predicated region
        $region133: #{tpu_custom_call.1} parent=11 // pred_check
          %p1325 = pneg %p789
        $region134: #{tpu_custom_call.1} parent=11 // pred_check_branch
          %1327 = sbr.rel (%p1325) target = $region136
        $region135: #{tpu_custom_call.1} parent=11 // pred_region
          %s1329 = ssub.s32 512, 512
          %1330 = vsyncadd [#allocation42], %s1329
          %s1331 = sshll.u32 [#allocation43], 4
          %s1332 = int_to_ptr.vmem [resolvable:$true] %s1331
          %1337 = dma.hbm_to_vmem [thread:$0]  %s63, 512, %s1332, [#allocation42], 64, 64, 4
        $region136: #{tpu_custom_call.1} parent=11 // pred_fallthru
          _
        // Predicated region
        $region137: #{tpu_custom_call.1} parent=11 // pred_check
          %p1338 = pneg %p810
        $region138: #{tpu_custom_call.1} parent=11 // pred_check_branch
          %1340 = sbr.rel (%p1338) target = $region140
        $region139: #{tpu_custom_call.1} parent=11 // pred_region
          %s1342 = ssub.s32 512, 512
          %1343 = vsyncadd [#allocation45], %s1342
          %s1344 = sshll.u32 [#allocation44], 4
          %s1345 = int_to_ptr.vmem [resolvable:$true] %s1344
          %1350 = dma.hbm_to_vmem [thread:$0]  %s65, 512, %s1345, [#allocation45], 64, 64, 4
        $region140: #{tpu_custom_call.1} parent=11 // pred_fallthru
          _
        // Predicated region
        $region141: #{tpu_custom_call.1} parent=11 // pred_check
          %p1351 = pneg %p831
        $region142: #{tpu_custom_call.1} parent=11 // pred_check_branch
          %1353 = sbr.rel (%p1351) target = $region144
        $region143: #{tpu_custom_call.1} parent=11 // pred_region
          %s1355 = ssub.s32 512, 512
          %1356 = vsyncadd [#allocation45], %s1355
          %s1357 = sshll.u32 [#allocation46], 4
          %s1358 = int_to_ptr.vmem [resolvable:$true] %s1357
          %1363 = dma.hbm_to_vmem [thread:$0]  %s67, 512, %s1358, [#allocation45], 64, 64, 4
        $region144: #{tpu_custom_call.1} parent=11 // pred_fallthru
          _
        // Predicated region
        $region145: #{tpu_custom_call.1} parent=11 // pred_check
          %p1364 = pneg %p852
        $region146: #{tpu_custom_call.1} parent=11 // pred_check_branch
          %1366 = sbr.rel (%p1364) target = $region148
        $region147: #{tpu_custom_call.1} parent=11 // pred_region
          %s1368 = ssub.s32 16, 16
          %1369 = vsyncadd [#allocation48], %s1368
          %s1371 = sshll.u32 [#allocation47], 4
          %s1372 = int_to_ptr.vmem [resolvable:$true] %s1371
          %1374 = dma.hbm_to_vmem [thread:$0]  %s69, 16, %s1372, [#allocation48]
        $region148: #{tpu_custom_call.1} parent=11 // pred_fallthru
          _
        // Predicated region
        $region149: #{tpu_custom_call.1} parent=11 // pred_check
          %p1375 = pneg %p873
        $region150: #{tpu_custom_call.1} parent=11 // pred_check_branch
          %1377 = sbr.rel (%p1375) target = $region152
        $region151: #{tpu_custom_call.1} parent=11 // pred_region
          _
        $region152: #{tpu_custom_call.1} parent=11 // pred_fallthru
          _
        // Predicated region
        $region153: #{tpu_custom_call.1} parent=11 // pred_check
          %p1378 = pneg %p894
        $region154: #{tpu_custom_call.1} parent=11 // pred_check_branch
          %1380 = sbr.rel (%p1378) target = $region156
        $region155: #{tpu_custom_call.1} parent=11 // pred_region
          _
        $region156: #{tpu_custom_call.1} parent=11 // pred_fallthru
          _
        // Predicated region
        $region157: #{tpu_custom_call.1} parent=11 // pred_check
          %p1381 = pneg %p915
        $region158: #{tpu_custom_call.1} parent=11 // pred_check_branch
          %1383 = sbr.rel (%p1381) target = $region160
        $region159: #{tpu_custom_call.1} parent=11 // pred_region
          _
        $region160: #{tpu_custom_call.1} parent=11 // pred_fallthru
          _
        // Predicated region
        $region161: #{tpu_custom_call.1} parent=11 // pred_check
          %p1384 = pneg %p936
        $region162: #{tpu_custom_call.1} parent=11 // pred_check_branch
          %1386 = sbr.rel (%p1384) target = $region164
        $region163: #{tpu_custom_call.1} parent=11 // pred_region
          _
        $region164: #{tpu_custom_call.1} parent=11 // pred_fallthru
          _
      $region12: #{tpu_custom_call.1} parent=5 // pred_fallthru
        _
      %p1387 = scmp.lt.s32.totalorder %s112, 2
      // Predicated region
      $region165: #{tpu_custom_call.1} parent=5 // pred_check
        %p1388 = pneg %p1387
      $region166: #{tpu_custom_call.1} parent=5 // pred_check_branch
        %1390 = sbr.rel (%p1388) target = $region168
      $region167: #{tpu_custom_call.1} parent=5 // pred_region
        // Predicated region
        $region169: #{tpu_custom_call.1} parent=167 // pred_check
          %p1391 = pneg %p132
        $region170: #{tpu_custom_call.1} parent=167 // pred_check_branch
          %1393 = sbr.rel (%p1391) target = $region172
        $region171: #{tpu_custom_call.1} parent=167 // pred_region
          %s1394 = sand.u32 %s122, 1
          %s1395 = scalar_lea.sflag [#allocation3], %s1394
          %s1396 = sand.u32 %s122, 1
          %s1397 = smul.addr %s1396, 8
          %s1398 = scalar_lea.vmem [#allocation2], %s1397
          %s1400 = ssub.s32 128, 128
          %1401 = vsyncadd %s1395, %s1400
          %s1402 = smul.addr %s112, 2
          %s1403 = smul.addr %s1402, 64
          %s1404 = scalar_lea.hbm %s1, %s1403
          %s1405 = sshll.u32 %s1398, 4
          %s1406 = int_to_ptr.vmem [resolvable:$true] %s1405
          %1411 = dma.hbm_to_vmem [thread:$0]  %s1404, 128, %s1406, %s1395, 64, 64, 4
        $region172: #{tpu_custom_call.1} parent=167 // pred_fallthru
          _
      $region168: #{tpu_custom_call.1} parent=5 // pred_fallthru
        _
      %p1412 = scmp.le.s32.totalorder 1, %s112
      %p1413 = scmp.lt.s32.totalorder %s112, 3
      %p1414 = pnand %p1412, %p1413
      %p1415 = pneg %p1414
      // Predicated region
      $region173: #{tpu_custom_call.1} parent=5 // pred_check
        _
      $region174: #{tpu_custom_call.1} parent=5 // pred_check_branch
        %1417 = sbr.rel (%p1414) target = $region176
      $region175: #{tpu_custom_call.1} parent=5 // pred_region
        %s1418 = ssub.s32 %s112, 1
        %s1419 = sand.u32 %s125, 1
        %s1420 = scalar_lea.sflag [#allocation3], %s1419
        %s1421 = sand.u32 %s125, 1
        %s1422 = smul.addr %s1421, 8
        %s1423 = scalar_lea.vmem [#allocation2], %s1422
        // Predicated region
        $region177: #{tpu_custom_call.1} parent=175 // pred_check
          %p1424 = pneg %p138
        $region178: #{tpu_custom_call.1} parent=175 // pred_check_branch
          %1426 = sbr.rel (%p1424) target = $region180
        $region179: #{tpu_custom_call.1} parent=175 // pred_region
          %1427 = dma.done %s1420, 128
        $region180: #{tpu_custom_call.1} parent=175 // pred_fallthru
          _
        // Predicated region
        $region181: #{tpu_custom_call.1} parent=175 // pred_check
          %p1428 = pneg %p159
        $region182: #{tpu_custom_call.1} parent=175 // pred_check_branch
          %1430 = sbr.rel (%p1428) target = $region184
        $region183: #{tpu_custom_call.1} parent=175 // pred_region
          %1431 = dma.done [#allocation6], 512
        $region184: #{tpu_custom_call.1} parent=175 // pred_fallthru
          _
        // Predicated region
        $region185: #{tpu_custom_call.1} parent=175 // pred_check
          %p1432 = pneg %p180
        $region186: #{tpu_custom_call.1} parent=175 // pred_check_branch
          %1434 = sbr.rel (%p1432) target = $region188
        $region187: #{tpu_custom_call.1} parent=175 // pred_region
          %1435 = dma.done [#allocation6], 16
        $region188: #{tpu_custom_call.1} parent=175 // pred_fallthru
          _
        // Predicated region
        $region189: #{tpu_custom_call.1} parent=175 // pred_check
          %p1436 = pneg %p201
        $region190: #{tpu_custom_call.1} parent=175 // pred_check_branch
          %1438 = sbr.rel (%p1436) target = $region192
        $region191: #{tpu_custom_call.1} parent=175 // pred_region
          %1439 = dma.done [#allocation9], 128
        $region192: #{tpu_custom_call.1} parent=175 // pred_fallthru
          _
        // Predicated region
        $region193: #{tpu_custom_call.1} parent=175 // pred_check
          %p1440 = pneg %p222
        $region194: #{tpu_custom_call.1} parent=175 // pred_check_branch
          %1442 = sbr.rel (%p1440) target = $region196
        $region195: #{tpu_custom_call.1} parent=175 // pred_region
          %1443 = dma.done [#allocation9], 128
        $region196: #{tpu_custom_call.1} parent=175 // pred_fallthru
          _
        // Predicated region
        $region197: #{tpu_custom_call.1} parent=175 // pred_check
          %p1444 = pneg %p306
        $region198: #{tpu_custom_call.1} parent=175 // pred_check_branch
          %1446 = sbr.rel (%p1444) target = $region200
        $region199: #{tpu_custom_call.1} parent=175 // pred_region
          %1447 = dma.done [#allocation12], 16
        $region200: #{tpu_custom_call.1} parent=175 // pred_fallthru
          _
        // Predicated region
        $region201: #{tpu_custom_call.1} parent=175 // pred_check
          %p1448 = pneg %p327
        $region202: #{tpu_custom_call.1} parent=175 // pred_check_branch
          %1450 = sbr.rel (%p1448) target = $region204
        $region203: #{tpu_custom_call.1} parent=175 // pred_region
          %1451 = dma.done [#allocation12], 1024
        $region204: #{tpu_custom_call.1} parent=175 // pred_fallthru
          _
        // Predicated region
        $region205: #{tpu_custom_call.1} parent=175 // pred_check
          %p1452 = pneg %p348
        $region206: #{tpu_custom_call.1} parent=175 // pred_check_branch
          %1454 = sbr.rel (%p1452) target = $region208
        $region207: #{tpu_custom_call.1} parent=175 // pred_region
          %1455 = dma.done [#allocation15], 1024
        $region208: #{tpu_custom_call.1} parent=175 // pred_fallthru
          _
        // Predicated region
        $region209: #{tpu_custom_call.1} parent=175 // pred_check
          %p1456 = pneg %p369
        $region210: #{tpu_custom_call.1} parent=175 // pred_check_branch
          %1458 = sbr.rel (%p1456) target = $region212
        $region211: #{tpu_custom_call.1} parent=175 // pred_region
          %1459 = dma.done [#allocation15], 1024
        $region212: #{tpu_custom_call.1} parent=175 // pred_fallthru
          _
        // Predicated region
        $region213: #{tpu_custom_call.1} parent=175 // pred_check
          %p1460 = pneg %p390
        $region214: #{tpu_custom_call.1} parent=175 // pred_check_branch
          %1462 = sbr.rel (%p1460) target = $region216
        $region215: #{tpu_custom_call.1} parent=175 // pred_region
          %1463 = dma.done [#allocation18], 16
        $region216: #{tpu_custom_call.1} parent=175 // pred_fallthru
          _
        // Predicated region
        $region217: #{tpu_custom_call.1} parent=175 // pred_check
          %p1464 = pneg %p411
        $region218: #{tpu_custom_call.1} parent=175 // pred_check_branch
          %1466 = sbr.rel (%p1464) target = $region220
        $region219: #{tpu_custom_call.1} parent=175 // pred_region
          %1467 = dma.done [#allocation18], 128
        $region220: #{tpu_custom_call.1} parent=175 // pred_fallthru
          _
        // Predicated region
        $region221: #{tpu_custom_call.1} parent=175 // pred_check
          %p1468 = pneg %p432
        $region222: #{tpu_custom_call.1} parent=175 // pred_check_branch
          %1470 = sbr.rel (%p1468) target = $region224
        $region223: #{tpu_custom_call.1} parent=175 // pred_region
          %1471 = dma.done [#allocation21], 128
        $region224: #{tpu_custom_call.1} parent=175 // pred_fallthru
          _
        // Predicated region
        $region225: #{tpu_custom_call.1} parent=175 // pred_check
          %p1472 = pneg %p453
        $region226: #{tpu_custom_call.1} parent=175 // pred_check_branch
          %1474 = sbr.rel (%p1472) target = $region228
        $region227: #{tpu_custom_call.1} parent=175 // pred_region
          %1475 = dma.done [#allocation21], 1024
        $region228: #{tpu_custom_call.1} parent=175 // pred_fallthru
          _
        // Predicated region
        $region229: #{tpu_custom_call.1} parent=175 // pred_check
          %p1476 = pneg %p474
        $region230: #{tpu_custom_call.1} parent=175 // pred_check_branch
          %1478 = sbr.rel (%p1476) target = $region232
        $region231: #{tpu_custom_call.1} parent=175 // pred_region
          %1479 = dma.done [#allocation24], 1024
        $region232: #{tpu_custom_call.1} parent=175 // pred_fallthru
          _
        // Predicated region
        $region233: #{tpu_custom_call.1} parent=175 // pred_check
          %p1480 = pneg %p516
        $region234: #{tpu_custom_call.1} parent=175 // pred_check_branch
          %1482 = sbr.rel (%p1480) target = $region236
        $region235: #{tpu_custom_call.1} parent=175 // pred_region
          %1483 = dma.done [#allocation24], 16
        $region236: #{tpu_custom_call.1} parent=175 // pred_fallthru
          _
        // Predicated region
        $region237: #{tpu_custom_call.1} parent=175 // pred_check
          %p1484 = pneg %p537
        $region238: #{tpu_custom_call.1} parent=175 // pred_check_branch
          %1486 = sbr.rel (%p1484) target = $region240
        $region239: #{tpu_custom_call.1} parent=175 // pred_region
          %1487 = dma.done [#allocation27], 1024
        $region240: #{tpu_custom_call.1} parent=175 // pred_fallthru
          _
        // Predicated region
        $region241: #{tpu_custom_call.1} parent=175 // pred_check
          %p1488 = pneg %p558
        $region242: #{tpu_custom_call.1} parent=175 // pred_check_branch
          %1490 = sbr.rel (%p1488) target = $region244
        $region243: #{tpu_custom_call.1} parent=175 // pred_region
          %1491 = dma.done [#allocation27], 1024
        $region244: #{tpu_custom_call.1} parent=175 // pred_fallthru
          _
        // Predicated region
        $region245: #{tpu_custom_call.1} parent=175 // pred_check
          %p1492 = pneg %p579
        $region246: #{tpu_custom_call.1} parent=175 // pred_check_branch
          %1494 = sbr.rel (%p1492) target = $region248
        $region247: #{tpu_custom_call.1} parent=175 // pred_region
          %1495 = dma.done [#allocation30], 1024
        $region248: #{tpu_custom_call.1} parent=175 // pred_fallthru
          _
        // Predicated region
        $region249: #{tpu_custom_call.1} parent=175 // pred_check
          %p1496 = pneg %p600
        $region250: #{tpu_custom_call.1} parent=175 // pred_check_branch
          %1498 = sbr.rel (%p1496) target = $region252
        $region251: #{tpu_custom_call.1} parent=175 // pred_region
          %1499 = dma.done [#allocation30], 16
        $region252: #{tpu_custom_call.1} parent=175 // pred_fallthru
          _
        // Predicated region
        $region253: #{tpu_custom_call.1} parent=175 // pred_check
          %p1500 = pneg %p621
        $region254: #{tpu_custom_call.1} parent=175 // pred_check_branch
          %1502 = sbr.rel (%p1500) target = $region256
        $region255: #{tpu_custom_call.1} parent=175 // pred_region
          %1503 = dma.done [#allocation33], 128
        $region256: #{tpu_custom_call.1} parent=175 // pred_fallthru
          _
        // Predicated region
        $region257: #{tpu_custom_call.1} parent=175 // pred_check
          %p1504 = pneg %p663
        $region258: #{tpu_custom_call.1} parent=175 // pred_check_branch
          %1506 = sbr.rel (%p1504) target = $region260
        $region259: #{tpu_custom_call.1} parent=175 // pred_region
          %1507 = dma.done [#allocation33], 64
        $region260: #{tpu_custom_call.1} parent=175 // pred_fallthru
          _
        // Predicated region
        $region261: #{tpu_custom_call.1} parent=175 // pred_check
          %p1508 = pneg %p684
        $region262: #{tpu_custom_call.1} parent=175 // pred_check_branch
          %1510 = sbr.rel (%p1508) target = $region264
        $region263: #{tpu_custom_call.1} parent=175 // pred_region
          %1511 = dma.done [#allocation36], 64
        $region264: #{tpu_custom_call.1} parent=175 // pred_fallthru
          _
        // Predicated region
        $region265: #{tpu_custom_call.1} parent=175 // pred_check
          %p1512 = pneg %p705
        $region266: #{tpu_custom_call.1} parent=175 // pred_check_branch
          %1514 = sbr.rel (%p1512) target = $region268
        $region267: #{tpu_custom_call.1} parent=175 // pred_region
          %1515 = dma.done [#allocation36], 512
        $region268: #{tpu_custom_call.1} parent=175 // pred_fallthru
          _
        // Predicated region
        $region269: #{tpu_custom_call.1} parent=175 // pred_check
          %p1516 = pneg %p726
        $region270: #{tpu_custom_call.1} parent=175 // pred_check_branch
          %1518 = sbr.rel (%p1516) target = $region272
        $region271: #{tpu_custom_call.1} parent=175 // pred_region
          %1519 = dma.done [#allocation39], 512
        $region272: #{tpu_custom_call.1} parent=175 // pred_fallthru
          _
        // Predicated region
        $region273: #{tpu_custom_call.1} parent=175 // pred_check
          %p1520 = pneg %p747
        $region274: #{tpu_custom_call.1} parent=175 // pred_check_branch
          %1522 = sbr.rel (%p1520) target = $region276
        $region275: #{tpu_custom_call.1} parent=175 // pred_region
          %1523 = dma.done [#allocation39], 512
        $region276: #{tpu_custom_call.1} parent=175 // pred_fallthru
          _
        // Predicated region
        $region277: #{tpu_custom_call.1} parent=175 // pred_check
          %p1524 = pneg %p768
        $region278: #{tpu_custom_call.1} parent=175 // pred_check_branch
          %1526 = sbr.rel (%p1524) target = $region280
        $region279: #{tpu_custom_call.1} parent=175 // pred_region
          %1527 = dma.done [#allocation42], 16
        $region280: #{tpu_custom_call.1} parent=175 // pred_fallthru
          _
        // Predicated region
        $region281: #{tpu_custom_call.1} parent=175 // pred_check
          %p1528 = pneg %p789
        $region282: #{tpu_custom_call.1} parent=175 // pred_check_branch
          %1530 = sbr.rel (%p1528) target = $region284
        $region283: #{tpu_custom_call.1} parent=175 // pred_region
          %1531 = dma.done [#allocation42], 512
        $region284: #{tpu_custom_call.1} parent=175 // pred_fallthru
          _
        // Predicated region
        $region285: #{tpu_custom_call.1} parent=175 // pred_check
          %p1532 = pneg %p810
        $region286: #{tpu_custom_call.1} parent=175 // pred_check_branch
          %1534 = sbr.rel (%p1532) target = $region288
        $region287: #{tpu_custom_call.1} parent=175 // pred_region
          %1535 = dma.done [#allocation45], 512
        $region288: #{tpu_custom_call.1} parent=175 // pred_fallthru
          _
        // Predicated region
        $region289: #{tpu_custom_call.1} parent=175 // pred_check
          %p1536 = pneg %p831
        $region290: #{tpu_custom_call.1} parent=175 // pred_check_branch
          %1538 = sbr.rel (%p1536) target = $region292
        $region291: #{tpu_custom_call.1} parent=175 // pred_region
          %1539 = dma.done [#allocation45], 512
        $region292: #{tpu_custom_call.1} parent=175 // pred_fallthru
          _
        // Predicated region
        $region293: #{tpu_custom_call.1} parent=175 // pred_check
          %p1540 = pneg %p852
        $region294: #{tpu_custom_call.1} parent=175 // pred_check_branch
          %1542 = sbr.rel (%p1540) target = $region296
        $region295: #{tpu_custom_call.1} parent=175 // pred_region
          %1543 = dma.done [#allocation48], 16
        $region296: #{tpu_custom_call.1} parent=175 // pred_fallthru
          _
        %s1544 = sand.u32 %s125, 1
        %s1545 = scalar_lea.sflag [#allocation3], %s1544
        %s1546 = sand.u32 %s125, 1
        %s1547 = smul.addr %s1546, 8
        %s1548 = scalar_lea.vmem [#allocation2], %s1547
        %p1549 = pneg %p138
        %p1550 = pneg %p135
        %p1551 = pneg %p159
        %p1552 = pneg %p156
        %p1553 = pneg %p180
        %p1554 = pneg %p177
        %p1555 = pneg %p201
        %p1556 = pneg %p198
        %p1557 = pneg %p222
        %p1558 = pneg %p219
        %p1559 = pneg %p243
        %p1560 = pneg %p240
        %p1561 = pneg %p264
        %p1562 = pneg %p261
        %p1563 = pneg %p285
        %p1564 = pneg %p282
        %p1565 = pneg %p306
        %p1566 = pneg %p303
        %p1567 = pneg %p327
        %p1568 = pneg %p324
        %p1569 = pneg %p348
        %p1570 = pneg %p345
        %p1571 = pneg %p369
        %p1572 = pneg %p366
        %p1573 = pneg %p390
        %p1574 = pneg %p387
        %p1575 = pneg %p411
        %p1576 = pneg %p408
        %p1577 = pneg %p432
        %p1578 = pneg %p429
        %p1579 = pneg %p453
        %p1580 = pneg %p450
        %p1581 = pneg %p474
        %p1582 = pneg %p471
        %p1583 = pneg %p495
        %p1584 = pneg %p492
        %p1585 = pneg %p516
        %p1586 = pneg %p513
        %p1587 = pneg %p537
        %p1588 = pneg %p534
        %p1589 = pneg %p558
        %p1590 = pneg %p555
        %p1591 = pneg %p579
        %p1592 = pneg %p576
        %p1593 = pneg %p600
        %p1594 = pneg %p597
        %p1595 = pneg %p621
        %p1596 = pneg %p618
        %p1597 = pneg %p642
        %p1598 = pneg %p639
        %p1599 = pneg %p663
        %p1600 = pneg %p660
        %p1601 = pneg %p684
        %p1602 = pneg %p681
        %p1603 = pneg %p705
        %p1604 = pneg %p702
        %p1605 = pneg %p726
        %p1606 = pneg %p723
        %p1607 = pneg %p747
        %p1608 = pneg %p744
        %p1609 = pneg %p768
        %p1610 = pneg %p765
        %p1611 = pneg %p789
        %p1612 = pneg %p786
        %p1613 = pneg %p810
        %p1614 = pneg %p807
        %p1615 = pneg %p831
        %p1616 = pneg %p828
        %p1617 = pneg %p852
        %p1618 = pneg %p849
        %p1619 = pneg %p873
        %p1620 = pneg %p870
        %p1621 = pneg %p894
        %p1622 = pneg %p891
        %p1623 = pneg %p915
        %p1624 = pneg %p912
        %p1625 = pneg %p936
        %p1626 = pneg %p933
        %p1627 = pneg %p962
        %p1628 = pneg %p959
        %s1629 = sand.u32 %s949, 1
        %s1630 = scalar_lea.sflag [#allocation4], %s1629
        %s1631 = sand.u32 %s949, 1
        %s1632 = smul.addr %s1631, 8
        %s1633 = scalar_lea.vmem [#allocation49], %s1632
        %p1634 = pneg %p988
        %p1635 = pneg %p985
        %s1636 = sand.u32 %s975, 1
        %s1637 = scalar_lea.sflag [#allocation51], %s1636
        %s1638 = sand.u32 %s975, 1
        %s1639 = smul.addr %s1638, 4
        %s1640 = scalar_lea.vmem [#allocation50], %s1639
        %v1642 = vld [vmem:[%s1423] sm:$0xf]
        %v1643 = vld [vmem:[%s1423 + $0x4] sm:$0xf]
        %v1644 = vld [vmem:[#allocation5] sm:$0xf]
        %v1645 = vld [vmem:[#allocation5 + $0x4] sm:$0xf]
        %v1646 = vld [vmem:[#allocation5 + $0x8] sm:$0xf]
        %v1647 = vld [vmem:[#allocation5 + $0xc] sm:$0xf]
        %v1648 = vld [vmem:[#allocation5 + $0x10] sm:$0xf]
        %v1649 = vld [vmem:[#allocation5 + $0x14] sm:$0xf]
        %v1650 = vld [vmem:[#allocation5 + $0x18] sm:$0xf]
        %v1651 = vld [vmem:[#allocation5 + $0x1c] sm:$0xf]
        %v1652 = vld [vmem:[#allocation7] sm:$0x1]
        %v1654 = vlaneseq
        %v1655 = vshrl.u32 %v1654, 7
        %v1656 = vsub.s32 0, %v1655
        %v1657 = vrot.slane %v1652, %v1656
        %v1661 = vunpack.c.l.b16 %v1642
        %v1662 = vunpack.c.l.b16 %v1643
        %v1663 = vpack.c.b16 %v1662, %v1661
        %v1672 = vunpack.c.l.b16 %v1644
        %v1673 = vunpack.c.l.b16 %v1645
        %v1674 = vunpack.c.l.b16 %v1646
        %v1675 = vunpack.c.l.b16 %v1647
        %v1676 = vunpack.c.l.b16 %v1648
        %v1677 = vunpack.c.l.b16 %v1649
        %v1678 = vunpack.c.l.b16 %v1650
        %v1679 = vunpack.c.l.b16 %v1651
        %v1680 = vpack.c.b16 %v1673, %v1672
        %v1681 = vpack.c.b16 %v1675, %v1674
        %v1682 = vpack.c.b16 %v1677, %v1676
        %v1683 = vpack.c.b16 %v1679, %v1678
        %vm1688 = vcmask 523264
        %v1690 = vsel %vm1688, %v1663, 0
        %1692 = vmatprep.subr.bf16.mxu0 0
        %1693 = vmatpush1.bf16.msra.mxu0 %v1680
        %1694 = vmatprep.subr.bf16.mxu0 0
        %1695 = vmatpush1.bf16.msra.mxu0 %v1681
        %1696 = vmatprep.subr.bf16.mxu0 0
        %1697 = vmatpush1.bf16.msra.mxu0 %v1682
        %1698 = vmatprep.subr.bf16.mxu0 0
        %1699 = vmatpush1.bf16.msra.mxu0 %v1683
        %1700 = vmatprep.subr.bf16.mxu0 0
        %1701 = vmatpush1.bf16.msra.mxu0 0
        %1702 = vmatprep.subr.bf16.mxu0 0
        %1703 = vmatpush1.bf16.msra.mxu0 0
        %1704 = vmatprep.subr.bf16.mxu0 0
        %1705 = vmatpush1.bf16.msra.mxu0 0
        %1706 = vmatprep.subr.bf16.mxu0 0
        %1707 = vmatpush1.bf16.msra.mxu0 0
        %1708 = vmatprep.subr.bf16.mxu0 0
        %1709 = vmatpush1.bf16.msra.mxu0 0
        %1710 = vmatprep.subr.bf16.mxu0 0
        %1711 = vmatpush1.bf16.msra.mxu0 0
        %1712 = vmatprep.subr.bf16.mxu0 0
        %1713 = vmatpush1.bf16.msra.mxu0 0
        %1714 = vmatprep.subr.bf16.mxu0 0
        %1715 = vmatpush1.bf16.msra.mxu0 0
        %1716 = vmatprep.subr.bf16.mxu0 0
        %1717 = vmatpush1.bf16.msra.mxu0 0
        %1718 = vmatprep.subr.bf16.mxu0 0
        %1719 = vmatpush1.bf16.msra.mxu0 0
        %1720 = vmatprep.subr.bf16.mxu0 0
        %1721 = vmatpush1.bf16.msra.mxu0 0
        %1722 = vmatprep.subr.bf16.mxu0 0
        %1723 = vmatpush1.bf16.msra.mxu0 0
        %1724 = vmatprep.mubr.bf16.mxu0 0
        %1725 = vmatmul.mubr.bf16.gmra.mrb[0].mxu0 %v1690
        %v1726 = vpop.f32.mrb[0].mxu0
        %v1727 = vadd.f32 %v1657, %v1726
        %v1728 = vpop.f32.mrb[0].mxu0
        %v1729 = vpop.f32.mrb[0].mxu0
        %v1730 = vadd.f32 %v1657, %v1729
        %v1731 = vpop.f32.mrb[0].mxu0
        %1732 = vdwg.mxu0
        %v1733 = vpack.c.bf16 %v1730, %v1727
        %v1734 = vld [vmem:[#allocation8] sm:$0xf]
        %v1735 = vld [vmem:[#allocation8 + $0x4] sm:$0xf]
        %v1736 = vld [vmem:[#allocation10] sm:$0xf]
        %v1737 = vld [vmem:[#allocation10 + $0x4] sm:$0xf]
        %v1740 = vunpack.c.l.b16 %v1734
        %v1741 = vunpack.c.l.b16 %v1735
        %v1742 = vpack.c.b16 %v1741, %v1740
        %vm1743 = vcmask 130048
        %v1745 = vsel %vm1743, %v1742, 0
        %1747 = vmatprep.subr.bf16.mxu0 0
        %1748 = vmatpush1.bf16.msra.mxu0 %v1733
        %1749 = vmatprep.subr.bf16.mxu0 0
        %1750 = vmatpush1.bf16.msra.mxu0 0
        %1751 = vmatprep.subr.bf16.mxu0 0
        %1752 = vmatpush1.bf16.msra.mxu0 0
        %1753 = vmatprep.subr.bf16.mxu0 0
        %1754 = vmatpush1.bf16.msra.mxu0 0
        %1755 = vmatprep.subr.bf16.mxu0 0
        %1756 = vmatpush1.bf16.msra.mxu0 0
        %1757 = vmatprep.subr.bf16.mxu0 0
        %1758 = vmatpush1.bf16.msra.mxu0 0
        %1759 = vmatprep.subr.bf16.mxu0 0
        %1760 = vmatpush1.bf16.msra.mxu0 0
        %1761 = vmatprep.subr.bf16.mxu0 0
        %1762 = vmatpush1.bf16.msra.mxu0 0
        %1763 = vmatprep.subr.bf16.mxu0 0
        %1764 = vmatpush1.bf16.msra.mxu0 0
        %1765 = vmatprep.subr.bf16.mxu0 0
        %1766 = vmatpush1.bf16.msra.mxu0 0
        %1767 = vmatprep.subr.bf16.mxu0 0
        %1768 = vmatpush1.bf16.msra.mxu0 0
        %1769 = vmatprep.subr.bf16.mxu0 0
        %1770 = vmatpush1.bf16.msra.mxu0 0
        %1771 = vmatprep.subr.bf16.mxu0 0
        %1772 = vmatpush1.bf16.msra.mxu0 0
        %1773 = vmatprep.subr.bf16.mxu0 0
        %1774 = vmatpush1.bf16.msra.mxu0 0
        %1775 = vmatprep.subr.bf16.mxu0 0
        %1776 = vmatpush1.bf16.msra.mxu0 0
        %1777 = vmatprep.subr.bf16.mxu0 0
        %1778 = vmatpush1.bf16.msra.mxu0 0
        %1779 = vmatprep.mubr.bf16.mxu0 0
        %1780 = vmatmul.mubr.bf16.gmra.mrb[0].mxu0 %v1745
        %v1781 = vpop.f32.mrb[0].mxu0
        %v1782 = vadd.f32 0.0, %v1781
        %v1783 = vpop.f32.mrb[0].mxu0
        %v1784 = vpop.f32.mrb[0].mxu0
        %v1785 = vadd.f32 0.0, %v1784
        %v1786 = vpop.f32.mrb[0].mxu0
        %1787 = vdwg.mxu0
        %v1788 = vpack.c.bf16 %v1785, %v1782
        %v1791 = vunpack.c.l.b16 %v1736
        %v1792 = vunpack.c.l.b16 %v1737
        %v1793 = vpack.c.b16 %v1792, %v1791
        %v1795 = vsel %vm1743, %v1793, 0
        %1797 = vmatprep.subr.bf16.mxu0 0
        %1798 = vmatpush1.bf16.msra.mxu0 %v1733
        %1799 = vmatprep.subr.bf16.mxu0 0
        %1800 = vmatpush1.bf16.msra.mxu0 0
        %1801 = vmatprep.subr.bf16.mxu0 0
        %1802 = vmatpush1.bf16.msra.mxu0 0
        %1803 = vmatprep.subr.bf16.mxu0 0
        %1804 = vmatpush1.bf16.msra.mxu0 0
        %1805 = vmatprep.subr.bf16.mxu0 0
        %1806 = vmatpush1.bf16.msra.mxu0 0
        %1807 = vmatprep.subr.bf16.mxu0 0
        %1808 = vmatpush1.bf16.msra.mxu0 0
        %1809 = vmatprep.subr.bf16.mxu0 0
        %1810 = vmatpush1.bf16.msra.mxu0 0
        %1811 = vmatprep.subr.bf16.mxu0 0
        %1812 = vmatpush1.bf16.msra.mxu0 0
        %1813 = vmatprep.subr.bf16.mxu0 0
        %1814 = vmatpush1.bf16.msra.mxu0 0
        %1815 = vmatprep.subr.bf16.mxu0 0
        %1816 = vmatpush1.bf16.msra.mxu0 0
        %1817 = vmatprep.subr.bf16.mxu0 0
        %1818 = vmatpush1.bf16.msra.mxu0 0
        %1819 = vmatprep.subr.bf16.mxu0 0
        %1820 = vmatpush1.bf16.msra.mxu0 0
        %1821 = vmatprep.subr.bf16.mxu0 0
        %1822 = vmatpush1.bf16.msra.mxu0 0
        %1823 = vmatprep.subr.bf16.mxu0 0
        %1824 = vmatpush1.bf16.msra.mxu0 0
        %1825 = vmatprep.subr.bf16.mxu0 0
        %1826 = vmatpush1.bf16.msra.mxu0 0
        %1827 = vmatprep.subr.bf16.mxu0 0
        %1828 = vmatpush1.bf16.msra.mxu0 0
        %1829 = vmatprep.mubr.bf16.mxu0 0
        %1830 = vmatmul.mubr.bf16.gmra.mrb[0].mxu0 %v1795
        %v1831 = vpop.f32.mrb[0].mxu0
        %v1832 = vadd.f32 0.0, %v1831
        %v1833 = vpop.f32.mrb[0].mxu0
        %v1834 = vpop.f32.mrb[0].mxu0
        %v1835 = vadd.f32 0.0, %v1834
        %v1836 = vpop.f32.mrb[0].mxu0
        %1837 = vdwg.mxu0
        %v1838 = vpack.c.bf16 %v1835, %v1832
        %v1839 = vld [vmem:[%s11] sm:$0xf]
        %v1840 = vld [vmem:[%s11 + $0x4] sm:$0xf]
        %v1841 = vld [vmem:[%s11 + $0x8] sm:$0xf]
        %v1842 = vld [vmem:[%s11 + $0xc] sm:$0xf]
        %v1843 = vld [vmem:[%s11 + $0x10] sm:$0xf]
        %v1844 = vld [vmem:[%s11 + $0x14] sm:$0xf]
        %v1845 = vld [vmem:[%s11 + $0x18] sm:$0xf]
        %v1846 = vld [vmem:[%s11 + $0x1c] sm:$0xf]
        %v1847 = vld [vmem:[%s11 + $0x20] sm:$0xf]
        %v1848 = vld [vmem:[%s11 + $0x24] sm:$0xf]
        %v1849 = vld [vmem:[%s11 + $0x28] sm:$0xf]
        %v1850 = vld [vmem:[%s11 + $0x2c] sm:$0xf]
        %v1851 = vld [vmem:[%s11 + $0x30] sm:$0xf]
        %v1852 = vld [vmem:[%s11 + $0x34] sm:$0xf]
        %v1853 = vld [vmem:[%s11 + $0x38] sm:$0xf]
        %v1854 = vld [vmem:[%s11 + $0x3c] sm:$0xf]
        %v1855 = vld [vmem:[%s13] sm:$0xf]
        %v1856 = vld [vmem:[%s13 + $0x4] sm:$0xf]
        %v1857 = vld [vmem:[%s13 + $0x8] sm:$0xf]
        %v1858 = vld [vmem:[%s13 + $0xc] sm:$0xf]
        %v1859 = vld [vmem:[%s13 + $0x10] sm:$0xf]
        %v1860 = vld [vmem:[%s13 + $0x14] sm:$0xf]
        %v1861 = vld [vmem:[%s13 + $0x18] sm:$0xf]
        %v1862 = vld [vmem:[%s13 + $0x1c] sm:$0xf]
        %v1863 = vld [vmem:[%s13 + $0x20] sm:$0xf]
        %v1864 = vld [vmem:[%s13 + $0x24] sm:$0xf]
        %v1865 = vld [vmem:[%s13 + $0x28] sm:$0xf]
        %v1866 = vld [vmem:[%s13 + $0x2c] sm:$0xf]
        %v1867 = vld [vmem:[%s13 + $0x30] sm:$0xf]
        %v1868 = vld [vmem:[%s13 + $0x34] sm:$0xf]
        %v1869 = vld [vmem:[%s13 + $0x38] sm:$0xf]
        %v1870 = vld [vmem:[%s13 + $0x3c] sm:$0xf]
        %v1871 = vld [vmem:[%s15] sm:$0xf]
        %v1872 = vld [vmem:[%s15 + $0x4] sm:$0xf]
        %v1873 = vld [vmem:[%s15 + $0x8] sm:$0xf]
        %v1874 = vld [vmem:[%s15 + $0xc] sm:$0xf]
        %v1875 = vld [vmem:[%s15 + $0x10] sm:$0xf]
        %v1876 = vld [vmem:[%s15 + $0x14] sm:$0xf]
        %v1877 = vld [vmem:[%s15 + $0x18] sm:$0xf]
        %v1878 = vld [vmem:[%s15 + $0x1c] sm:$0xf]
        %v1879 = vld [vmem:[%s15 + $0x20] sm:$0xf]
        %v1880 = vld [vmem:[%s15 + $0x24] sm:$0xf]
        %v1881 = vld [vmem:[%s15 + $0x28] sm:$0xf]
        %v1882 = vld [vmem:[%s15 + $0x2c] sm:$0xf]
        %v1883 = vld [vmem:[%s15 + $0x30] sm:$0xf]
        %v1884 = vld [vmem:[%s15 + $0x34] sm:$0xf]
        %v1885 = vld [vmem:[%s15 + $0x38] sm:$0xf]
        %v1886 = vld [vmem:[%s15 + $0x3c] sm:$0xf]
        %v1887 = vld [vmem:[#allocation11] sm:$0x1]
        %v1904 = vunpack.c.l.b16 %v1855
        %v1905 = vunpack.c.l.b16 %v1856
        %v1906 = vunpack.c.l.b16 %v1857
        %v1907 = vunpack.c.l.b16 %v1858
        %v1908 = vunpack.c.l.b16 %v1859
        %v1909 = vunpack.c.l.b16 %v1860
        %v1910 = vunpack.c.l.b16 %v1861
        %v1911 = vunpack.c.l.b16 %v1862
        %v1912 = vunpack.c.l.b16 %v1863
        %v1913 = vunpack.c.l.b16 %v1864
        %v1914 = vunpack.c.l.b16 %v1865
        %v1915 = vunpack.c.l.b16 %v1866
        %v1916 = vunpack.c.l.b16 %v1867
        %v1917 = vunpack.c.l.b16 %v1868
        %v1918 = vunpack.c.l.b16 %v1869
        %v1919 = vunpack.c.l.b16 %v1870
        %v1920 = vpack.c.b16 %v1905, %v1904
        %v1921 = vpack.c.b16 %v1907, %v1906
        %v1922 = vpack.c.b16 %v1909, %v1908
        %v1923 = vpack.c.b16 %v1911, %v1910
        %v1924 = vpack.c.b16 %v1913, %v1912
        %v1925 = vpack.c.b16 %v1915, %v1914
        %v1926 = vpack.c.b16 %v1917, %v1916
        %v1927 = vpack.c.b16 %v1919, %v1918
        %1936 = vmatprep.subr.bf16.mxu0 0
        %1937 = vmatpush1.bf16.msra.mxu0 %v1920
        %1938 = vmatprep.subr.bf16.mxu0 0
        %1939 = vmatpush1.bf16.msra.mxu0 %v1921
        %1940 = vmatprep.subr.bf16.mxu0 0
        %1941 = vmatpush1.bf16.msra.mxu0 %v1922
        %1942 = vmatprep.subr.bf16.mxu0 0
        %1943 = vmatpush1.bf16.msra.mxu0 %v1923
        %1944 = vmatprep.subr.bf16.mxu0 0
        %1945 = vmatpush1.bf16.msra.mxu0 %v1924
        %1946 = vmatprep.subr.bf16.mxu0 0
        %1947 = vmatpush1.bf16.msra.mxu0 %v1925
        %1948 = vmatprep.subr.bf16.mxu0 0
        %1949 = vmatpush1.bf16.msra.mxu0 %v1926
        %1950 = vmatprep.subr.bf16.mxu0 0
        %1951 = vmatpush1.bf16.msra.mxu0 %v1927
        %1952 = vmatprep.subr.bf16.mxu0 0
        %1953 = vmatpush1.bf16.msra.mxu0 0
        %1954 = vmatprep.subr.bf16.mxu0 0
        %1955 = vmatpush1.bf16.msra.mxu0 0
        %1956 = vmatprep.subr.bf16.mxu0 0
        %1957 = vmatpush1.bf16.msra.mxu0 0
        %1958 = vmatprep.subr.bf16.mxu0 0
        %1959 = vmatpush1.bf16.msra.mxu0 0
        %1960 = vmatprep.subr.bf16.mxu0 0
        %1961 = vmatpush1.bf16.msra.mxu0 0
        %1962 = vmatprep.subr.bf16.mxu0 0
        %1963 = vmatpush1.bf16.msra.mxu0 0
        %1964 = vmatprep.subr.bf16.mxu0 0
        %1965 = vmatpush1.bf16.msra.mxu0 0
        %1966 = vmatprep.subr.bf16.mxu0 0
        %1967 = vmatpush1.bf16.msra.mxu0 0
        %1968 = vmatprep.mubr.bf16.mxu0 0
        %1969 = vmatmul.mubr.bf16.gmra.mrb[0].mxu0 %v1733
        %v1970 = vpop.f32.mrb[0].mxu0
        %v1971 = vadd.f32 0.0, %v1970
        %v1972 = vpop.f32.mrb[0].mxu0
        %v1973 = vpop.f32.mrb[0].mxu0
        %v1974 = vadd.f32 0.0, %v1973
        %v1975 = vpop.f32.mrb[0].mxu0
        %1976 = vdwg.mxu0
        %v1993 = vunpack.c.l.b16 %v1839
        %v1994 = vunpack.c.l.b16 %v1840
        %v1995 = vunpack.c.l.b16 %v1841
        %v1996 = vunpack.c.l.b16 %v1842
        %v1997 = vunpack.c.l.b16 %v1843
        %v1998 = vunpack.c.l.b16 %v1844
        %v1999 = vunpack.c.l.b16 %v1845
        %v2000 = vunpack.c.l.b16 %v1846
        %v2001 = vunpack.c.l.b16 %v1847
        %v2002 = vunpack.c.l.b16 %v1848
        %v2003 = vunpack.c.l.b16 %v1849
        %v2004 = vunpack.c.l.b16 %v1850
        %v2005 = vunpack.c.l.b16 %v1851
        %v2006 = vunpack.c.l.b16 %v1852
        %v2007 = vunpack.c.l.b16 %v1853
        %v2008 = vunpack.c.l.b16 %v1854
        %v2009 = vpack.c.b16 %v1994, %v1993
        %v2010 = vpack.c.b16 %v1996, %v1995
        %v2011 = vpack.c.b16 %v1998, %v1997
        %v2012 = vpack.c.b16 %v2000, %v1999
        %v2013 = vpack.c.b16 %v2002, %v2001
        %v2014 = vpack.c.b16 %v2004, %v2003
        %v2015 = vpack.c.b16 %v2006, %v2005
        %v2016 = vpack.c.b16 %v2008, %v2007
        %2025 = vmatprep.subr.bf16.mxu0 0
        %2026 = vmatpush1.bf16.msra.mxu0 %v2009
        %2027 = vmatprep.subr.bf16.mxu0 0
        %2028 = vmatpush1.bf16.msra.mxu0 %v2010
        %2029 = vmatprep.subr.bf16.mxu0 0
        %2030 = vmatpush1.bf16.msra.mxu0 %v2011
        %2031 = vmatprep.subr.bf16.mxu0 0
        %2032 = vmatpush1.bf16.msra.mxu0 %v2012
        %2033 = vmatprep.subr.bf16.mxu0 0
        %2034 = vmatpush1.bf16.msra.mxu0 %v2013
        %2035 = vmatprep.subr.bf16.mxu0 0
        %2036 = vmatpush1.bf16.msra.mxu0 %v2014
        %2037 = vmatprep.subr.bf16.mxu0 0
        %2038 = vmatpush1.bf16.msra.mxu0 %v2015
        %2039 = vmatprep.subr.bf16.mxu0 0
        %2040 = vmatpush1.bf16.msra.mxu0 %v2016
        %2041 = vmatprep.subr.bf16.mxu0 0
        %2042 = vmatpush1.bf16.msra.mxu0 0
        %2043 = vmatprep.subr.bf16.mxu0 0
        %2044 = vmatpush1.bf16.msra.mxu0 0
        %2045 = vmatprep.subr.bf16.mxu0 0
        %2046 = vmatpush1.bf16.msra.mxu0 0
        %2047 = vmatprep.subr.bf16.mxu0 0
        %2048 = vmatpush1.bf16.msra.mxu0 0
        %2049 = vmatprep.subr.bf16.mxu0 0
        %2050 = vmatpush1.bf16.msra.mxu0 0
        %2051 = vmatprep.subr.bf16.mxu0 0
        %2052 = vmatpush1.bf16.msra.mxu0 0
        %2053 = vmatprep.subr.bf16.mxu0 0
        %2054 = vmatpush1.bf16.msra.mxu0 0
        %2055 = vmatprep.subr.bf16.mxu0 0
        %2056 = vmatpush1.bf16.msra.mxu0 0
        %2057 = vmatprep.mubr.bf16.mxu0 0
        %2058 = vmatmul.mubr.bf16.gmra.mrb[0].mxu0 %v1788
        %v2059 = vpop.f32.mrb[0].mxu0
        %v2060 = vadd.f32 %v1971, %v2059
        %v2061 = vpop.f32.mrb[0].mxu0
        %v2062 = vpop.f32.mrb[0].mxu0
        %v2063 = vadd.f32 %v1974, %v2062
        %v2064 = vpop.f32.mrb[0].mxu0
        %2065 = vdwg.mxu0
        %v2082 = vunpack.c.l.b16 %v1871
        %v2083 = vunpack.c.l.b16 %v1872
        %v2084 = vunpack.c.l.b16 %v1873
        %v2085 = vunpack.c.l.b16 %v1874
        %v2086 = vunpack.c.l.b16 %v1875
        %v2087 = vunpack.c.l.b16 %v1876
        %v2088 = vunpack.c.l.b16 %v1877
        %v2089 = vunpack.c.l.b16 %v1878
        %v2090 = vunpack.c.l.b16 %v1879
        %v2091 = vunpack.c.l.b16 %v1880
        %v2092 = vunpack.c.l.b16 %v1881
        %v2093 = vunpack.c.l.b16 %v1882
        %v2094 = vunpack.c.l.b16 %v1883
        %v2095 = vunpack.c.l.b16 %v1884
        %v2096 = vunpack.c.l.b16 %v1885
        %v2097 = vunpack.c.l.b16 %v1886
        %v2098 = vpack.c.b16 %v2083, %v2082
        %v2099 = vpack.c.b16 %v2085, %v2084
        %v2100 = vpack.c.b16 %v2087, %v2086
        %v2101 = vpack.c.b16 %v2089, %v2088
        %v2102 = vpack.c.b16 %v2091, %v2090
        %v2103 = vpack.c.b16 %v2093, %v2092
        %v2104 = vpack.c.b16 %v2095, %v2094
        %v2105 = vpack.c.b16 %v2097, %v2096
        %2114 = vmatprep.subr.bf16.mxu0 0
        %2115 = vmatpush1.bf16.msra.mxu0 %v2098
        %2116 = vmatprep.subr.bf16.mxu0 0
        %2117 = vmatpush1.bf16.msra.mxu0 %v2099
        %2118 = vmatprep.subr.bf16.mxu0 0
        %2119 = vmatpush1.bf16.msra.mxu0 %v2100
        %2120 = vmatprep.subr.bf16.mxu0 0
        %2121 = vmatpush1.bf16.msra.mxu0 %v2101
        %2122 = vmatprep.subr.bf16.mxu0 0
        %2123 = vmatpush1.bf16.msra.mxu0 %v2102
        %2124 = vmatprep.subr.bf16.mxu0 0
        %2125 = vmatpush1.bf16.msra.mxu0 %v2103
        %2126 = vmatprep.subr.bf16.mxu0 0
        %2127 = vmatpush1.bf16.msra.mxu0 %v2104
        %2128 = vmatprep.subr.bf16.mxu0 0
        %2129 = vmatpush1.bf16.msra.mxu0 %v2105
        %2130 = vmatprep.subr.bf16.mxu0 0
        %2131 = vmatpush1.bf16.msra.mxu0 0
        %2132 = vmatprep.subr.bf16.mxu0 0
        %2133 = vmatpush1.bf16.msra.mxu0 0
        %2134 = vmatprep.subr.bf16.mxu0 0
        %2135 = vmatpush1.bf16.msra.mxu0 0
        %2136 = vmatprep.subr.bf16.mxu0 0
        %2137 = vmatpush1.bf16.msra.mxu0 0
        %2138 = vmatprep.subr.bf16.mxu0 0
        %2139 = vmatpush1.bf16.msra.mxu0 0
        %2140 = vmatprep.subr.bf16.mxu0 0
        %2141 = vmatpush1.bf16.msra.mxu0 0
        %2142 = vmatprep.subr.bf16.mxu0 0
        %2143 = vmatpush1.bf16.msra.mxu0 0
        %2144 = vmatprep.subr.bf16.mxu0 0
        %2145 = vmatpush1.bf16.msra.mxu0 0
        %2146 = vmatprep.mubr.bf16.mxu0 0
        %2147 = vmatmul.mubr.bf16.gmra.mrb[0].mxu0 %v1838
        %v2148 = vpop.f32.mrb[0].mxu0
        %v2149 = vadd.f32 0.0, %v2148
        %v2150 = vpop.f32.mrb[0].mxu0
        %v2151 = vpop.f32.mrb[0].mxu0
        %v2152 = vadd.f32 0.0, %v2151
        %v2153 = vpop.f32.mrb[0].mxu0
        %2154 = vdwg.mxu0
        %v2155 = vadd.f32 %v2060, %v2149
        %v2156 = vadd.f32 %v2063, %v2152
        %v2158 = vlaneseq
        %v2159 = vshrl.u32 %v2158, 7
        %v2160 = vsub.s32 0, %v2159
        %v2161 = vrot.slane %v1887, %v2160
        %v2163 = vadd.f32 %v2155, %v2161
        %v2164 = vadd.f32 %v2156, %v2161
        %v2165 = vmax.f32 %v2163, 0.0
        %v2166 = vmax.f32 %v2164, 0.0
        %v2167 = vpack.c.bf16 %v2166, %v2165
        %2168 = vmatprep.subr.bf16.mxu0 0
        %2169 = vmatpush1.bf16.msra.mxu0 %v2167
        %2170 = vmatprep.subr.bf16.mxu0 0
        %2171 = vmatpush1.bf16.msra.mxu0 0
        %2172 = vmatprep.subr.bf16.mxu0 0
        %2173 = vmatpush1.bf16.msra.mxu0 0
        %2174 = vmatprep.subr.bf16.mxu0 0
        %2175 = vmatpush1.bf16.msra.mxu0 0
        %2176 = vmatprep.subr.bf16.mxu0 0
        %2177 = vmatpush1.bf16.msra.mxu0 0
        %2178 = vmatprep.subr.bf16.mxu0 0
        %2179 = vmatpush1.bf16.msra.mxu0 0
        %2180 = vmatprep.subr.bf16.mxu0 0
        %2181 = vmatpush1.bf16.msra.mxu0 0
        %2182 = vmatprep.subr.bf16.mxu0 0
        %2183 = vmatpush1.bf16.msra.mxu0 0
        %2184 = vmatprep.subr.bf16.mxu0 0
        %2185 = vmatpush1.bf16.msra.mxu0 0
        %2186 = vmatprep.subr.bf16.mxu0 0
        %2187 = vmatpush1.bf16.msra.mxu0 0
        %2188 = vmatprep.subr.bf16.mxu0 0
        %2189 = vmatpush1.bf16.msra.mxu0 0
        %2190 = vmatprep.subr.bf16.mxu0 0
        %2191 = vmatpush1.bf16.msra.mxu0 0
        %2192 = vmatprep.subr.bf16.mxu0 0
        %2193 = vmatpush1.bf16.msra.mxu0 0
        %2194 = vmatprep.subr.bf16.mxu0 0
        %2195 = vmatpush1.bf16.msra.mxu0 0
        %2196 = vmatprep.subr.bf16.mxu0 0
        %2197 = vmatpush1.bf16.msra.mxu0 0
        %2198 = vmatprep.subr.bf16.mxu0 0
        %2199 = vmatpush1.bf16.msra.mxu0 0
        %2200 = vmatprep.mubr.bf16.mxu0 0
        %2201 = vmatmul.mubr.bf16.gmra.mrb[0].mxu0 %v1745
        %v2202 = vpop.f32.mrb[0].mxu0
        %v2203 = vadd.f32 0.0, %v2202
        %v2204 = vpop.f32.mrb[0].mxu0
        %v2205 = vpop.f32.mrb[0].mxu0
        %v2206 = vadd.f32 0.0, %v2205
        %v2207 = vpop.f32.mrb[0].mxu0
        %2208 = vdwg.mxu0
        %v2209 = vpack.c.bf16 %v2206, %v2203
        %2210 = vmatprep.subr.bf16.mxu0 0
        %2211 = vmatpush1.bf16.msra.mxu0 %v2167
        %2212 = vmatprep.subr.bf16.mxu0 0
        %2213 = vmatpush1.bf16.msra.mxu0 0
        %2214 = vmatprep.subr.bf16.mxu0 0
        %2215 = vmatpush1.bf16.msra.mxu0 0
        %2216 = vmatprep.subr.bf16.mxu0 0
        %2217 = vmatpush1.bf16.msra.mxu0 0
        %2218 = vmatprep.subr.bf16.mxu0 0
        %2219 = vmatpush1.bf16.msra.mxu0 0
        %2220 = vmatprep.subr.bf16.mxu0 0
        %2221 = vmatpush1.bf16.msra.mxu0 0
        %2222 = vmatprep.subr.bf16.mxu0 0
        %2223 = vmatpush1.bf16.msra.mxu0 0
        %2224 = vmatprep.subr.bf16.mxu0 0
        %2225 = vmatpush1.bf16.msra.mxu0 0
        %2226 = vmatprep.subr.bf16.mxu0 0
        %2227 = vmatpush1.bf16.msra.mxu0 0
        %2228 = vmatprep.subr.bf16.mxu0 0
        %2229 = vmatpush1.bf16.msra.mxu0 0
        %2230 = vmatprep.subr.bf16.mxu0 0
        %2231 = vmatpush1.bf16.msra.mxu0 0
        %2232 = vmatprep.subr.bf16.mxu0 0
        %2233 = vmatpush1.bf16.msra.mxu0 0
        %2234 = vmatprep.subr.bf16.mxu0 0
        %2235 = vmatpush1.bf16.msra.mxu0 0
        %2236 = vmatprep.subr.bf16.mxu0 0
        %2237 = vmatpush1.bf16.msra.mxu0 0
        %2238 = vmatprep.subr.bf16.mxu0 0
        %2239 = vmatpush1.bf16.msra.mxu0 0
        %2240 = vmatprep.subr.bf16.mxu0 0
        %2241 = vmatpush1.bf16.msra.mxu0 0
        %2242 = vmatprep.mubr.bf16.mxu0 0
        %2243 = vmatmul.mubr.bf16.gmra.mrb[0].mxu0 %v1795
        %v2244 = vpop.f32.mrb[0].mxu0
        %v2245 = vadd.f32 0.0, %v2244
        %v2246 = vpop.f32.mrb[0].mxu0
        %v2247 = vpop.f32.mrb[0].mxu0
        %v2248 = vadd.f32 0.0, %v2247
        %v2249 = vpop.f32.mrb[0].mxu0
        %2250 = vdwg.mxu0
        %v2251 = vpack.c.bf16 %v2248, %v2245
        %v2252 = vld [vmem:[#allocation13] sm:$0xf]
        %v2253 = vld [vmem:[#allocation13 + $0x4] sm:$0xf]
        %v2254 = vld [vmem:[#allocation13 + $0x8] sm:$0xf]
        %v2255 = vld [vmem:[#allocation13 + $0xc] sm:$0xf]
        %v2256 = vld [vmem:[#allocation13 + $0x10] sm:$0xf]
        %v2257 = vld [vmem:[#allocation13 + $0x14] sm:$0xf]
        %v2258 = vld [vmem:[#allocation13 + $0x18] sm:$0xf]
        %v2259 = vld [vmem:[#allocation13 + $0x1c] sm:$0xf]
        %v2260 = vld [vmem:[#allocation13 + $0x20] sm:$0xf]
        %v2261 = vld [vmem:[#allocation13 + $0x24] sm:$0xf]
        %v2262 = vld [vmem:[#allocation13 + $0x28] sm:$0xf]
        %v2263 = vld [vmem:[#allocation13 + $0x2c] sm:$0xf]
        %v2264 = vld [vmem:[#allocation13 + $0x30] sm:$0xf]
        %v2265 = vld [vmem:[#allocation13 + $0x34] sm:$0xf]
        %v2266 = vld [vmem:[#allocation13 + $0x38] sm:$0xf]
        %v2267 = vld [vmem:[#allocation13 + $0x3c] sm:$0xf]
        %v2268 = vld [vmem:[#allocation14] sm:$0xf]
        %v2269 = vld [vmem:[#allocation14 + $0x4] sm:$0xf]
        %v2270 = vld [vmem:[#allocation14 + $0x8] sm:$0xf]
        %v2271 = vld [vmem:[#allocation14 + $0xc] sm:$0xf]
        %v2272 = vld [vmem:[#allocation14 + $0x10] sm:$0xf]
        %v2273 = vld [vmem:[#allocation14 + $0x14] sm:$0xf]
        %v2274 = vld [vmem:[#allocation14 + $0x18] sm:$0xf]
        %v2275 = vld [vmem:[#allocation14 + $0x1c] sm:$0xf]
        %v2276 = vld [vmem:[#allocation14 + $0x20] sm:$0xf]
        %v2277 = vld [vmem:[#allocation14 + $0x24] sm:$0xf]
        %v2278 = vld [vmem:[#allocation14 + $0x28] sm:$0xf]
        %v2279 = vld [vmem:[#allocation14 + $0x2c] sm:$0xf]
        %v2280 = vld [vmem:[#allocation14 + $0x30] sm:$0xf]
        %v2281 = vld [vmem:[#allocation14 + $0x34] sm:$0xf]
        %v2282 = vld [vmem:[#allocation14 + $0x38] sm:$0xf]
        %v2283 = vld [vmem:[#allocation14 + $0x3c] sm:$0xf]
        %v2284 = vld [vmem:[#allocation16] sm:$0xf]
        %v2285 = vld [vmem:[#allocation16 + $0x4] sm:$0xf]
        %v2286 = vld [vmem:[#allocation16 + $0x8] sm:$0xf]
        %v2287 = vld [vmem:[#allocation16 + $0xc] sm:$0xf]
        %v2288 = vld [vmem:[#allocation16 + $0x10] sm:$0xf]
        %v2289 = vld [vmem:[#allocation16 + $0x14] sm:$0xf]
        %v2290 = vld [vmem:[#allocation16 + $0x18] sm:$0xf]
        %v2291 = vld [vmem:[#allocation16 + $0x1c] sm:$0xf]
        %v2292 = vld [vmem:[#allocation16 + $0x20] sm:$0xf]
        %v2293 = vld [vmem:[#allocation16 + $0x24] sm:$0xf]
        %v2294 = vld [vmem:[#allocation16 + $0x28] sm:$0xf]
        %v2295 = vld [vmem:[#allocation16 + $0x2c] sm:$0xf]
        %v2296 = vld [vmem:[#allocation16 + $0x30] sm:$0xf]
        %v2297 = vld [vmem:[#allocation16 + $0x34] sm:$0xf]
        %v2298 = vld [vmem:[#allocation16 + $0x38] sm:$0xf]
        %v2299 = vld [vmem:[#allocation16 + $0x3c] sm:$0xf]
        %v2300 = vld [vmem:[#allocation17] sm:$0x1]
        %v2317 = vunpack.c.l.b16 %v2268
        %v2318 = vunpack.c.l.b16 %v2269
        %v2319 = vunpack.c.l.b16 %v2270
        %v2320 = vunpack.c.l.b16 %v2271
        %v2321 = vunpack.c.l.b16 %v2272
        %v2322 = vunpack.c.l.b16 %v2273
        %v2323 = vunpack.c.l.b16 %v2274
        %v2324 = vunpack.c.l.b16 %v2275
        %v2325 = vunpack.c.l.b16 %v2276
        %v2326 = vunpack.c.l.b16 %v2277
        %v2327 = vunpack.c.l.b16 %v2278
        %v2328 = vunpack.c.l.b16 %v2279
        %v2329 = vunpack.c.l.b16 %v2280
        %v2330 = vunpack.c.l.b16 %v2281
        %v2331 = vunpack.c.l.b16 %v2282
        %v2332 = vunpack.c.l.b16 %v2283
        %v2333 = vpack.c.b16 %v2318, %v2317
        %v2334 = vpack.c.b16 %v2320, %v2319
        %v2335 = vpack.c.b16 %v2322, %v2321
        %v2336 = vpack.c.b16 %v2324, %v2323
        %v2337 = vpack.c.b16 %v2326, %v2325
        %v2338 = vpack.c.b16 %v2328, %v2327
        %v2339 = vpack.c.b16 %v2330, %v2329
        %v2340 = vpack.c.b16 %v2332, %v2331
        %2349 = vmatprep.subr.bf16.mxu0 0
        %2350 = vmatpush1.bf16.msra.mxu0 %v2333
        %2351 = vmatprep.subr.bf16.mxu0 0
        %2352 = vmatpush1.bf16.msra.mxu0 %v2334
        %2353 = vmatprep.subr.bf16.mxu0 0
        %2354 = vmatpush1.bf16.msra.mxu0 %v2335
        %2355 = vmatprep.subr.bf16.mxu0 0
        %2356 = vmatpush1.bf16.msra.mxu0 %v2336
        %2357 = vmatprep.subr.bf16.mxu0 0
        %2358 = vmatpush1.bf16.msra.mxu0 %v2337
        %2359 = vmatprep.subr.bf16.mxu0 0
        %2360 = vmatpush1.bf16.msra.mxu0 %v2338
        %2361 = vmatprep.subr.bf16.mxu0 0
        %2362 = vmatpush1.bf16.msra.mxu0 %v2339
        %2363 = vmatprep.subr.bf16.mxu0 0
        %2364 = vmatpush1.bf16.msra.mxu0 %v2340
        %2365 = vmatprep.subr.bf16.mxu0 0
        %2366 = vmatpush1.bf16.msra.mxu0 0
        %2367 = vmatprep.subr.bf16.mxu0 0
        %2368 = vmatpush1.bf16.msra.mxu0 0
        %2369 = vmatprep.subr.bf16.mxu0 0
        %2370 = vmatpush1.bf16.msra.mxu0 0
        %2371 = vmatprep.subr.bf16.mxu0 0
        %2372 = vmatpush1.bf16.msra.mxu0 0
        %2373 = vmatprep.subr.bf16.mxu0 0
        %2374 = vmatpush1.bf16.msra.mxu0 0
        %2375 = vmatprep.subr.bf16.mxu0 0
        %2376 = vmatpush1.bf16.msra.mxu0 0
        %2377 = vmatprep.subr.bf16.mxu0 0
        %2378 = vmatpush1.bf16.msra.mxu0 0
        %2379 = vmatprep.subr.bf16.mxu0 0
        %2380 = vmatpush1.bf16.msra.mxu0 0
        %2381 = vmatprep.mubr.bf16.mxu0 0
        %2382 = vmatmul.mubr.bf16.gmra.mrb[0].mxu0 %v2167
        %v2383 = vpop.f32.mrb[0].mxu0
        %v2384 = vadd.f32 0.0, %v2383
        %v2385 = vpop.f32.mrb[0].mxu0
        %v2386 = vpop.f32.mrb[0].mxu0
        %v2387 = vadd.f32 0.0, %v2386
        %v2388 = vpop.f32.mrb[0].mxu0
        %2389 = vdwg.mxu0
        %v2406 = vunpack.c.l.b16 %v2252
        %v2407 = vunpack.c.l.b16 %v2253
        %v2408 = vunpack.c.l.b16 %v2254
        %v2409 = vunpack.c.l.b16 %v2255
        %v2410 = vunpack.c.l.b16 %v2256
        %v2411 = vunpack.c.l.b16 %v2257
        %v2412 = vunpack.c.l.b16 %v2258
        %v2413 = vunpack.c.l.b16 %v2259
        %v2414 = vunpack.c.l.b16 %v2260
        %v2415 = vunpack.c.l.b16 %v2261
        %v2416 = vunpack.c.l.b16 %v2262
        %v2417 = vunpack.c.l.b16 %v2263
        %v2418 = vunpack.c.l.b16 %v2264
        %v2419 = vunpack.c.l.b16 %v2265
        %v2420 = vunpack.c.l.b16 %v2266
        %v2421 = vunpack.c.l.b16 %v2267
        %v2422 = vpack.c.b16 %v2407, %v2406
        %v2423 = vpack.c.b16 %v2409, %v2408
        %v2424 = vpack.c.b16 %v2411, %v2410
        %v2425 = vpack.c.b16 %v2413, %v2412
        %v2426 = vpack.c.b16 %v2415, %v2414
        %v2427 = vpack.c.b16 %v2417, %v2416
        %v2428 = vpack.c.b16 %v2419, %v2418
        %v2429 = vpack.c.b16 %v2421, %v2420
        %2438 = vmatprep.subr.bf16.mxu0 0
        %2439 = vmatpush1.bf16.msra.mxu0 %v2422
        %2440 = vmatprep.subr.bf16.mxu0 0
        %2441 = vmatpush1.bf16.msra.mxu0 %v2423
        %2442 = vmatprep.subr.bf16.mxu0 0
        %2443 = vmatpush1.bf16.msra.mxu0 %v2424
        %2444 = vmatprep.subr.bf16.mxu0 0
        %2445 = vmatpush1.bf16.msra.mxu0 %v2425
        %2446 = vmatprep.subr.bf16.mxu0 0
        %2447 = vmatpush1.bf16.msra.mxu0 %v2426
        %2448 = vmatprep.subr.bf16.mxu0 0
        %2449 = vmatpush1.bf16.msra.mxu0 %v2427
        %2450 = vmatprep.subr.bf16.mxu0 0
        %2451 = vmatpush1.bf16.msra.mxu0 %v2428
        %2452 = vmatprep.subr.bf16.mxu0 0
        %2453 = vmatpush1.bf16.msra.mxu0 %v2429
        %2454 = vmatprep.subr.bf16.mxu0 0
        %2455 = vmatpush1.bf16.msra.mxu0 0
        %2456 = vmatprep.subr.bf16.mxu0 0
        %2457 = vmatpush1.bf16.msra.mxu0 0
        %2458 = vmatprep.subr.bf16.mxu0 0
        %2459 = vmatpush1.bf16.msra.mxu0 0
        %2460 = vmatprep.subr.bf16.mxu0 0
        %2461 = vmatpush1.bf16.msra.mxu0 0
        %2462 = vmatprep.subr.bf16.mxu0 0
        %2463 = vmatpush1.bf16.msra.mxu0 0
        %2464 = vmatprep.subr.bf16.mxu0 0
        %2465 = vmatpush1.bf16.msra.mxu0 0
        %2466 = vmatprep.subr.bf16.mxu0 0
        %2467 = vmatpush1.bf16.msra.mxu0 0
        %2468 = vmatprep.subr.bf16.mxu0 0
        %2469 = vmatpush1.bf16.msra.mxu0 0
        %2470 = vmatprep.mubr.bf16.mxu0 0
        %2471 = vmatmul.mubr.bf16.gmra.mrb[0].mxu0 %v2209
        %v2472 = vpop.f32.mrb[0].mxu0
        %v2473 = vadd.f32 %v2384, %v2472
        %v2474 = vpop.f32.mrb[0].mxu0
        %v2475 = vpop.f32.mrb[0].mxu0
        %v2476 = vadd.f32 %v2387, %v2475
        %v2477 = vpop.f32.mrb[0].mxu0
        %2478 = vdwg.mxu0
        %v2495 = vunpack.c.l.b16 %v2284
        %v2496 = vunpack.c.l.b16 %v2285
        %v2497 = vunpack.c.l.b16 %v2286
        %v2498 = vunpack.c.l.b16 %v2287
        %v2499 = vunpack.c.l.b16 %v2288
        %v2500 = vunpack.c.l.b16 %v2289
        %v2501 = vunpack.c.l.b16 %v2290
        %v2502 = vunpack.c.l.b16 %v2291
        %v2503 = vunpack.c.l.b16 %v2292
        %v2504 = vunpack.c.l.b16 %v2293
        %v2505 = vunpack.c.l.b16 %v2294
        %v2506 = vunpack.c.l.b16 %v2295
        %v2507 = vunpack.c.l.b16 %v2296
        %v2508 = vunpack.c.l.b16 %v2297
        %v2509 = vunpack.c.l.b16 %v2298
        %v2510 = vunpack.c.l.b16 %v2299
        %v2511 = vpack.c.b16 %v2496, %v2495
        %v2512 = vpack.c.b16 %v2498, %v2497
        %v2513 = vpack.c.b16 %v2500, %v2499
        %v2514 = vpack.c.b16 %v2502, %v2501
        %v2515 = vpack.c.b16 %v2504, %v2503
        %v2516 = vpack.c.b16 %v2506, %v2505
        %v2517 = vpack.c.b16 %v2508, %v2507
        %v2518 = vpack.c.b16 %v2510, %v2509
        %2527 = vmatprep.subr.bf16.mxu0 0
        %2528 = vmatpush1.bf16.msra.mxu0 %v2511
        %2529 = vmatprep.subr.bf16.mxu0 0
        %2530 = vmatpush1.bf16.msra.mxu0 %v2512
        %2531 = vmatprep.subr.bf16.mxu0 0
        %2532 = vmatpush1.bf16.msra.mxu0 %v2513
        %2533 = vmatprep.subr.bf16.mxu0 0
        %2534 = vmatpush1.bf16.msra.mxu0 %v2514
        %2535 = vmatprep.subr.bf16.mxu0 0
        %2536 = vmatpush1.bf16.msra.mxu0 %v2515
        %2537 = vmatprep.subr.bf16.mxu0 0
        %2538 = vmatpush1.bf16.msra.mxu0 %v2516
        %2539 = vmatprep.subr.bf16.mxu0 0
        %2540 = vmatpush1.bf16.msra.mxu0 %v2517
        %2541 = vmatprep.subr.bf16.mxu0 0
        %2542 = vmatpush1.bf16.msra.mxu0 %v2518
        %2543 = vmatprep.subr.bf16.mxu0 0
        %2544 = vmatpush1.bf16.msra.mxu0 0
        %2545 = vmatprep.subr.bf16.mxu0 0
        %2546 = vmatpush1.bf16.msra.mxu0 0
        %2547 = vmatprep.subr.bf16.mxu0 0
        %2548 = vmatpush1.bf16.msra.mxu0 0
        %2549 = vmatprep.subr.bf16.mxu0 0
        %2550 = vmatpush1.bf16.msra.mxu0 0
        %2551 = vmatprep.subr.bf16.mxu0 0
        %2552 = vmatpush1.bf16.msra.mxu0 0
        %2553 = vmatprep.subr.bf16.mxu0 0
        %2554 = vmatpush1.bf16.msra.mxu0 0
        %2555 = vmatprep.subr.bf16.mxu0 0
        %2556 = vmatpush1.bf16.msra.mxu0 0
        %2557 = vmatprep.subr.bf16.mxu0 0
        %2558 = vmatpush1.bf16.msra.mxu0 0
        %2559 = vmatprep.mubr.bf16.mxu0 0
        %2560 = vmatmul.mubr.bf16.gmra.mrb[0].mxu0 %v2251
        %v2561 = vpop.f32.mrb[0].mxu0
        %v2562 = vadd.f32 0.0, %v2561
        %v2563 = vpop.f32.mrb[0].mxu0
        %v2564 = vpop.f32.mrb[0].mxu0
        %v2565 = vadd.f32 0.0, %v2564
        %v2566 = vpop.f32.mrb[0].mxu0
        %2567 = vdwg.mxu0
        %v2568 = vadd.f32 %v2473, %v2562
        %v2569 = vadd.f32 %v2476, %v2565
        %v2571 = vlaneseq
        %v2572 = vshrl.u32 %v2571, 7
        %v2573 = vsub.s32 0, %v2572
        %v2574 = vrot.slane %v2300, %v2573
        %v2576 = vadd.f32 %v2568, %v2574
        %v2577 = vadd.f32 %v2569, %v2574
        %v2578 = vunpack.c.l.bf16 %v1733
        %v2579 = vunpack.c.h.bf16 %v1733
        %v2580 = vmax.f32 %v2576, 0.0
        %v2581 = vmax.f32 %v2577, 0.0
        %v2582 = vadd.f32 %v2580, %v2578
        %v2583 = vadd.f32 %v2581, %v2579
        %v2584 = vpack.c.bf16 %v2583, %v2582
        %v2585 = vld [vmem:[#allocation19] sm:$0xf]
        %v2586 = vld [vmem:[#allocation19 + $0x4] sm:$0xf]
        %v2587 = vld [vmem:[#allocation20] sm:$0xf]
        %v2588 = vld [vmem:[#allocation20 + $0x4] sm:$0xf]
        %v2591 = vunpack.c.l.b16 %v2585
        %v2592 = vunpack.c.l.b16 %v2586
        %v2593 = vpack.c.b16 %v2592, %v2591
        %v2595 = vsel %vm1743, %v2593, 0
        %2597 = vmatprep.subr.bf16.mxu0 0
        %2598 = vmatpush1.bf16.msra.mxu0 %v2584
        %2599 = vmatprep.subr.bf16.mxu0 0
        %2600 = vmatpush1.bf16.msra.mxu0 0
        %2601 = vmatprep.subr.bf16.mxu0 0
        %2602 = vmatpush1.bf16.msra.mxu0 0
        %2603 = vmatprep.subr.bf16.mxu0 0
        %2604 = vmatpush1.bf16.msra.mxu0 0
        %2605 = vmatprep.subr.bf16.mxu0 0
        %2606 = vmatpush1.bf16.msra.mxu0 0
        %2607 = vmatprep.subr.bf16.mxu0 0
        %2608 = vmatpush1.bf16.msra.mxu0 0
        %2609 = vmatprep.subr.bf16.mxu0 0
        %2610 = vmatpush1.bf16.msra.mxu0 0
        %2611 = vmatprep.subr.bf16.mxu0 0
        %2612 = vmatpush1.bf16.msra.mxu0 0
        %2613 = vmatprep.subr.bf16.mxu0 0
        %2614 = vmatpush1.bf16.msra.mxu0 0
        %2615 = vmatprep.subr.bf16.mxu0 0
        %2616 = vmatpush1.bf16.msra.mxu0 0
        %2617 = vmatprep.subr.bf16.mxu0 0
        %2618 = vmatpush1.bf16.msra.mxu0 0
        %2619 = vmatprep.subr.bf16.mxu0 0
        %2620 = vmatpush1.bf16.msra.mxu0 0
        %2621 = vmatprep.subr.bf16.mxu0 0
        %2622 = vmatpush1.bf16.msra.mxu0 0
        %2623 = vmatprep.subr.bf16.mxu0 0
        %2624 = vmatpush1.bf16.msra.mxu0 0
        %2625 = vmatprep.subr.bf16.mxu0 0
        %2626 = vmatpush1.bf16.msra.mxu0 0
        %2627 = vmatprep.subr.bf16.mxu0 0
        %2628 = vmatpush1.bf16.msra.mxu0 0
        %2629 = vmatprep.mubr.bf16.mxu0 0
        %2630 = vmatmul.mubr.bf16.gmra.mrb[0].mxu0 %v2595
        %v2631 = vpop.f32.mrb[0].mxu0
        %v2632 = vadd.f32 0.0, %v2631
        %v2633 = vpop.f32.mrb[0].mxu0
        %v2634 = vpop.f32.mrb[0].mxu0
        %v2635 = vadd.f32 0.0, %v2634
        %v2636 = vpop.f32.mrb[0].mxu0
        %2637 = vdwg.mxu0
        %v2638 = vpack.c.bf16 %v2635, %v2632
        %v2641 = vunpack.c.l.b16 %v2587
        %v2642 = vunpack.c.l.b16 %v2588
        %v2643 = vpack.c.b16 %v2642, %v2641
        %v2645 = vsel %vm1743, %v2643, 0
        %2647 = vmatprep.subr.bf16.mxu0 0
        %2648 = vmatpush1.bf16.msra.mxu0 %v2584
        %2649 = vmatprep.subr.bf16.mxu0 0
        %2650 = vmatpush1.bf16.msra.mxu0 0
        %2651 = vmatprep.subr.bf16.mxu0 0
        %2652 = vmatpush1.bf16.msra.mxu0 0
        %2653 = vmatprep.subr.bf16.mxu0 0
        %2654 = vmatpush1.bf16.msra.mxu0 0
        %2655 = vmatprep.subr.bf16.mxu0 0
        %2656 = vmatpush1.bf16.msra.mxu0 0
        %2657 = vmatprep.subr.bf16.mxu0 0
        %2658 = vmatpush1.bf16.msra.mxu0 0
        %2659 = vmatprep.subr.bf16.mxu0 0
        %2660 = vmatpush1.bf16.msra.mxu0 0
        %2661 = vmatprep.subr.bf16.mxu0 0
        %2662 = vmatpush1.bf16.msra.mxu0 0
        %2663 = vmatprep.subr.bf16.mxu0 0
        %2664 = vmatpush1.bf16.msra.mxu0 0
        %2665 = vmatprep.subr.bf16.mxu0 0
        %2666 = vmatpush1.bf16.msra.mxu0 0
        %2667 = vmatprep.subr.bf16.mxu0 0
        %2668 = vmatpush1.bf16.msra.mxu0 0
        %2669 = vmatprep.subr.bf16.mxu0 0
        %2670 = vmatpush1.bf16.msra.mxu0 0
        %2671 = vmatprep.subr.bf16.mxu0 0
        %2672 = vmatpush1.bf16.msra.mxu0 0
        %2673 = vmatprep.subr.bf16.mxu0 0
        %2674 = vmatpush1.bf16.msra.mxu0 0
        %2675 = vmatprep.subr.bf16.mxu0 0
        %2676 = vmatpush1.bf16.msra.mxu0 0
        %2677 = vmatprep.subr.bf16.mxu0 0
        %2678 = vmatpush1.bf16.msra.mxu0 0
        %2679 = vmatprep.mubr.bf16.mxu0 0
        %2680 = vmatmul.mubr.bf16.gmra.mrb[0].mxu0 %v2645
        %v2681 = vpop.f32.mrb[0].mxu0
        %v2682 = vadd.f32 0.0, %v2681
        %v2683 = vpop.f32.mrb[0].mxu0
        %v2684 = vpop.f32.mrb[0].mxu0
        %v2685 = vadd.f32 0.0, %v2684
        %v2686 = vpop.f32.mrb[0].mxu0
        %2687 = vdwg.mxu0
        %v2688 = vpack.c.bf16 %v2685, %v2682
        %v2689 = vld [vmem:[#allocation22] sm:$0xf]
        %v2690 = vld [vmem:[#allocation22 + $0x4] sm:$0xf]
        %v2691 = vld [vmem:[#allocation22 + $0x8] sm:$0xf]
        %v2692 = vld [vmem:[#allocation22 + $0xc] sm:$0xf]
        %v2693 = vld [vmem:[#allocation22 + $0x10] sm:$0xf]
        %v2694 = vld [vmem:[#allocation22 + $0x14] sm:$0xf]
        %v2695 = vld [vmem:[#allocation22 + $0x18] sm:$0xf]
        %v2696 = vld [vmem:[#allocation22 + $0x1c] sm:$0xf]
        %v2697 = vld [vmem:[#allocation22 + $0x20] sm:$0xf]
        %v2698 = vld [vmem:[#allocation22 + $0x24] sm:$0xf]
        %v2699 = vld [vmem:[#allocation22 + $0x28] sm:$0xf]
        %v2700 = vld [vmem:[#allocation22 + $0x2c] sm:$0xf]
        %v2701 = vld [vmem:[#allocation22 + $0x30] sm:$0xf]
        %v2702 = vld [vmem:[#allocation22 + $0x34] sm:$0xf]
        %v2703 = vld [vmem:[#allocation22 + $0x38] sm:$0xf]
        %v2704 = vld [vmem:[#allocation22 + $0x3c] sm:$0xf]
        %v2705 = vld [vmem:[#allocation23] sm:$0xf]
        %v2706 = vld [vmem:[#allocation23 + $0x4] sm:$0xf]
        %v2707 = vld [vmem:[#allocation23 + $0x8] sm:$0xf]
        %v2708 = vld [vmem:[#allocation23 + $0xc] sm:$0xf]
        %v2709 = vld [vmem:[#allocation23 + $0x10] sm:$0xf]
        %v2710 = vld [vmem:[#allocation23 + $0x14] sm:$0xf]
        %v2711 = vld [vmem:[#allocation23 + $0x18] sm:$0xf]
        %v2712 = vld [vmem:[#allocation23 + $0x1c] sm:$0xf]
        %v2713 = vld [vmem:[#allocation23 + $0x20] sm:$0xf]
        %v2714 = vld [vmem:[#allocation23 + $0x24] sm:$0xf]
        %v2715 = vld [vmem:[#allocation23 + $0x28] sm:$0xf]
        %v2716 = vld [vmem:[#allocation23 + $0x2c] sm:$0xf]
        %v2717 = vld [vmem:[#allocation23 + $0x30] sm:$0xf]
        %v2718 = vld [vmem:[#allocation23 + $0x34] sm:$0xf]
        %v2719 = vld [vmem:[#allocation23 + $0x38] sm:$0xf]
        %v2720 = vld [vmem:[#allocation23 + $0x3c] sm:$0xf]
        %v2721 = vld [vmem:[%s35] sm:$0xf]
        %v2722 = vld [vmem:[%s35 + $0x4] sm:$0xf]
        %v2723 = vld [vmem:[%s35 + $0x8] sm:$0xf]
        %v2724 = vld [vmem:[%s35 + $0xc] sm:$0xf]
        %v2725 = vld [vmem:[%s35 + $0x10] sm:$0xf]
        %v2726 = vld [vmem:[%s35 + $0x14] sm:$0xf]
        %v2727 = vld [vmem:[%s35 + $0x18] sm:$0xf]
        %v2728 = vld [vmem:[%s35 + $0x1c] sm:$0xf]
        %v2729 = vld [vmem:[%s35 + $0x20] sm:$0xf]
        %v2730 = vld [vmem:[%s35 + $0x24] sm:$0xf]
        %v2731 = vld [vmem:[%s35 + $0x28] sm:$0xf]
        %v2732 = vld [vmem:[%s35 + $0x2c] sm:$0xf]
        %v2733 = vld [vmem:[%s35 + $0x30] sm:$0xf]
        %v2734 = vld [vmem:[%s35 + $0x34] sm:$0xf]
        %v2735 = vld [vmem:[%s35 + $0x38] sm:$0xf]
        %v2736 = vld [vmem:[%s35 + $0x3c] sm:$0xf]
        %v2737 = vld [vmem:[#allocation25] sm:$0x1]
        %v2754 = vunpack.c.l.b16 %v2705
        %v2755 = vunpack.c.l.b16 %v2706
        %v2756 = vunpack.c.l.b16 %v2707
        %v2757 = vunpack.c.l.b16 %v2708
        %v2758 = vunpack.c.l.b16 %v2709
        %v2759 = vunpack.c.l.b16 %v2710
        %v2760 = vunpack.c.l.b16 %v2711
        %v2761 = vunpack.c.l.b16 %v2712
        %v2762 = vunpack.c.l.b16 %v2713
        %v2763 = vunpack.c.l.b16 %v2714
        %v2764 = vunpack.c.l.b16 %v2715
        %v2765 = vunpack.c.l.b16 %v2716
        %v2766 = vunpack.c.l.b16 %v2717
        %v2767 = vunpack.c.l.b16 %v2718
        %v2768 = vunpack.c.l.b16 %v2719
        %v2769 = vunpack.c.l.b16 %v2720
        %v2770 = vpack.c.b16 %v2755, %v2754
        %v2771 = vpack.c.b16 %v2757, %v2756
        %v2772 = vpack.c.b16 %v2759, %v2758
        %v2773 = vpack.c.b16 %v2761, %v2760
        %v2774 = vpack.c.b16 %v2763, %v2762
        %v2775 = vpack.c.b16 %v2765, %v2764
        %v2776 = vpack.c.b16 %v2767, %v2766
        %v2777 = vpack.c.b16 %v2769, %v2768
        %2786 = vmatprep.subr.bf16.mxu0 0
        %2787 = vmatpush1.bf16.msra.mxu0 %v2770
        %2788 = vmatprep.subr.bf16.mxu0 0
        %2789 = vmatpush1.bf16.msra.mxu0 %v2771
        %2790 = vmatprep.subr.bf16.mxu0 0
        %2791 = vmatpush1.bf16.msra.mxu0 %v2772
        %2792 = vmatprep.subr.bf16.mxu0 0
        %2793 = vmatpush1.bf16.msra.mxu0 %v2773
        %2794 = vmatprep.subr.bf16.mxu0 0
        %2795 = vmatpush1.bf16.msra.mxu0 %v2774
        %2796 = vmatprep.subr.bf16.mxu0 0
        %2797 = vmatpush1.bf16.msra.mxu0 %v2775
        %2798 = vmatprep.subr.bf16.mxu0 0
        %2799 = vmatpush1.bf16.msra.mxu0 %v2776
        %2800 = vmatprep.subr.bf16.mxu0 0
        %2801 = vmatpush1.bf16.msra.mxu0 %v2777
        %2802 = vmatprep.subr.bf16.mxu0 0
        %2803 = vmatpush1.bf16.msra.mxu0 0
        %2804 = vmatprep.subr.bf16.mxu0 0
        %2805 = vmatpush1.bf16.msra.mxu0 0
        %2806 = vmatprep.subr.bf16.mxu0 0
        %2807 = vmatpush1.bf16.msra.mxu0 0
        %2808 = vmatprep.subr.bf16.mxu0 0
        %2809 = vmatpush1.bf16.msra.mxu0 0
        %2810 = vmatprep.subr.bf16.mxu0 0
        %2811 = vmatpush1.bf16.msra.mxu0 0
        %2812 = vmatprep.subr.bf16.mxu0 0
        %2813 = vmatpush1.bf16.msra.mxu0 0
        %2814 = vmatprep.subr.bf16.mxu0 0
        %2815 = vmatpush1.bf16.msra.mxu0 0
        %2816 = vmatprep.subr.bf16.mxu0 0
        %2817 = vmatpush1.bf16.msra.mxu0 0
        %2818 = vmatprep.mubr.bf16.mxu0 0
        %2819 = vmatmul.mubr.bf16.gmra.mrb[0].mxu0 %v2584
        %v2820 = vpop.f32.mrb[0].mxu0
        %v2821 = vadd.f32 0.0, %v2820
        %v2822 = vpop.f32.mrb[0].mxu0
        %v2823 = vpop.f32.mrb[0].mxu0
        %v2824 = vadd.f32 0.0, %v2823
        %v2825 = vpop.f32.mrb[0].mxu0
        %2826 = vdwg.mxu0
        %v2843 = vunpack.c.l.b16 %v2689
        %v2844 = vunpack.c.l.b16 %v2690
        %v2845 = vunpack.c.l.b16 %v2691
        %v2846 = vunpack.c.l.b16 %v2692
        %v2847 = vunpack.c.l.b16 %v2693
        %v2848 = vunpack.c.l.b16 %v2694
        %v2849 = vunpack.c.l.b16 %v2695
        %v2850 = vunpack.c.l.b16 %v2696
        %v2851 = vunpack.c.l.b16 %v2697
        %v2852 = vunpack.c.l.b16 %v2698
        %v2853 = vunpack.c.l.b16 %v2699
        %v2854 = vunpack.c.l.b16 %v2700
        %v2855 = vunpack.c.l.b16 %v2701
        %v2856 = vunpack.c.l.b16 %v2702
        %v2857 = vunpack.c.l.b16 %v2703
        %v2858 = vunpack.c.l.b16 %v2704
        %v2859 = vpack.c.b16 %v2844, %v2843
        %v2860 = vpack.c.b16 %v2846, %v2845
        %v2861 = vpack.c.b16 %v2848, %v2847
        %v2862 = vpack.c.b16 %v2850, %v2849
        %v2863 = vpack.c.b16 %v2852, %v2851
        %v2864 = vpack.c.b16 %v2854, %v2853
        %v2865 = vpack.c.b16 %v2856, %v2855
        %v2866 = vpack.c.b16 %v2858, %v2857
        %2875 = vmatprep.subr.bf16.mxu0 0
        %2876 = vmatpush1.bf16.msra.mxu0 %v2859
        %2877 = vmatprep.subr.bf16.mxu0 0
        %2878 = vmatpush1.bf16.msra.mxu0 %v2860
        %2879 = vmatprep.subr.bf16.mxu0 0
        %2880 = vmatpush1.bf16.msra.mxu0 %v2861
        %2881 = vmatprep.subr.bf16.mxu0 0
        %2882 = vmatpush1.bf16.msra.mxu0 %v2862
        %2883 = vmatprep.subr.bf16.mxu0 0
        %2884 = vmatpush1.bf16.msra.mxu0 %v2863
        %2885 = vmatprep.subr.bf16.mxu0 0
        %2886 = vmatpush1.bf16.msra.mxu0 %v2864
        %2887 = vmatprep.subr.bf16.mxu0 0
        %2888 = vmatpush1.bf16.msra.mxu0 %v2865
        %2889 = vmatprep.subr.bf16.mxu0 0
        %2890 = vmatpush1.bf16.msra.mxu0 %v2866
        %2891 = vmatprep.subr.bf16.mxu0 0
        %2892 = vmatpush1.bf16.msra.mxu0 0
        %2893 = vmatprep.subr.bf16.mxu0 0
        %2894 = vmatpush1.bf16.msra.mxu0 0
        %2895 = vmatprep.subr.bf16.mxu0 0
        %2896 = vmatpush1.bf16.msra.mxu0 0
        %2897 = vmatprep.subr.bf16.mxu0 0
        %2898 = vmatpush1.bf16.msra.mxu0 0
        %2899 = vmatprep.subr.bf16.mxu0 0
        %2900 = vmatpush1.bf16.msra.mxu0 0
        %2901 = vmatprep.subr.bf16.mxu0 0
        %2902 = vmatpush1.bf16.msra.mxu0 0
        %2903 = vmatprep.subr.bf16.mxu0 0
        %2904 = vmatpush1.bf16.msra.mxu0 0
        %2905 = vmatprep.subr.bf16.mxu0 0
        %2906 = vmatpush1.bf16.msra.mxu0 0
        %2907 = vmatprep.mubr.bf16.mxu0 0
        %2908 = vmatmul.mubr.bf16.gmra.mrb[0].mxu0 %v2638
        %v2909 = vpop.f32.mrb[0].mxu0
        %v2910 = vadd.f32 %v2821, %v2909
        %v2911 = vpop.f32.mrb[0].mxu0
        %v2912 = vpop.f32.mrb[0].mxu0
        %v2913 = vadd.f32 %v2824, %v2912
        %v2914 = vpop.f32.mrb[0].mxu0
        %2915 = vdwg.mxu0
        %v2932 = vunpack.c.l.b16 %v2721
        %v2933 = vunpack.c.l.b16 %v2722
        %v2934 = vunpack.c.l.b16 %v2723
        %v2935 = vunpack.c.l.b16 %v2724
        %v2936 = vunpack.c.l.b16 %v2725
        %v2937 = vunpack.c.l.b16 %v2726
        %v2938 = vunpack.c.l.b16 %v2727
        %v2939 = vunpack.c.l.b16 %v2728
        %v2940 = vunpack.c.l.b16 %v2729
        %v2941 = vunpack.c.l.b16 %v2730
        %v2942 = vunpack.c.l.b16 %v2731
        %v2943 = vunpack.c.l.b16 %v2732
        %v2944 = vunpack.c.l.b16 %v2733
        %v2945 = vunpack.c.l.b16 %v2734
        %v2946 = vunpack.c.l.b16 %v2735
        %v2947 = vunpack.c.l.b16 %v2736
        %v2948 = vpack.c.b16 %v2933, %v2932
        %v2949 = vpack.c.b16 %v2935, %v2934
        %v2950 = vpack.c.b16 %v2937, %v2936
        %v2951 = vpack.c.b16 %v2939, %v2938
        %v2952 = vpack.c.b16 %v2941, %v2940
        %v2953 = vpack.c.b16 %v2943, %v2942
        %v2954 = vpack.c.b16 %v2945, %v2944
        %v2955 = vpack.c.b16 %v2947, %v2946
        %2964 = vmatprep.subr.bf16.mxu0 0
        %2965 = vmatpush1.bf16.msra.mxu0 %v2948
        %2966 = vmatprep.subr.bf16.mxu0 0
        %2967 = vmatpush1.bf16.msra.mxu0 %v2949
        %2968 = vmatprep.subr.bf16.mxu0 0
        %2969 = vmatpush1.bf16.msra.mxu0 %v2950
        %2970 = vmatprep.subr.bf16.mxu0 0
        %2971 = vmatpush1.bf16.msra.mxu0 %v2951
        %2972 = vmatprep.subr.bf16.mxu0 0
        %2973 = vmatpush1.bf16.msra.mxu0 %v2952
        %2974 = vmatprep.subr.bf16.mxu0 0
        %2975 = vmatpush1.bf16.msra.mxu0 %v2953
        %2976 = vmatprep.subr.bf16.mxu0 0
        %2977 = vmatpush1.bf16.msra.mxu0 %v2954
        %2978 = vmatprep.subr.bf16.mxu0 0
        %2979 = vmatpush1.bf16.msra.mxu0 %v2955
        %2980 = vmatprep.subr.bf16.mxu0 0
        %2981 = vmatpush1.bf16.msra.mxu0 0
        %2982 = vmatprep.subr.bf16.mxu0 0
        %2983 = vmatpush1.bf16.msra.mxu0 0
        %2984 = vmatprep.subr.bf16.mxu0 0
        %2985 = vmatpush1.bf16.msra.mxu0 0
        %2986 = vmatprep.subr.bf16.mxu0 0
        %2987 = vmatpush1.bf16.msra.mxu0 0
        %2988 = vmatprep.subr.bf16.mxu0 0
        %2989 = vmatpush1.bf16.msra.mxu0 0
        %2990 = vmatprep.subr.bf16.mxu0 0
        %2991 = vmatpush1.bf16.msra.mxu0 0
        %2992 = vmatprep.subr.bf16.mxu0 0
        %2993 = vmatpush1.bf16.msra.mxu0 0
        %2994 = vmatprep.subr.bf16.mxu0 0
        %2995 = vmatpush1.bf16.msra.mxu0 0
        %2996 = vmatprep.mubr.bf16.mxu0 0
        %2997 = vmatmul.mubr.bf16.gmra.mrb[0].mxu0 %v2688
        %v2998 = vpop.f32.mrb[0].mxu0
        %v2999 = vadd.f32 0.0, %v2998
        %v3000 = vpop.f32.mrb[0].mxu0
        %v3001 = vpop.f32.mrb[0].mxu0
        %v3002 = vadd.f32 0.0, %v3001
        %v3003 = vpop.f32.mrb[0].mxu0
        %3004 = vdwg.mxu0
        %v3005 = vadd.f32 %v2910, %v2999
        %v3006 = vadd.f32 %v2913, %v3002
        %v3008 = vlaneseq
        %v3009 = vshrl.u32 %v3008, 7
        %v3010 = vsub.s32 0, %v3009
        %v3011 = vrot.slane %v2737, %v3010
        %v3013 = vadd.f32 %v3005, %v3011
        %v3014 = vadd.f32 %v3006, %v3011
        %v3015 = vmax.f32 %v3013, 0.0
        %v3016 = vmax.f32 %v3014, 0.0
        %v3017 = vpack.c.bf16 %v3016, %v3015
        %3018 = vmatprep.subr.bf16.mxu0 0
        %3019 = vmatpush1.bf16.msra.mxu0 %v3017
        %3020 = vmatprep.subr.bf16.mxu0 0
        %3021 = vmatpush1.bf16.msra.mxu0 0
        %3022 = vmatprep.subr.bf16.mxu0 0
        %3023 = vmatpush1.bf16.msra.mxu0 0
        %3024 = vmatprep.subr.bf16.mxu0 0
        %3025 = vmatpush1.bf16.msra.mxu0 0
        %3026 = vmatprep.subr.bf16.mxu0 0
        %3027 = vmatpush1.bf16.msra.mxu0 0
        %3028 = vmatprep.subr.bf16.mxu0 0
        %3029 = vmatpush1.bf16.msra.mxu0 0
        %3030 = vmatprep.subr.bf16.mxu0 0
        %3031 = vmatpush1.bf16.msra.mxu0 0
        %3032 = vmatprep.subr.bf16.mxu0 0
        %3033 = vmatpush1.bf16.msra.mxu0 0
        %3034 = vmatprep.subr.bf16.mxu0 0
        %3035 = vmatpush1.bf16.msra.mxu0 0
        %3036 = vmatprep.subr.bf16.mxu0 0
        %3037 = vmatpush1.bf16.msra.mxu0 0
        %3038 = vmatprep.subr.bf16.mxu0 0
        %3039 = vmatpush1.bf16.msra.mxu0 0
        %3040 = vmatprep.subr.bf16.mxu0 0
        %3041 = vmatpush1.bf16.msra.mxu0 0
        %3042 = vmatprep.subr.bf16.mxu0 0
        %3043 = vmatpush1.bf16.msra.mxu0 0
        %3044 = vmatprep.subr.bf16.mxu0 0
        %3045 = vmatpush1.bf16.msra.mxu0 0
        %3046 = vmatprep.subr.bf16.mxu0 0
        %3047 = vmatpush1.bf16.msra.mxu0 0
        %3048 = vmatprep.subr.bf16.mxu0 0
        %3049 = vmatpush1.bf16.msra.mxu0 0
        %3050 = vmatprep.mubr.bf16.mxu0 0
        %3051 = vmatmul.mubr.bf16.gmra.mrb[0].mxu0 %v2595
        %v3052 = vpop.f32.mrb[0].mxu0
        %v3053 = vadd.f32 0.0, %v3052
        %v3054 = vpop.f32.mrb[0].mxu0
        %v3055 = vpop.f32.mrb[0].mxu0
        %v3056 = vadd.f32 0.0, %v3055
        %v3057 = vpop.f32.mrb[0].mxu0
        %3058 = vdwg.mxu0
        %v3059 = vpack.c.bf16 %v3056, %v3053
        %3060 = vmatprep.subr.bf16.mxu0 0
        %3061 = vmatpush1.bf16.msra.mxu0 %v3017
        %3062 = vmatprep.subr.bf16.mxu0 0
        %3063 = vmatpush1.bf16.msra.mxu0 0
        %3064 = vmatprep.subr.bf16.mxu0 0
        %3065 = vmatpush1.bf16.msra.mxu0 0
        %3066 = vmatprep.subr.bf16.mxu0 0
        %3067 = vmatpush1.bf16.msra.mxu0 0
        %3068 = vmatprep.subr.bf16.mxu0 0
        %3069 = vmatpush1.bf16.msra.mxu0 0
        %3070 = vmatprep.subr.bf16.mxu0 0
        %3071 = vmatpush1.bf16.msra.mxu0 0
        %3072 = vmatprep.subr.bf16.mxu0 0
        %3073 = vmatpush1.bf16.msra.mxu0 0
        %3074 = vmatprep.subr.bf16.mxu0 0
        %3075 = vmatpush1.bf16.msra.mxu0 0
        %3076 = vmatprep.subr.bf16.mxu0 0
        %3077 = vmatpush1.bf16.msra.mxu0 0
        %3078 = vmatprep.subr.bf16.mxu0 0
        %3079 = vmatpush1.bf16.msra.mxu0 0
        %3080 = vmatprep.subr.bf16.mxu0 0
        %3081 = vmatpush1.bf16.msra.mxu0 0
        %3082 = vmatprep.subr.bf16.mxu0 0
        %3083 = vmatpush1.bf16.msra.mxu0 0
        %3084 = vmatprep.subr.bf16.mxu0 0
        %3085 = vmatpush1.bf16.msra.mxu0 0
        %3086 = vmatprep.subr.bf16.mxu0 0
        %3087 = vmatpush1.bf16.msra.mxu0 0
        %3088 = vmatprep.subr.bf16.mxu0 0
        %3089 = vmatpush1.bf16.msra.mxu0 0
        %3090 = vmatprep.subr.bf16.mxu0 0
        %3091 = vmatpush1.bf16.msra.mxu0 0
        %3092 = vmatprep.mubr.bf16.mxu0 0
        %3093 = vmatmul.mubr.bf16.gmra.mrb[0].mxu0 %v2645
        %v3094 = vpop.f32.mrb[0].mxu0
        %v3095 = vadd.f32 0.0, %v3094
        %v3096 = vpop.f32.mrb[0].mxu0
        %v3097 = vpop.f32.mrb[0].mxu0
        %v3098 = vadd.f32 0.0, %v3097
        %v3099 = vpop.f32.mrb[0].mxu0
        %3100 = vdwg.mxu0
        %v3101 = vpack.c.bf16 %v3098, %v3095
        %v3102 = vld [vmem:[#allocation26] sm:$0xf]
        %v3103 = vld [vmem:[#allocation26 + $0x4] sm:$0xf]
        %v3104 = vld [vmem:[#allocation26 + $0x8] sm:$0xf]
        %v3105 = vld [vmem:[#allocation26 + $0xc] sm:$0xf]
        %v3106 = vld [vmem:[#allocation26 + $0x10] sm:$0xf]
        %v3107 = vld [vmem:[#allocation26 + $0x14] sm:$0xf]
        %v3108 = vld [vmem:[#allocation26 + $0x18] sm:$0xf]
        %v3109 = vld [vmem:[#allocation26 + $0x1c] sm:$0xf]
        %v3110 = vld [vmem:[#allocation26 + $0x20] sm:$0xf]
        %v3111 = vld [vmem:[#allocation26 + $0x24] sm:$0xf]
        %v3112 = vld [vmem:[#allocation26 + $0x28] sm:$0xf]
        %v3113 = vld [vmem:[#allocation26 + $0x2c] sm:$0xf]
        %v3114 = vld [vmem:[#allocation26 + $0x30] sm:$0xf]
        %v3115 = vld [vmem:[#allocation26 + $0x34] sm:$0xf]
        %v3116 = vld [vmem:[#allocation26 + $0x38] sm:$0xf]
        %v3117 = vld [vmem:[#allocation26 + $0x3c] sm:$0xf]
        %v3118 = vld [vmem:[#allocation28] sm:$0xf]
        %v3119 = vld [vmem:[#allocation28 + $0x4] sm:$0xf]
        %v3120 = vld [vmem:[#allocation28 + $0x8] sm:$0xf]
        %v3121 = vld [vmem:[#allocation28 + $0xc] sm:$0xf]
        %v3122 = vld [vmem:[#allocation28 + $0x10] sm:$0xf]
        %v3123 = vld [vmem:[#allocation28 + $0x14] sm:$0xf]
        %v3124 = vld [vmem:[#allocation28 + $0x18] sm:$0xf]
        %v3125 = vld [vmem:[#allocation28 + $0x1c] sm:$0xf]
        %v3126 = vld [vmem:[#allocation28 + $0x20] sm:$0xf]
        %v3127 = vld [vmem:[#allocation28 + $0x24] sm:$0xf]
        %v3128 = vld [vmem:[#allocation28 + $0x28] sm:$0xf]
        %v3129 = vld [vmem:[#allocation28 + $0x2c] sm:$0xf]
        %v3130 = vld [vmem:[#allocation28 + $0x30] sm:$0xf]
        %v3131 = vld [vmem:[#allocation28 + $0x34] sm:$0xf]
        %v3132 = vld [vmem:[#allocation28 + $0x38] sm:$0xf]
        %v3133 = vld [vmem:[#allocation28 + $0x3c] sm:$0xf]
        %v3134 = vld [vmem:[#allocation29] sm:$0xf]
        %v3135 = vld [vmem:[#allocation29 + $0x4] sm:$0xf]
        %v3136 = vld [vmem:[#allocation29 + $0x8] sm:$0xf]
        %v3137 = vld [vmem:[#allocation29 + $0xc] sm:$0xf]
        %v3138 = vld [vmem:[#allocation29 + $0x10] sm:$0xf]
        %v3139 = vld [vmem:[#allocation29 + $0x14] sm:$0xf]
        %v3140 = vld [vmem:[#allocation29 + $0x18] sm:$0xf]
        %v3141 = vld [vmem:[#allocation29 + $0x1c] sm:$0xf]
        %v3142 = vld [vmem:[#allocation29 + $0x20] sm:$0xf]
        %v3143 = vld [vmem:[#allocation29 + $0x24] sm:$0xf]
        %v3144 = vld [vmem:[#allocation29 + $0x28] sm:$0xf]
        %v3145 = vld [vmem:[#allocation29 + $0x2c] sm:$0xf]
        %v3146 = vld [vmem:[#allocation29 + $0x30] sm:$0xf]
        %v3147 = vld [vmem:[#allocation29 + $0x34] sm:$0xf]
        %v3148 = vld [vmem:[#allocation29 + $0x38] sm:$0xf]
        %v3149 = vld [vmem:[#allocation29 + $0x3c] sm:$0xf]
        %v3150 = vld [vmem:[#allocation31] sm:$0x1]
        %v3167 = vunpack.c.l.b16 %v3118
        %v3168 = vunpack.c.l.b16 %v3119
        %v3169 = vunpack.c.l.b16 %v3120
        %v3170 = vunpack.c.l.b16 %v3121
        %v3171 = vunpack.c.l.b16 %v3122
        %v3172 = vunpack.c.l.b16 %v3123
        %v3173 = vunpack.c.l.b16 %v3124
        %v3174 = vunpack.c.l.b16 %v3125
        %v3175 = vunpack.c.l.b16 %v3126
        %v3176 = vunpack.c.l.b16 %v3127
        %v3177 = vunpack.c.l.b16 %v3128
        %v3178 = vunpack.c.l.b16 %v3129
        %v3179 = vunpack.c.l.b16 %v3130
        %v3180 = vunpack.c.l.b16 %v3131
        %v3181 = vunpack.c.l.b16 %v3132
        %v3182 = vunpack.c.l.b16 %v3133
        %v3183 = vpack.c.b16 %v3168, %v3167
        %v3184 = vpack.c.b16 %v3170, %v3169
        %v3185 = vpack.c.b16 %v3172, %v3171
        %v3186 = vpack.c.b16 %v3174, %v3173
        %v3187 = vpack.c.b16 %v3176, %v3175
        %v3188 = vpack.c.b16 %v3178, %v3177
        %v3189 = vpack.c.b16 %v3180, %v3179
        %v3190 = vpack.c.b16 %v3182, %v3181
        %3199 = vmatprep.subr.bf16.mxu0 0
        %3200 = vmatpush1.bf16.msra.mxu0 %v3183
        %3201 = vmatprep.subr.bf16.mxu0 0
        %3202 = vmatpush1.bf16.msra.mxu0 %v3184
        %3203 = vmatprep.subr.bf16.mxu0 0
        %3204 = vmatpush1.bf16.msra.mxu0 %v3185
        %3205 = vmatprep.subr.bf16.mxu0 0
        %3206 = vmatpush1.bf16.msra.mxu0 %v3186
        %3207 = vmatprep.subr.bf16.mxu0 0
        %3208 = vmatpush1.bf16.msra.mxu0 %v3187
        %3209 = vmatprep.subr.bf16.mxu0 0
        %3210 = vmatpush1.bf16.msra.mxu0 %v3188
        %3211 = vmatprep.subr.bf16.mxu0 0
        %3212 = vmatpush1.bf16.msra.mxu0 %v3189
        %3213 = vmatprep.subr.bf16.mxu0 0
        %3214 = vmatpush1.bf16.msra.mxu0 %v3190
        %3215 = vmatprep.subr.bf16.mxu0 0
        %3216 = vmatpush1.bf16.msra.mxu0 0
        %3217 = vmatprep.subr.bf16.mxu0 0
        %3218 = vmatpush1.bf16.msra.mxu0 0
        %3219 = vmatprep.subr.bf16.mxu0 0
        %3220 = vmatpush1.bf16.msra.mxu0 0
        %3221 = vmatprep.subr.bf16.mxu0 0
        %3222 = vmatpush1.bf16.msra.mxu0 0
        %3223 = vmatprep.subr.bf16.mxu0 0
        %3224 = vmatpush1.bf16.msra.mxu0 0
        %3225 = vmatprep.subr.bf16.mxu0 0
        %3226 = vmatpush1.bf16.msra.mxu0 0
        %3227 = vmatprep.subr.bf16.mxu0 0
        %3228 = vmatpush1.bf16.msra.mxu0 0
        %3229 = vmatprep.subr.bf16.mxu0 0
        %3230 = vmatpush1.bf16.msra.mxu0 0
        %3231 = vmatprep.mubr.bf16.mxu0 0
        %3232 = vmatmul.mubr.bf16.gmra.mrb[0].mxu0 %v3017
        %v3233 = vpop.f32.mrb[0].mxu0
        %v3234 = vadd.f32 0.0, %v3233
        %v3235 = vpop.f32.mrb[0].mxu0
        %v3236 = vpop.f32.mrb[0].mxu0
        %v3237 = vadd.f32 0.0, %v3236
        %v3238 = vpop.f32.mrb[0].mxu0
        %3239 = vdwg.mxu0
        %v3256 = vunpack.c.l.b16 %v3102
        %v3257 = vunpack.c.l.b16 %v3103
        %v3258 = vunpack.c.l.b16 %v3104
        %v3259 = vunpack.c.l.b16 %v3105
        %v3260 = vunpack.c.l.b16 %v3106
        %v3261 = vunpack.c.l.b16 %v3107
        %v3262 = vunpack.c.l.b16 %v3108
        %v3263 = vunpack.c.l.b16 %v3109
        %v3264 = vunpack.c.l.b16 %v3110
        %v3265 = vunpack.c.l.b16 %v3111
        %v3266 = vunpack.c.l.b16 %v3112
        %v3267 = vunpack.c.l.b16 %v3113
        %v3268 = vunpack.c.l.b16 %v3114
        %v3269 = vunpack.c.l.b16 %v3115
        %v3270 = vunpack.c.l.b16 %v3116
        %v3271 = vunpack.c.l.b16 %v3117
        %v3272 = vpack.c.b16 %v3257, %v3256
        %v3273 = vpack.c.b16 %v3259, %v3258
        %v3274 = vpack.c.b16 %v3261, %v3260
        %v3275 = vpack.c.b16 %v3263, %v3262
        %v3276 = vpack.c.b16 %v3265, %v3264
        %v3277 = vpack.c.b16 %v3267, %v3266
        %v3278 = vpack.c.b16 %v3269, %v3268
        %v3279 = vpack.c.b16 %v3271, %v3270
        %3288 = vmatprep.subr.bf16.mxu0 0
        %3289 = vmatpush1.bf16.msra.mxu0 %v3272
        %3290 = vmatprep.subr.bf16.mxu0 0
        %3291 = vmatpush1.bf16.msra.mxu0 %v3273
        %3292 = vmatprep.subr.bf16.mxu0 0
        %3293 = vmatpush1.bf16.msra.mxu0 %v3274
        %3294 = vmatprep.subr.bf16.mxu0 0
        %3295 = vmatpush1.bf16.msra.mxu0 %v3275
        %3296 = vmatprep.subr.bf16.mxu0 0
        %3297 = vmatpush1.bf16.msra.mxu0 %v3276
        %3298 = vmatprep.subr.bf16.mxu0 0
        %3299 = vmatpush1.bf16.msra.mxu0 %v3277
        %3300 = vmatprep.subr.bf16.mxu0 0
        %3301 = vmatpush1.bf16.msra.mxu0 %v3278
        %3302 = vmatprep.subr.bf16.mxu0 0
        %3303 = vmatpush1.bf16.msra.mxu0 %v3279
        %3304 = vmatprep.subr.bf16.mxu0 0
        %3305 = vmatpush1.bf16.msra.mxu0 0
        %3306 = vmatprep.subr.bf16.mxu0 0
        %3307 = vmatpush1.bf16.msra.mxu0 0
        %3308 = vmatprep.subr.bf16.mxu0 0
        %3309 = vmatpush1.bf16.msra.mxu0 0
        %3310 = vmatprep.subr.bf16.mxu0 0
        %3311 = vmatpush1.bf16.msra.mxu0 0
        %3312 = vmatprep.subr.bf16.mxu0 0
        %3313 = vmatpush1.bf16.msra.mxu0 0
        %3314 = vmatprep.subr.bf16.mxu0 0
        %3315 = vmatpush1.bf16.msra.mxu0 0
        %3316 = vmatprep.subr.bf16.mxu0 0
        %3317 = vmatpush1.bf16.msra.mxu0 0
        %3318 = vmatprep.subr.bf16.mxu0 0
        %3319 = vmatpush1.bf16.msra.mxu0 0
        %3320 = vmatprep.mubr.bf16.mxu0 0
        %3321 = vmatmul.mubr.bf16.gmra.mrb[0].mxu0 %v3059
        %v3322 = vpop.f32.mrb[0].mxu0
        %v3323 = vadd.f32 %v3234, %v3322
        %v3324 = vpop.f32.mrb[0].mxu0
        %v3325 = vpop.f32.mrb[0].mxu0
        %v3326 = vadd.f32 %v3237, %v3325
        %v3327 = vpop.f32.mrb[0].mxu0
        %3328 = vdwg.mxu0
        %v3345 = vunpack.c.l.b16 %v3134
        %v3346 = vunpack.c.l.b16 %v3135
        %v3347 = vunpack.c.l.b16 %v3136
        %v3348 = vunpack.c.l.b16 %v3137
        %v3349 = vunpack.c.l.b16 %v3138
        %v3350 = vunpack.c.l.b16 %v3139
        %v3351 = vunpack.c.l.b16 %v3140
        %v3352 = vunpack.c.l.b16 %v3141
        %v3353 = vunpack.c.l.b16 %v3142
        %v3354 = vunpack.c.l.b16 %v3143
        %v3355 = vunpack.c.l.b16 %v3144
        %v3356 = vunpack.c.l.b16 %v3145
        %v3357 = vunpack.c.l.b16 %v3146
        %v3358 = vunpack.c.l.b16 %v3147
        %v3359 = vunpack.c.l.b16 %v3148
        %v3360 = vunpack.c.l.b16 %v3149
        %v3361 = vpack.c.b16 %v3346, %v3345
        %v3362 = vpack.c.b16 %v3348, %v3347
        %v3363 = vpack.c.b16 %v3350, %v3349
        %v3364 = vpack.c.b16 %v3352, %v3351
        %v3365 = vpack.c.b16 %v3354, %v3353
        %v3366 = vpack.c.b16 %v3356, %v3355
        %v3367 = vpack.c.b16 %v3358, %v3357
        %v3368 = vpack.c.b16 %v3360, %v3359
        %3377 = vmatprep.subr.bf16.mxu0 0
        %3378 = vmatpush1.bf16.msra.mxu0 %v3361
        %3379 = vmatprep.subr.bf16.mxu0 0
        %3380 = vmatpush1.bf16.msra.mxu0 %v3362
        %3381 = vmatprep.subr.bf16.mxu0 0
        %3382 = vmatpush1.bf16.msra.mxu0 %v3363
        %3383 = vmatprep.subr.bf16.mxu0 0
        %3384 = vmatpush1.bf16.msra.mxu0 %v3364
        %3385 = vmatprep.subr.bf16.mxu0 0
        %3386 = vmatpush1.bf16.msra.mxu0 %v3365
        %3387 = vmatprep.subr.bf16.mxu0 0
        %3388 = vmatpush1.bf16.msra.mxu0 %v3366
        %3389 = vmatprep.subr.bf16.mxu0 0
        %3390 = vmatpush1.bf16.msra.mxu0 %v3367
        %3391 = vmatprep.subr.bf16.mxu0 0
        %3392 = vmatpush1.bf16.msra.mxu0 %v3368
        %3393 = vmatprep.subr.bf16.mxu0 0
        %3394 = vmatpush1.bf16.msra.mxu0 0
        %3395 = vmatprep.subr.bf16.mxu0 0
        %3396 = vmatpush1.bf16.msra.mxu0 0
        %3397 = vmatprep.subr.bf16.mxu0 0
        %3398 = vmatpush1.bf16.msra.mxu0 0
        %3399 = vmatprep.subr.bf16.mxu0 0
        %3400 = vmatpush1.bf16.msra.mxu0 0
        %3401 = vmatprep.subr.bf16.mxu0 0
        %3402 = vmatpush1.bf16.msra.mxu0 0
        %3403 = vmatprep.subr.bf16.mxu0 0
        %3404 = vmatpush1.bf16.msra.mxu0 0
        %3405 = vmatprep.subr.bf16.mxu0 0
        %3406 = vmatpush1.bf16.msra.mxu0 0
        %3407 = vmatprep.subr.bf16.mxu0 0
        %3408 = vmatpush1.bf16.msra.mxu0 0
        %3409 = vmatprep.mubr.bf16.mxu0 0
        %3410 = vmatmul.mubr.bf16.gmra.mrb[0].mxu0 %v3101
        %v3411 = vpop.f32.mrb[0].mxu0
        %v3412 = vadd.f32 0.0, %v3411
        %v3413 = vpop.f32.mrb[0].mxu0
        %v3414 = vpop.f32.mrb[0].mxu0
        %v3415 = vadd.f32 0.0, %v3414
        %v3416 = vpop.f32.mrb[0].mxu0
        %3417 = vdwg.mxu0
        %v3418 = vadd.f32 %v3323, %v3412
        %v3419 = vadd.f32 %v3326, %v3415
        %v3421 = vlaneseq
        %v3422 = vshrl.u32 %v3421, 7
        %v3423 = vsub.s32 0, %v3422
        %v3424 = vrot.slane %v3150, %v3423
        %v3426 = vadd.f32 %v3418, %v3424
        %v3427 = vadd.f32 %v3419, %v3424
        %v3428 = vunpack.c.l.bf16 %v2584
        %v3429 = vunpack.c.h.bf16 %v2584
        %v3430 = vmax.f32 %v3426, 0.0
        %v3431 = vmax.f32 %v3427, 0.0
        %v3432 = vadd.f32 %v3430, %v3428
        %v3433 = vadd.f32 %v3431, %v3429
        %v3434 = vld [vmem:[#allocation32] sm:$0xff]
        %v3435 = vld [vmem:[%s49] sm:$0xf]
        %v3436 = vld [vmem:[%s49 + $0x4] sm:$0xf]
        %v3437 = vld [vmem:[%s49 + $0x8] sm:$0xf]
        %v3438 = vld [vmem:[%s49 + $0xc] sm:$0xf]
        %v3439 = vld [vmem:[%s49 + $0x10] sm:$0xf]
        %v3440 = vld [vmem:[%s49 + $0x14] sm:$0xf]
        %v3441 = vld [vmem:[%s49 + $0x18] sm:$0xf]
        %v3442 = vld [vmem:[%s49 + $0x1c] sm:$0xf]
        %v3443 = vld [vmem:[%s49 + $0x20] sm:$0xf]
        %v3444 = vld [vmem:[%s49 + $0x24] sm:$0xf]
        %v3445 = vld [vmem:[%s49 + $0x28] sm:$0xf]
        %v3446 = vld [vmem:[%s49 + $0x2c] sm:$0xf]
        %v3447 = vld [vmem:[%s49 + $0x30] sm:$0xf]
        %v3448 = vld [vmem:[%s49 + $0x34] sm:$0xf]
        %v3449 = vld [vmem:[%s49 + $0x38] sm:$0xf]
        %v3450 = vld [vmem:[%s49 + $0x3c] sm:$0xf]
        %v3451 = vpack.c.bf16 %v3433, %v3432
        %v3468 = vunpack.c.l.b16 %v3435
        %v3469 = vunpack.c.l.b16 %v3436
        %v3470 = vunpack.c.l.b16 %v3437
        %v3471 = vunpack.c.l.b16 %v3438
        %v3472 = vunpack.c.l.b16 %v3439
        %v3473 = vunpack.c.l.b16 %v3440
        %v3474 = vunpack.c.l.b16 %v3441
        %v3475 = vunpack.c.l.b16 %v3442
        %v3476 = vunpack.c.l.b16 %v3443
        %v3477 = vunpack.c.l.b16 %v3444
        %v3478 = vunpack.c.l.b16 %v3445
        %v3479 = vunpack.c.l.b16 %v3446
        %v3480 = vunpack.c.l.b16 %v3447
        %v3481 = vunpack.c.l.b16 %v3448
        %v3482 = vunpack.c.l.b16 %v3449
        %v3483 = vunpack.c.l.b16 %v3450
        %v3484 = vpack.c.b16 %v3469, %v3468
        %v3485 = vpack.c.b16 %v3471, %v3470
        %v3486 = vpack.c.b16 %v3473, %v3472
        %v3487 = vpack.c.b16 %v3475, %v3474
        %v3488 = vpack.c.b16 %v3477, %v3476
        %v3489 = vpack.c.b16 %v3479, %v3478
        %v3490 = vpack.c.b16 %v3481, %v3480
        %v3491 = vpack.c.b16 %v3483, %v3482
        %3500 = vmatprep.subr.bf16.mxu0 0
        %3501 = vmatpush1.bf16.msra.mxu0 %v3484
        %3502 = vmatprep.subr.bf16.mxu0 0
        %3503 = vmatpush1.bf16.msra.mxu0 %v3485
        %3504 = vmatprep.subr.bf16.mxu0 0
        %3505 = vmatpush1.bf16.msra.mxu0 %v3486
        %3506 = vmatprep.subr.bf16.mxu0 0
        %3507 = vmatpush1.bf16.msra.mxu0 %v3487
        %3508 = vmatprep.subr.bf16.mxu0 0
        %3509 = vmatpush1.bf16.msra.mxu0 %v3488
        %3510 = vmatprep.subr.bf16.mxu0 0
        %3511 = vmatpush1.bf16.msra.mxu0 %v3489
        %3512 = vmatprep.subr.bf16.mxu0 0
        %3513 = vmatpush1.bf16.msra.mxu0 %v3490
        %3514 = vmatprep.subr.bf16.mxu0 0
        %3515 = vmatpush1.bf16.msra.mxu0 %v3491
        %3516 = vmatprep.subr.bf16.mxu0 0
        %3517 = vmatpush1.bf16.msra.mxu0 0
        %3518 = vmatprep.subr.bf16.mxu0 0
        %3519 = vmatpush1.bf16.msra.mxu0 0
        %3520 = vmatprep.subr.bf16.mxu0 0
        %3521 = vmatpush1.bf16.msra.mxu0 0
        %3522 = vmatprep.subr.bf16.mxu0 0
        %3523 = vmatpush1.bf16.msra.mxu0 0
        %3524 = vmatprep.subr.bf16.mxu0 0
        %3525 = vmatpush1.bf16.msra.mxu0 0
        %3526 = vmatprep.subr.bf16.mxu0 0
        %3527 = vmatpush1.bf16.msra.mxu0 0
        %3528 = vmatprep.subr.bf16.mxu0 0
        %3529 = vmatpush1.bf16.msra.mxu0 0
        %3530 = vmatprep.subr.bf16.mxu0 0
        %3531 = vmatpush1.bf16.msra.mxu0 0
        %3532 = vmatprep.mubr.bf16.mxu0 0
        %3533 = vmatmul.mubr.bf16.gmra.mrb[0].mxu0 %v3451
        %v3534 = vpop.f32.mrb[0].mxu0
        %v3535 = vadd.f32 0.0, %v3534
        %v3536 = vpop.f32.mrb[0].mxu0
        %v3537 = vpop.f32.mrb[0].mxu0
        %v3538 = vadd.f32 0.0, %v3537
        %v3539 = vpop.f32.mrb[0].mxu0
        %3540 = vdwg.mxu0
        %v3542 = vsel %vm1743, %v3434, 0
        %3544 = vmatprep.subr.mxu0 0.0
        %3545 = vmatpush1.msra.mxu0 %v3535
        %3546 = vmatprep.subr.mxu0 0.0
        %3547 = vmatpush1.msra.mxu0 %v3538
        %3548 = vmatprep.subr.mxu0 0.0
        %3549 = vmatpush1.msra.mxu0 0.0
        %3550 = vmatprep.subr.mxu0 0.0
        %3551 = vmatpush1.msra.mxu0 0.0
        %3552 = vmatprep.subr.mxu0 0.0
        %3553 = vmatpush1.msra.mxu0 0.0
        %3554 = vmatprep.subr.mxu0 0.0
        %3555 = vmatpush1.msra.mxu0 0.0
        %3556 = vmatprep.subr.mxu0 0.0
        %3557 = vmatpush1.msra.mxu0 0.0
        %3558 = vmatprep.subr.mxu0 0.0
        %3559 = vmatpush1.msra.mxu0 0.0
        %3560 = vmatprep.subr.mxu0 0.0
        %3561 = vmatpush1.msra.mxu0 0.0
        %3562 = vmatprep.subr.mxu0 0.0
        %3563 = vmatpush1.msra.mxu0 0.0
        %3564 = vmatprep.subr.mxu0 0.0
        %3565 = vmatpush1.msra.mxu0 0.0
        %3566 = vmatprep.subr.mxu0 0.0
        %3567 = vmatpush1.msra.mxu0 0.0
        %3568 = vmatprep.subr.mxu0 0.0
        %3569 = vmatpush1.msra.mxu0 0.0
        %3570 = vmatprep.subr.mxu0 0.0
        %3571 = vmatpush1.msra.mxu0 0.0
        %3572 = vmatprep.subr.mxu0 0.0
        %3573 = vmatpush1.msra.mxu0 0.0
        %3574 = vmatprep.subr.mxu0 0.0
        %3575 = vmatpush1.msra.mxu0 0.0
        %3576 = vmatprep.subr.mxu0 0.0
        %3577 = vmatpush1.msra.mxu0 0.0
        %3578 = vmatprep.subr.mxu0 0.0
        %3579 = vmatpush1.msra.mxu0 0.0
        %3580 = vmatprep.subr.mxu0 0.0
        %3581 = vmatpush1.msra.mxu0 0.0
        %3582 = vmatprep.subr.mxu0 0.0
        %3583 = vmatpush1.msra.mxu0 0.0
        %3584 = vmatprep.subr.mxu0 0.0
        %3585 = vmatpush1.msra.mxu0 0.0
        %3586 = vmatprep.subr.mxu0 0.0
        %3587 = vmatpush1.msra.mxu0 0.0
        %3588 = vmatprep.subr.mxu0 0.0
        %3589 = vmatpush1.msra.mxu0 0.0
        %3590 = vmatprep.subr.mxu0 0.0
        %3591 = vmatpush1.msra.mxu0 0.0
        %3592 = vmatprep.subr.mxu0 0.0
        %3593 = vmatpush1.msra.mxu0 0.0
        %3594 = vmatprep.subr.mxu0 0.0
        %3595 = vmatpush1.msra.mxu0 0.0
        %3596 = vmatprep.subr.mxu0 0.0
        %3597 = vmatpush1.msra.mxu0 0.0
        %3598 = vmatprep.subr.mxu0 0.0
        %3599 = vmatpush1.msra.mxu0 0.0
        %3600 = vmatprep.subr.mxu0 0.0
        %3601 = vmatpush1.msra.mxu0 0.0
        %3602 = vmatprep.subr.mxu0 0.0
        %3603 = vmatpush1.msra.mxu0 0.0
        %3604 = vmatprep.subr.mxu0 0.0
        %3605 = vmatpush1.msra.mxu0 0.0
        %3606 = vmatprep.subr.mxu0 0.0
        %3607 = vmatpush1.msra.mxu0 0.0
        %3608 = vmatprep.mubr.f32.mxu0 0.0
        %3609 = vmatmul.mubr.f32.gmra.mrb[0].mxu0 %v3542
        %v3610 = vpop.f32.mrb[0].mxu0
        %v3611 = vadd.f32 0.0, %v3610
        %v3612 = vpop.f32.mrb[0].mxu0
        %3613 = vdwg.mxu0
        %3614 = vst.msk [vmem:[%s1633] sm:$0xff] %vm1688, %v3611
        %v3615 = vpack.c.bf16 %v3611, %v3611
        %v3616 = vld [vmem:[#allocation34] sm:$0xf]
        %v3617 = vld [vmem:[#allocation35] sm:$0xf]
        %vm3618 = vcmask 64512
        %v3620 = vsel %vm3618, %v3616, 0
        %vm3622 = vcmask 1043456
        %v3624 = vsel %vm3622, %v3615, 0
        %3626 = vmatprep.subr.bf16.mxu0 0
        %3627 = vmatpush1.bf16.msra.mxu0 %v3624
        %3628 = vmatprep.subr.bf16.mxu0 0
        %3629 = vmatpush1.bf16.msra.mxu0 0
        %3630 = vmatprep.subr.bf16.mxu0 0
        %3631 = vmatpush1.bf16.msra.mxu0 0
        %3632 = vmatprep.subr.bf16.mxu0 0
        %3633 = vmatpush1.bf16.msra.mxu0 0
        %3634 = vmatprep.subr.bf16.mxu0 0
        %3635 = vmatpush1.bf16.msra.mxu0 0
        %3636 = vmatprep.subr.bf16.mxu0 0
        %3637 = vmatpush1.bf16.msra.mxu0 0
        %3638 = vmatprep.subr.bf16.mxu0 0
        %3639 = vmatpush1.bf16.msra.mxu0 0
        %3640 = vmatprep.subr.bf16.mxu0 0
        %3641 = vmatpush1.bf16.msra.mxu0 0
        %3642 = vmatprep.subr.bf16.mxu0 0
        %3643 = vmatpush1.bf16.msra.mxu0 0
        %3644 = vmatprep.subr.bf16.mxu0 0
        %3645 = vmatpush1.bf16.msra.mxu0 0
        %3646 = vmatprep.subr.bf16.mxu0 0
        %3647 = vmatpush1.bf16.msra.mxu0 0
        %3648 = vmatprep.subr.bf16.mxu0 0
        %3649 = vmatpush1.bf16.msra.mxu0 0
        %3650 = vmatprep.subr.bf16.mxu0 0
        %3651 = vmatpush1.bf16.msra.mxu0 0
        %3652 = vmatprep.subr.bf16.mxu0 0
        %3653 = vmatpush1.bf16.msra.mxu0 0
        %3654 = vmatprep.subr.bf16.mxu0 0
        %3655 = vmatpush1.bf16.msra.mxu0 0
        %3656 = vmatprep.subr.bf16.mxu0 0
        %3657 = vmatpush1.bf16.msra.mxu0 0
        %3658 = vmatprep.mubr.bf16.mxu0 0
        %3659 = vmatmul.mubr.bf16.gmra.mrb[0].mxu0 %v3620
        %v3660 = vpop.f32.mrb[0].mxu0
        %v3661 = vadd.f32 0.0, %v3660
        %v3662 = vpop.f32.mrb[0].mxu0
        %v3663 = vpop.f32.mrb[0].mxu0
        %v3664 = vpop.f32.mrb[0].mxu0
        %3665 = vdwg.mxu0
        %v3666 = vpack.c.bf16 %v3661, %v3661
        %v3668 = vsel %vm3618, %v3617, 0
        %3670 = vmatprep.subr.bf16.mxu0 0
        %3671 = vmatpush1.bf16.msra.mxu0 %v3624
        %3672 = vmatprep.subr.bf16.mxu0 0
        %3673 = vmatpush1.bf16.msra.mxu0 0
        %3674 = vmatprep.subr.bf16.mxu0 0
        %3675 = vmatpush1.bf16.msra.mxu0 0
        %3676 = vmatprep.subr.bf16.mxu0 0
        %3677 = vmatpush1.bf16.msra.mxu0 0
        %3678 = vmatprep.subr.bf16.mxu0 0
        %3679 = vmatpush1.bf16.msra.mxu0 0
        %3680 = vmatprep.subr.bf16.mxu0 0
        %3681 = vmatpush1.bf16.msra.mxu0 0
        %3682 = vmatprep.subr.bf16.mxu0 0
        %3683 = vmatpush1.bf16.msra.mxu0 0
        %3684 = vmatprep.subr.bf16.mxu0 0
        %3685 = vmatpush1.bf16.msra.mxu0 0
        %3686 = vmatprep.subr.bf16.mxu0 0
        %3687 = vmatpush1.bf16.msra.mxu0 0
        %3688 = vmatprep.subr.bf16.mxu0 0
        %3689 = vmatpush1.bf16.msra.mxu0 0
        %3690 = vmatprep.subr.bf16.mxu0 0
        %3691 = vmatpush1.bf16.msra.mxu0 0
        %3692 = vmatprep.subr.bf16.mxu0 0
        %3693 = vmatpush1.bf16.msra.mxu0 0
        %3694 = vmatprep.subr.bf16.mxu0 0
        %3695 = vmatpush1.bf16.msra.mxu0 0
        %3696 = vmatprep.subr.bf16.mxu0 0
        %3697 = vmatpush1.bf16.msra.mxu0 0
        %3698 = vmatprep.subr.bf16.mxu0 0
        %3699 = vmatpush1.bf16.msra.mxu0 0
        %3700 = vmatprep.subr.bf16.mxu0 0
        %3701 = vmatpush1.bf16.msra.mxu0 0
        %3702 = vmatprep.mubr.bf16.mxu0 0
        %3703 = vmatmul.mubr.bf16.gmra.mrb[0].mxu0 %v3668
        %v3704 = vpop.f32.mrb[0].mxu0
        %v3705 = vadd.f32 0.0, %v3704
        %v3706 = vpop.f32.mrb[0].mxu0
        %v3707 = vpop.f32.mrb[0].mxu0
        %v3708 = vpop.f32.mrb[0].mxu0
        %3709 = vdwg.mxu0
        %v3710 = vpack.c.bf16 %v3705, %v3705
        %v3711 = vld [vmem:[#allocation37] sm:$0xf]
        %v3712 = vld [vmem:[#allocation37 + $0x4] sm:$0xf]
        %v3713 = vld [vmem:[#allocation37 + $0x8] sm:$0xf]
        %v3714 = vld [vmem:[#allocation37 + $0xc] sm:$0xf]
        %v3715 = vld [vmem:[#allocation37 + $0x10] sm:$0xf]
        %v3716 = vld [vmem:[#allocation37 + $0x14] sm:$0xf]
        %v3717 = vld [vmem:[#allocation37 + $0x18] sm:$0xf]
        %v3718 = vld [vmem:[#allocation37 + $0x1c] sm:$0xf]
        %v3719 = vld [vmem:[#allocation38] sm:$0xf]
        %v3720 = vld [vmem:[#allocation38 + $0x4] sm:$0xf]
        %v3721 = vld [vmem:[#allocation38 + $0x8] sm:$0xf]
        %v3722 = vld [vmem:[#allocation38 + $0xc] sm:$0xf]
        %v3723 = vld [vmem:[#allocation38 + $0x10] sm:$0xf]
        %v3724 = vld [vmem:[#allocation38 + $0x14] sm:$0xf]
        %v3725 = vld [vmem:[#allocation38 + $0x18] sm:$0xf]
        %v3726 = vld [vmem:[#allocation38 + $0x1c] sm:$0xf]
        %v3727 = vld [vmem:[#allocation40] sm:$0xf]
        %v3728 = vld [vmem:[#allocation40 + $0x4] sm:$0xf]
        %v3729 = vld [vmem:[#allocation40 + $0x8] sm:$0xf]
        %v3730 = vld [vmem:[#allocation40 + $0xc] sm:$0xf]
        %v3731 = vld [vmem:[#allocation40 + $0x10] sm:$0xf]
        %v3732 = vld [vmem:[#allocation40 + $0x14] sm:$0xf]
        %v3733 = vld [vmem:[#allocation40 + $0x18] sm:$0xf]
        %v3734 = vld [vmem:[#allocation40 + $0x1c] sm:$0xf]
        %v3735 = vld [vmem:[#allocation41] sm:$0x1]
        %v3744 = vunpack.c.l.b16 %v3719
        %v3745 = vunpack.c.l.b16 %v3720
        %v3746 = vunpack.c.l.b16 %v3721
        %v3747 = vunpack.c.l.b16 %v3722
        %v3748 = vunpack.c.l.b16 %v3723
        %v3749 = vunpack.c.l.b16 %v3724
        %v3750 = vunpack.c.l.b16 %v3725
        %v3751 = vunpack.c.l.b16 %v3726
        %v3752 = vpack.c.b16 %v3745, %v3744
        %v3753 = vpack.c.b16 %v3747, %v3746
        %v3754 = vpack.c.b16 %v3749, %v3748
        %v3755 = vpack.c.b16 %v3751, %v3750
        %v3760 = vsel %vm1688, %v3615, 0
        %3762 = vmatprep.subr.bf16.mxu0 0
        %3763 = vmatpush1.bf16.msra.mxu0 %v3752
        %3764 = vmatprep.subr.bf16.mxu0 0
        %3765 = vmatpush1.bf16.msra.mxu0 %v3753
        %3766 = vmatprep.subr.bf16.mxu0 0
        %3767 = vmatpush1.bf16.msra.mxu0 %v3754
        %3768 = vmatprep.subr.bf16.mxu0 0
        %3769 = vmatpush1.bf16.msra.mxu0 %v3755
        %3770 = vmatprep.subr.bf16.mxu0 0
        %3771 = vmatpush1.bf16.msra.mxu0 0
        %3772 = vmatprep.subr.bf16.mxu0 0
        %3773 = vmatpush1.bf16.msra.mxu0 0
        %3774 = vmatprep.subr.bf16.mxu0 0
        %3775 = vmatpush1.bf16.msra.mxu0 0
        %3776 = vmatprep.subr.bf16.mxu0 0
        %3777 = vmatpush1.bf16.msra.mxu0 0
        %3778 = vmatprep.subr.bf16.mxu0 0
        %3779 = vmatpush1.bf16.msra.mxu0 0
        %3780 = vmatprep.subr.bf16.mxu0 0
        %3781 = vmatpush1.bf16.msra.mxu0 0
        %3782 = vmatprep.subr.bf16.mxu0 0
        %3783 = vmatpush1.bf16.msra.mxu0 0
        %3784 = vmatprep.subr.bf16.mxu0 0
        %3785 = vmatpush1.bf16.msra.mxu0 0
        %3786 = vmatprep.subr.bf16.mxu0 0
        %3787 = vmatpush1.bf16.msra.mxu0 0
        %3788 = vmatprep.subr.bf16.mxu0 0
        %3789 = vmatpush1.bf16.msra.mxu0 0
        %3790 = vmatprep.subr.bf16.mxu0 0
        %3791 = vmatpush1.bf16.msra.mxu0 0
        %3792 = vmatprep.subr.bf16.mxu0 0
        %3793 = vmatpush1.bf16.msra.mxu0 0
        %3794 = vmatprep.mubr.bf16.mxu0 0
        %3795 = vmatmul.mubr.bf16.gmra.mrb[0].mxu0 %v3760
        %v3796 = vpop.f32.mrb[0].mxu0
        %v3797 = vadd.f32 0.0, %v3796
        %v3798 = vpop.f32.mrb[0].mxu0
        %v3799 = vpop.f32.mrb[0].mxu0
        %v3800 = vpop.f32.mrb[0].mxu0
        %3801 = vdwg.mxu0
        %v3810 = vunpack.c.l.b16 %v3711
        %v3811 = vunpack.c.l.b16 %v3712
        %v3812 = vunpack.c.l.b16 %v3713
        %v3813 = vunpack.c.l.b16 %v3714
        %v3814 = vunpack.c.l.b16 %v3715
        %v3815 = vunpack.c.l.b16 %v3716
        %v3816 = vunpack.c.l.b16 %v3717
        %v3817 = vunpack.c.l.b16 %v3718
        %v3818 = vpack.c.b16 %v3811, %v3810
        %v3819 = vpack.c.b16 %v3813, %v3812
        %v3820 = vpack.c.b16 %v3815, %v3814
        %v3821 = vpack.c.b16 %v3817, %v3816
        %v3827 = vsel %vm1688, %v3666, 0
        %3829 = vmatprep.subr.bf16.mxu0 0
        %3830 = vmatpush1.bf16.msra.mxu0 %v3818
        %3831 = vmatprep.subr.bf16.mxu0 0
        %3832 = vmatpush1.bf16.msra.mxu0 %v3819
        %3833 = vmatprep.subr.bf16.mxu0 0
        %3834 = vmatpush1.bf16.msra.mxu0 %v3820
        %3835 = vmatprep.subr.bf16.mxu0 0
        %3836 = vmatpush1.bf16.msra.mxu0 %v3821
        %3837 = vmatprep.subr.bf16.mxu0 0
        %3838 = vmatpush1.bf16.msra.mxu0 0
        %3839 = vmatprep.subr.bf16.mxu0 0
        %3840 = vmatpush1.bf16.msra.mxu0 0
        %3841 = vmatprep.subr.bf16.mxu0 0
        %3842 = vmatpush1.bf16.msra.mxu0 0
        %3843 = vmatprep.subr.bf16.mxu0 0
        %3844 = vmatpush1.bf16.msra.mxu0 0
        %3845 = vmatprep.subr.bf16.mxu0 0
        %3846 = vmatpush1.bf16.msra.mxu0 0
        %3847 = vmatprep.subr.bf16.mxu0 0
        %3848 = vmatpush1.bf16.msra.mxu0 0
        %3849 = vmatprep.subr.bf16.mxu0 0
        %3850 = vmatpush1.bf16.msra.mxu0 0
        %3851 = vmatprep.subr.bf16.mxu0 0
        %3852 = vmatpush1.bf16.msra.mxu0 0
        %3853 = vmatprep.subr.bf16.mxu0 0
        %3854 = vmatpush1.bf16.msra.mxu0 0
        %3855 = vmatprep.subr.bf16.mxu0 0
        %3856 = vmatpush1.bf16.msra.mxu0 0
        %3857 = vmatprep.subr.bf16.mxu0 0
        %3858 = vmatpush1.bf16.msra.mxu0 0
        %3859 = vmatprep.subr.bf16.mxu0 0
        %3860 = vmatpush1.bf16.msra.mxu0 0
        %3861 = vmatprep.mubr.bf16.mxu0 0
        %3862 = vmatmul.mubr.bf16.gmra.mrb[0].mxu0 %v3827
        %v3863 = vpop.f32.mrb[0].mxu0
        %v3864 = vadd.f32 %v3797, %v3863
        %v3865 = vpop.f32.mrb[0].mxu0
        %v3866 = vpop.f32.mrb[0].mxu0
        %v3867 = vpop.f32.mrb[0].mxu0
        %3868 = vdwg.mxu0
        %v3877 = vunpack.c.l.b16 %v3727
        %v3878 = vunpack.c.l.b16 %v3728
        %v3879 = vunpack.c.l.b16 %v3729
        %v3880 = vunpack.c.l.b16 %v3730
        %v3881 = vunpack.c.l.b16 %v3731
        %v3882 = vunpack.c.l.b16 %v3732
        %v3883 = vunpack.c.l.b16 %v3733
        %v3884 = vunpack.c.l.b16 %v3734
        %v3885 = vpack.c.b16 %v3878, %v3877
        %v3886 = vpack.c.b16 %v3880, %v3879
        %v3887 = vpack.c.b16 %v3882, %v3881
        %v3888 = vpack.c.b16 %v3884, %v3883
        %v3894 = vsel %vm1688, %v3710, 0
        %3896 = vmatprep.subr.bf16.mxu0 0
        %3897 = vmatpush1.bf16.msra.mxu0 %v3885
        %3898 = vmatprep.subr.bf16.mxu0 0
        %3899 = vmatpush1.bf16.msra.mxu0 %v3886
        %3900 = vmatprep.subr.bf16.mxu0 0
        %3901 = vmatpush1.bf16.msra.mxu0 %v3887
        %3902 = vmatprep.subr.bf16.mxu0 0
        %3903 = vmatpush1.bf16.msra.mxu0 %v3888
        %3904 = vmatprep.subr.bf16.mxu0 0
        %3905 = vmatpush1.bf16.msra.mxu0 0
        %3906 = vmatprep.subr.bf16.mxu0 0
        %3907 = vmatpush1.bf16.msra.mxu0 0
        %3908 = vmatprep.subr.bf16.mxu0 0
        %3909 = vmatpush1.bf16.msra.mxu0 0
        %3910 = vmatprep.subr.bf16.mxu0 0
        %3911 = vmatpush1.bf16.msra.mxu0 0
        %3912 = vmatprep.subr.bf16.mxu0 0
        %3913 = vmatpush1.bf16.msra.mxu0 0
        %3914 = vmatprep.subr.bf16.mxu0 0
        %3915 = vmatpush1.bf16.msra.mxu0 0
        %3916 = vmatprep.subr.bf16.mxu0 0
        %3917 = vmatpush1.bf16.msra.mxu0 0
        %3918 = vmatprep.subr.bf16.mxu0 0
        %3919 = vmatpush1.bf16.msra.mxu0 0
        %3920 = vmatprep.subr.bf16.mxu0 0
        %3921 = vmatpush1.bf16.msra.mxu0 0
        %3922 = vmatprep.subr.bf16.mxu0 0
        %3923 = vmatpush1.bf16.msra.mxu0 0
        %3924 = vmatprep.subr.bf16.mxu0 0
        %3925 = vmatpush1.bf16.msra.mxu0 0
        %3926 = vmatprep.subr.bf16.mxu0 0
        %3927 = vmatpush1.bf16.msra.mxu0 0
        %3928 = vmatprep.mubr.bf16.mxu0 0
        %3929 = vmatmul.mubr.bf16.gmra.mrb[0].mxu0 %v3894
        %v3930 = vpop.f32.mrb[0].mxu0
        %v3931 = vadd.f32 0.0, %v3930
        %v3932 = vpop.f32.mrb[0].mxu0
        %v3933 = vpop.f32.mrb[0].mxu0
        %v3934 = vpop.f32.mrb[0].mxu0
        %3935 = vdwg.mxu0
        %v3936 = vadd.f32 %v3864, %v3931
        %v3938 = vlaneseq
        %v3939 = vshrl.u32 %v3938, 7
        %v3940 = vsub.s32 0, %v3939
        %v3941 = vrot.slane %v3735, %v3940
        %v3943 = vadd.f32 %v3936, %v3941
        %v3944 = vmax.f32 %v3943, 0.0
        %v3945 = vpack.c.bf16 %v3944, %v3944
        %v3947 = vsel %vm3622, %v3945, 0
        %3949 = vmatprep.subr.bf16.mxu0 0
        %3950 = vmatpush1.bf16.msra.mxu0 %v3947
        %3951 = vmatprep.subr.bf16.mxu0 0
        %3952 = vmatpush1.bf16.msra.mxu0 0
        %3953 = vmatprep.subr.bf16.mxu0 0
        %3954 = vmatpush1.bf16.msra.mxu0 0
        %3955 = vmatprep.subr.bf16.mxu0 0
        %3956 = vmatpush1.bf16.msra.mxu0 0
        %3957 = vmatprep.subr.bf16.mxu0 0
        %3958 = vmatpush1.bf16.msra.mxu0 0
        %3959 = vmatprep.subr.bf16.mxu0 0
        %3960 = vmatpush1.bf16.msra.mxu0 0
        %3961 = vmatprep.subr.bf16.mxu0 0
        %3962 = vmatpush1.bf16.msra.mxu0 0
        %3963 = vmatprep.subr.bf16.mxu0 0
        %3964 = vmatpush1.bf16.msra.mxu0 0
        %3965 = vmatprep.subr.bf16.mxu0 0
        %3966 = vmatpush1.bf16.msra.mxu0 0
        %3967 = vmatprep.subr.bf16.mxu0 0
        %3968 = vmatpush1.bf16.msra.mxu0 0
        %3969 = vmatprep.subr.bf16.mxu0 0
        %3970 = vmatpush1.bf16.msra.mxu0 0
        %3971 = vmatprep.subr.bf16.mxu0 0
        %3972 = vmatpush1.bf16.msra.mxu0 0
        %3973 = vmatprep.subr.bf16.mxu0 0
        %3974 = vmatpush1.bf16.msra.mxu0 0
        %3975 = vmatprep.subr.bf16.mxu0 0
        %3976 = vmatpush1.bf16.msra.mxu0 0
        %3977 = vmatprep.subr.bf16.mxu0 0
        %3978 = vmatpush1.bf16.msra.mxu0 0
        %3979 = vmatprep.subr.bf16.mxu0 0
        %3980 = vmatpush1.bf16.msra.mxu0 0
        %3981 = vmatprep.mubr.bf16.mxu0 0
        %3982 = vmatmul.mubr.bf16.gmra.mrb[0].mxu0 %v3620
        %v3983 = vpop.f32.mrb[0].mxu0
        %v3984 = vadd.f32 0.0, %v3983
        %v3985 = vpop.f32.mrb[0].mxu0
        %v3986 = vpop.f32.mrb[0].mxu0
        %v3987 = vpop.f32.mrb[0].mxu0
        %3988 = vdwg.mxu0
        %v3989 = vpack.c.bf16 %v3984, %v3984
        %3990 = vmatprep.subr.bf16.mxu0 0
        %3991 = vmatpush1.bf16.msra.mxu0 %v3947
        %3992 = vmatprep.subr.bf16.mxu0 0
        %3993 = vmatpush1.bf16.msra.mxu0 0
        %3994 = vmatprep.subr.bf16.mxu0 0
        %3995 = vmatpush1.bf16.msra.mxu0 0
        %3996 = vmatprep.subr.bf16.mxu0 0
        %3997 = vmatpush1.bf16.msra.mxu0 0
        %3998 = vmatprep.subr.bf16.mxu0 0
        %3999 = vmatpush1.bf16.msra.mxu0 0
        %4000 = vmatprep.subr.bf16.mxu0 0
        %4001 = vmatpush1.bf16.msra.mxu0 0
        %4002 = vmatprep.subr.bf16.mxu0 0
        %4003 = vmatpush1.bf16.msra.mxu0 0
        %4004 = vmatprep.subr.bf16.mxu0 0
        %4005 = vmatpush1.bf16.msra.mxu0 0
        %4006 = vmatprep.subr.bf16.mxu0 0
        %4007 = vmatpush1.bf16.msra.mxu0 0
        %4008 = vmatprep.subr.bf16.mxu0 0
        %4009 = vmatpush1.bf16.msra.mxu0 0
        %4010 = vmatprep.subr.bf16.mxu0 0
        %4011 = vmatpush1.bf16.msra.mxu0 0
        %4012 = vmatprep.subr.bf16.mxu0 0
        %4013 = vmatpush1.bf16.msra.mxu0 0
        %4014 = vmatprep.subr.bf16.mxu0 0
        %4015 = vmatpush1.bf16.msra.mxu0 0
        %4016 = vmatprep.subr.bf16.mxu0 0
        %4017 = vmatpush1.bf16.msra.mxu0 0
        %4018 = vmatprep.subr.bf16.mxu0 0
        %4019 = vmatpush1.bf16.msra.mxu0 0
        %4020 = vmatprep.subr.bf16.mxu0 0
        %4021 = vmatpush1.bf16.msra.mxu0 0
        %4022 = vmatprep.mubr.bf16.mxu0 0
        %4023 = vmatmul.mubr.bf16.gmra.mrb[0].mxu0 %v3668
        %v4024 = vpop.f32.mrb[0].mxu0
        %v4025 = vadd.f32 0.0, %v4024
        %v4026 = vpop.f32.mrb[0].mxu0
        %v4027 = vpop.f32.mrb[0].mxu0
        %v4028 = vpop.f32.mrb[0].mxu0
        %4029 = vdwg.mxu0
        %v4030 = vpack.c.bf16 %v4025, %v4025
        %v4031 = vld [vmem:[#allocation43] sm:$0xf]
        %v4032 = vld [vmem:[#allocation43 + $0x4] sm:$0xf]
        %v4033 = vld [vmem:[#allocation43 + $0x8] sm:$0xf]
        %v4034 = vld [vmem:[#allocation43 + $0xc] sm:$0xf]
        %v4035 = vld [vmem:[#allocation43 + $0x10] sm:$0xf]
        %v4036 = vld [vmem:[#allocation43 + $0x14] sm:$0xf]
        %v4037 = vld [vmem:[#allocation43 + $0x18] sm:$0xf]
        %v4038 = vld [vmem:[#allocation43 + $0x1c] sm:$0xf]
        %v4039 = vld [vmem:[#allocation44] sm:$0xf]
        %v4040 = vld [vmem:[#allocation44 + $0x4] sm:$0xf]
        %v4041 = vld [vmem:[#allocation44 + $0x8] sm:$0xf]
        %v4042 = vld [vmem:[#allocation44 + $0xc] sm:$0xf]
        %v4043 = vld [vmem:[#allocation44 + $0x10] sm:$0xf]
        %v4044 = vld [vmem:[#allocation44 + $0x14] sm:$0xf]
        %v4045 = vld [vmem:[#allocation44 + $0x18] sm:$0xf]
        %v4046 = vld [vmem:[#allocation44 + $0x1c] sm:$0xf]
        %v4047 = vld [vmem:[#allocation46] sm:$0xf]
        %v4048 = vld [vmem:[#allocation46 + $0x4] sm:$0xf]
        %v4049 = vld [vmem:[#allocation46 + $0x8] sm:$0xf]
        %v4050 = vld [vmem:[#allocation46 + $0xc] sm:$0xf]
        %v4051 = vld [vmem:[#allocation46 + $0x10] sm:$0xf]
        %v4052 = vld [vmem:[#allocation46 + $0x14] sm:$0xf]
        %v4053 = vld [vmem:[#allocation46 + $0x18] sm:$0xf]
        %v4054 = vld [vmem:[#allocation46 + $0x1c] sm:$0xf]
        %v4055 = vld [vmem:[#allocation47] sm:$0x1]
        %v4064 = vunpack.c.l.b16 %v4039
        %v4065 = vunpack.c.l.b16 %v4040
        %v4066 = vunpack.c.l.b16 %v4041
        %v4067 = vunpack.c.l.b16 %v4042
        %v4068 = vunpack.c.l.b16 %v4043
        %v4069 = vunpack.c.l.b16 %v4044
        %v4070 = vunpack.c.l.b16 %v4045
        %v4071 = vunpack.c.l.b16 %v4046
        %v4072 = vpack.c.b16 %v4065, %v4064
        %v4073 = vpack.c.b16 %v4067, %v4066
        %v4074 = vpack.c.b16 %v4069, %v4068
        %v4075 = vpack.c.b16 %v4071, %v4070
        %v4080 = vsel %vm1688, %v3945, 0
        %4082 = vmatprep.subr.bf16.mxu0 0
        %4083 = vmatpush1.bf16.msra.mxu0 %v4072
        %4084 = vmatprep.subr.bf16.mxu0 0
        %4085 = vmatpush1.bf16.msra.mxu0 %v4073
        %4086 = vmatprep.subr.bf16.mxu0 0
        %4087 = vmatpush1.bf16.msra.mxu0 %v4074
        %4088 = vmatprep.subr.bf16.mxu0 0
        %4089 = vmatpush1.bf16.msra.mxu0 %v4075
        %4090 = vmatprep.subr.bf16.mxu0 0
        %4091 = vmatpush1.bf16.msra.mxu0 0
        %4092 = vmatprep.subr.bf16.mxu0 0
        %4093 = vmatpush1.bf16.msra.mxu0 0
        %4094 = vmatprep.subr.bf16.mxu0 0
        %4095 = vmatpush1.bf16.msra.mxu0 0
        %4096 = vmatprep.subr.bf16.mxu0 0
        %4097 = vmatpush1.bf16.msra.mxu0 0
        %4098 = vmatprep.subr.bf16.mxu0 0
        %4099 = vmatpush1.bf16.msra.mxu0 0
        %4100 = vmatprep.subr.bf16.mxu0 0
        %4101 = vmatpush1.bf16.msra.mxu0 0
        %4102 = vmatprep.subr.bf16.mxu0 0
        %4103 = vmatpush1.bf16.msra.mxu0 0
        %4104 = vmatprep.subr.bf16.mxu0 0
        %4105 = vmatpush1.bf16.msra.mxu0 0
        %4106 = vmatprep.subr.bf16.mxu0 0
        %4107 = vmatpush1.bf16.msra.mxu0 0
        %4108 = vmatprep.subr.bf16.mxu0 0
        %4109 = vmatpush1.bf16.msra.mxu0 0
        %4110 = vmatprep.subr.bf16.mxu0 0
        %4111 = vmatpush1.bf16.msra.mxu0 0
        %4112 = vmatprep.subr.bf16.mxu0 0
        %4113 = vmatpush1.bf16.msra.mxu0 0
        %4114 = vmatprep.mubr.bf16.mxu0 0
        %4115 = vmatmul.mubr.bf16.gmra.mrb[0].mxu0 %v4080
        %v4116 = vpop.f32.mrb[0].mxu0
        %v4117 = vadd.f32 0.0, %v4116
        %v4118 = vpop.f32.mrb[0].mxu0
        %v4119 = vpop.f32.mrb[0].mxu0
        %v4120 = vpop.f32.mrb[0].mxu0
        %4121 = vdwg.mxu0
        %v4130 = vunpack.c.l.b16 %v4031
        %v4131 = vunpack.c.l.b16 %v4032
        %v4132 = vunpack.c.l.b16 %v4033
        %v4133 = vunpack.c.l.b16 %v4034
        %v4134 = vunpack.c.l.b16 %v4035
        %v4135 = vunpack.c.l.b16 %v4036
        %v4136 = vunpack.c.l.b16 %v4037
        %v4137 = vunpack.c.l.b16 %v4038
        %v4138 = vpack.c.b16 %v4131, %v4130
        %v4139 = vpack.c.b16 %v4133, %v4132
        %v4140 = vpack.c.b16 %v4135, %v4134
        %v4141 = vpack.c.b16 %v4137, %v4136
        %v4147 = vsel %vm1688, %v3989, 0
        %4149 = vmatprep.subr.bf16.mxu0 0
        %4150 = vmatpush1.bf16.msra.mxu0 %v4138
        %4151 = vmatprep.subr.bf16.mxu0 0
        %4152 = vmatpush1.bf16.msra.mxu0 %v4139
        %4153 = vmatprep.subr.bf16.mxu0 0
        %4154 = vmatpush1.bf16.msra.mxu0 %v4140
        %4155 = vmatprep.subr.bf16.mxu0 0
        %4156 = vmatpush1.bf16.msra.mxu0 %v4141
        %4157 = vmatprep.subr.bf16.mxu0 0
        %4158 = vmatpush1.bf16.msra.mxu0 0
        %4159 = vmatprep.subr.bf16.mxu0 0
        %4160 = vmatpush1.bf16.msra.mxu0 0
        %4161 = vmatprep.subr.bf16.mxu0 0
        %4162 = vmatpush1.bf16.msra.mxu0 0
        %4163 = vmatprep.subr.bf16.mxu0 0
        %4164 = vmatpush1.bf16.msra.mxu0 0
        %4165 = vmatprep.subr.bf16.mxu0 0
        %4166 = vmatpush1.bf16.msra.mxu0 0
        %4167 = vmatprep.subr.bf16.mxu0 0
        %4168 = vmatpush1.bf16.msra.mxu0 0
        %4169 = vmatprep.subr.bf16.mxu0 0
        %4170 = vmatpush1.bf16.msra.mxu0 0
        %4171 = vmatprep.subr.bf16.mxu0 0
        %4172 = vmatpush1.bf16.msra.mxu0 0
        %4173 = vmatprep.subr.bf16.mxu0 0
        %4174 = vmatpush1.bf16.msra.mxu0 0
        %4175 = vmatprep.subr.bf16.mxu0 0
        %4176 = vmatpush1.bf16.msra.mxu0 0
        %4177 = vmatprep.subr.bf16.mxu0 0
        %4178 = vmatpush1.bf16.msra.mxu0 0
        %4179 = vmatprep.subr.bf16.mxu0 0
        %4180 = vmatpush1.bf16.msra.mxu0 0
        %4181 = vmatprep.mubr.bf16.mxu0 0
        %4182 = vmatmul.mubr.bf16.gmra.mrb[0].mxu0 %v4147
        %v4183 = vpop.f32.mrb[0].mxu0
        %v4184 = vadd.f32 %v4117, %v4183
        %v4185 = vpop.f32.mrb[0].mxu0
        %v4186 = vpop.f32.mrb[0].mxu0
        %v4187 = vpop.f32.mrb[0].mxu0
        %4188 = vdwg.mxu0
        %v4197 = vunpack.c.l.b16 %v4047
        %v4198 = vunpack.c.l.b16 %v4048
        %v4199 = vunpack.c.l.b16 %v4049
        %v4200 = vunpack.c.l.b16 %v4050
        %v4201 = vunpack.c.l.b16 %v4051
        %v4202 = vunpack.c.l.b16 %v4052
        %v4203 = vunpack.c.l.b16 %v4053
        %v4204 = vunpack.c.l.b16 %v4054
        %v4205 = vpack.c.b16 %v4198, %v4197
        %v4206 = vpack.c.b16 %v4200, %v4199
        %v4207 = vpack.c.b16 %v4202, %v4201
        %v4208 = vpack.c.b16 %v4204, %v4203
        %v4214 = vsel %vm1688, %v4030, 0
        %4216 = vmatprep.subr.bf16.mxu0 0
        %4217 = vmatpush1.bf16.msra.mxu0 %v4205
        %4218 = vmatprep.subr.bf16.mxu0 0
        %4219 = vmatpush1.bf16.msra.mxu0 %v4206
        %4220 = vmatprep.subr.bf16.mxu0 0
        %4221 = vmatpush1.bf16.msra.mxu0 %v4207
        %4222 = vmatprep.subr.bf16.mxu0 0
        %4223 = vmatpush1.bf16.msra.mxu0 %v4208
        %4224 = vmatprep.subr.bf16.mxu0 0
        %4225 = vmatpush1.bf16.msra.mxu0 0
        %4226 = vmatprep.subr.bf16.mxu0 0
        %4227 = vmatpush1.bf16.msra.mxu0 0
        %4228 = vmatprep.subr.bf16.mxu0 0
        %4229 = vmatpush1.bf16.msra.mxu0 0
        %4230 = vmatprep.subr.bf16.mxu0 0
        %4231 = vmatpush1.bf16.msra.mxu0 0
        %4232 = vmatprep.subr.bf16.mxu0 0
        %4233 = vmatpush1.bf16.msra.mxu0 0
        %4234 = vmatprep.subr.bf16.mxu0 0
        %4235 = vmatpush1.bf16.msra.mxu0 0
        %4236 = vmatprep.subr.bf16.mxu0 0
        %4237 = vmatpush1.bf16.msra.mxu0 0
        %4238 = vmatprep.subr.bf16.mxu0 0
        %4239 = vmatpush1.bf16.msra.mxu0 0
        %4240 = vmatprep.subr.bf16.mxu0 0
        %4241 = vmatpush1.bf16.msra.mxu0 0
        %4242 = vmatprep.subr.bf16.mxu0 0
        %4243 = vmatpush1.bf16.msra.mxu0 0
        %4244 = vmatprep.subr.bf16.mxu0 0
        %4245 = vmatpush1.bf16.msra.mxu0 0
        %4246 = vmatprep.subr.bf16.mxu0 0
        %4247 = vmatpush1.bf16.msra.mxu0 0
        %4248 = vmatprep.mubr.bf16.mxu0 0
        %4249 = vmatmul.mubr.bf16.gmra.mrb[0].mxu0 %v4214
        %v4250 = vpop.f32.mrb[0].mxu0
        %v4251 = vadd.f32 0.0, %v4250
        %v4252 = vpop.f32.mrb[0].mxu0
        %v4253 = vpop.f32.mrb[0].mxu0
        %v4254 = vpop.f32.mrb[0].mxu0
        %4255 = vdwg.mxu0
        %v4256 = vadd.f32 %v4184, %v4251
        %v4258 = vlaneseq
        %v4259 = vshrl.u32 %v4258, 7
        %v4260 = vsub.s32 0, %v4259
        %v4261 = vrot.slane %v4055, %v4260
        %v4263 = vadd.f32 %v4256, %v4261
        %v4264 = vld [vmem:[%s71] sm:$0xf]
        %v4265 = vld [vmem:[%s71 + $0x4] sm:$0xf]
        %v4266 = vld [vmem:[%s71 + $0x8] sm:$0xf]
        %v4267 = vld [vmem:[%s71 + $0xc] sm:$0xf]
        %v4268 = vld [vmem:[%s71 + $0x10] sm:$0xf]
        %v4269 = vld [vmem:[%s71 + $0x14] sm:$0xf]
        %v4270 = vld [vmem:[%s71 + $0x18] sm:$0xf]
        %v4271 = vld [vmem:[%s71 + $0x1c] sm:$0xf]
        %v4272 = vld [vmem:[%s73] sm:$0x1]
        %v4274 = vlaneseq
        %v4275 = vshrl.u32 %v4274, 7
        %v4276 = vsub.s32 0, %v4275
        %v4277 = vrot.slane %v4272, %v4276
        %v4287 = vunpack.c.l.b16 %v4264
        %v4288 = vunpack.c.l.b16 %v4265
        %v4289 = vunpack.c.l.b16 %v4266
        %v4290 = vunpack.c.l.b16 %v4267
        %v4291 = vunpack.c.l.b16 %v4268
        %v4292 = vunpack.c.l.b16 %v4269
        %v4293 = vunpack.c.l.b16 %v4270
        %v4294 = vunpack.c.l.b16 %v4271
        %v4295 = vpack.c.b16 %v4288, %v4287
        %v4296 = vpack.c.b16 %v4290, %v4289
        %v4297 = vpack.c.b16 %v4292, %v4291
        %v4298 = vpack.c.b16 %v4294, %v4293
        %4303 = vmatprep.subr.bf16.mxu0 0
        %4304 = vmatpush1.bf16.msra.mxu0 %v4295
        %4305 = vmatprep.subr.bf16.mxu0 0
        %4306 = vmatpush1.bf16.msra.mxu0 %v4296
        %4307 = vmatprep.subr.bf16.mxu0 0
        %4308 = vmatpush1.bf16.msra.mxu0 %v4297
        %4309 = vmatprep.subr.bf16.mxu0 0
        %4310 = vmatpush1.bf16.msra.mxu0 %v4298
        %4311 = vmatprep.subr.bf16.mxu0 0
        %4312 = vmatpush1.bf16.msra.mxu0 0
        %4313 = vmatprep.subr.bf16.mxu0 0
        %4314 = vmatpush1.bf16.msra.mxu0 0
        %4315 = vmatprep.subr.bf16.mxu0 0
        %4316 = vmatpush1.bf16.msra.mxu0 0
        %4317 = vmatprep.subr.bf16.mxu0 0
        %4318 = vmatpush1.bf16.msra.mxu0 0
        %4319 = vmatprep.subr.bf16.mxu0 0
        %4320 = vmatpush1.bf16.msra.mxu0 0
        %4321 = vmatprep.subr.bf16.mxu0 0
        %4322 = vmatpush1.bf16.msra.mxu0 0
        %4323 = vmatprep.subr.bf16.mxu0 0
        %4324 = vmatpush1.bf16.msra.mxu0 0
        %4325 = vmatprep.subr.bf16.mxu0 0
        %4326 = vmatpush1.bf16.msra.mxu0 0
        %4327 = vmatprep.subr.bf16.mxu0 0
        %4328 = vmatpush1.bf16.msra.mxu0 0
        %4329 = vmatprep.subr.bf16.mxu0 0
        %4330 = vmatpush1.bf16.msra.mxu0 0
        %4331 = vmatprep.subr.bf16.mxu0 0
        %4332 = vmatpush1.bf16.msra.mxu0 0
        %4333 = vmatprep.subr.bf16.mxu0 0
        %4334 = vmatpush1.bf16.msra.mxu0 0
        %4335 = vmatprep.mubr.bf16.mxu0 0
        %4336 = vmatmul.mubr.bf16.gmra.mrb[0].mxu0 %v3760
        %v4337 = vpop.f32.mrb[0].mxu0
        %v4338 = vadd.f32 %v4277, %v4337
        %v4339 = vpop.f32.mrb[0].mxu0
        %v4340 = vpop.f32.mrb[0].mxu0
        %v4341 = vpop.f32.mrb[0].mxu0
        %4342 = vdwg.mxu0
        %v4343 = vmax.f32 %v4263, 0.0
        %v4344 = vadd.f32 %v4343, %v4338
        %v4345 = vld [vmem:[%s75] sm:$0xf]
        %v4346 = vld [vmem:[%s77] sm:$0xf]
        %v4347 = vld [vmem:[%s77 + $0x4] sm:$0xf]
        %v4348 = vld [vmem:[%s77 + $0x8] sm:$0xf]
        %v4349 = vld [vmem:[%s77 + $0xc] sm:$0xf]
        %v4350 = vld [vmem:[%s77 + $0x10] sm:$0xf]
        %v4351 = vld [vmem:[%s77 + $0x14] sm:$0xf]
        %v4352 = vld [vmem:[%s77 + $0x18] sm:$0xf]
        %v4353 = vld [vmem:[%s77 + $0x1c] sm:$0xf]
        %v4354 = vld [vmem:[%s77 + $0x20] sm:$0xf]
        %v4355 = vld [vmem:[%s77 + $0x24] sm:$0xf]
        %v4356 = vld [vmem:[%s77 + $0x28] sm:$0xf]
        %v4357 = vld [vmem:[%s77 + $0x2c] sm:$0xf]
        %v4358 = vld [vmem:[%s77 + $0x30] sm:$0xf]
        %v4359 = vld [vmem:[%s77 + $0x34] sm:$0xf]
        %v4360 = vld [vmem:[%s77 + $0x38] sm:$0xf]
        %v4361 = vld [vmem:[%s77 + $0x3c] sm:$0xf]
        %v4362 = vpack.c.bf16 %v4344, %v4344
        %v4379 = vunpack.c.l.b16 %v4346
        %v4380 = vunpack.c.l.b16 %v4347
        %v4381 = vunpack.c.l.b16 %v4348
        %v4382 = vunpack.c.l.b16 %v4349
        %v4383 = vunpack.c.l.b16 %v4350
        %v4384 = vunpack.c.l.b16 %v4351
        %v4385 = vunpack.c.l.b16 %v4352
        %v4386 = vunpack.c.l.b16 %v4353
        %v4387 = vunpack.c.l.b16 %v4354
        %v4388 = vunpack.c.l.b16 %v4355
        %v4389 = vunpack.c.l.b16 %v4356
        %v4390 = vunpack.c.l.b16 %v4357
        %v4391 = vunpack.c.l.b16 %v4358
        %v4392 = vunpack.c.l.b16 %v4359
        %v4393 = vunpack.c.l.b16 %v4360
        %v4394 = vunpack.c.l.b16 %v4361
        %v4395 = vpack.c.b16 %v4380, %v4379
        %v4396 = vpack.c.b16 %v4382, %v4381
        %v4397 = vpack.c.b16 %v4384, %v4383
        %v4398 = vpack.c.b16 %v4386, %v4385
        %v4399 = vpack.c.b16 %v4388, %v4387
        %v4400 = vpack.c.b16 %v4390, %v4389
        %v4401 = vpack.c.b16 %v4392, %v4391
        %v4402 = vpack.c.b16 %v4394, %v4393
        %4411 = vmatprep.subr.bf16.mxu0 0
        %4412 = vmatpush1.bf16.msra.mxu0 %v4395
        %4413 = vmatprep.subr.bf16.mxu0 0
        %4414 = vmatpush1.bf16.msra.mxu0 %v4396
        %4415 = vmatprep.subr.bf16.mxu0 0
        %4416 = vmatpush1.bf16.msra.mxu0 %v4397
        %4417 = vmatprep.subr.bf16.mxu0 0
        %4418 = vmatpush1.bf16.msra.mxu0 %v4398
        %4419 = vmatprep.subr.bf16.mxu0 0
        %4420 = vmatpush1.bf16.msra.mxu0 %v4399
        %4421 = vmatprep.subr.bf16.mxu0 0
        %4422 = vmatpush1.bf16.msra.mxu0 %v4400
        %4423 = vmatprep.subr.bf16.mxu0 0
        %4424 = vmatpush1.bf16.msra.mxu0 %v4401
        %4425 = vmatprep.subr.bf16.mxu0 0
        %4426 = vmatpush1.bf16.msra.mxu0 %v4402
        %4427 = vmatprep.subr.bf16.mxu0 0
        %4428 = vmatpush1.bf16.msra.mxu0 0
        %4429 = vmatprep.subr.bf16.mxu0 0
        %4430 = vmatpush1.bf16.msra.mxu0 0
        %4431 = vmatprep.subr.bf16.mxu0 0
        %4432 = vmatpush1.bf16.msra.mxu0 0
        %4433 = vmatprep.subr.bf16.mxu0 0
        %4434 = vmatpush1.bf16.msra.mxu0 0
        %4435 = vmatprep.subr.bf16.mxu0 0
        %4436 = vmatpush1.bf16.msra.mxu0 0
        %4437 = vmatprep.subr.bf16.mxu0 0
        %4438 = vmatpush1.bf16.msra.mxu0 0
        %4439 = vmatprep.subr.bf16.mxu0 0
        %4440 = vmatpush1.bf16.msra.mxu0 0
        %4441 = vmatprep.subr.bf16.mxu0 0
        %4442 = vmatpush1.bf16.msra.mxu0 0
        %4443 = vmatprep.mubr.bf16.mxu0 0
        %4444 = vmatmul.mubr.bf16.gmra.mrb[0].mxu0 %v4362
        %v4445 = vpop.f32.mrb[0].mxu0
        %v4446 = vadd.f32 0.0, %v4445
        %v4447 = vpop.f32.mrb[0].mxu0
        %v4448 = vpop.f32.mrb[0].mxu0
        %v4449 = vpop.f32.mrb[0].mxu0
        %4450 = vdwg.mxu0
        %v4452 = vsel %vm3618, %v4345, 0
        %4454 = vmatprep.subr.mxu0 0.0
        %4455 = vmatpush1.msra.mxu0 %v4446
        %4456 = vmatprep.subr.mxu0 0.0
        %4457 = vmatpush1.msra.mxu0 0.0
        %4458 = vmatprep.subr.mxu0 0.0
        %4459 = vmatpush1.msra.mxu0 0.0
        %4460 = vmatprep.subr.mxu0 0.0
        %4461 = vmatpush1.msra.mxu0 0.0
        %4462 = vmatprep.subr.mxu0 0.0
        %4463 = vmatpush1.msra.mxu0 0.0
        %4464 = vmatprep.subr.mxu0 0.0
        %4465 = vmatpush1.msra.mxu0 0.0
        %4466 = vmatprep.subr.mxu0 0.0
        %4467 = vmatpush1.msra.mxu0 0.0
        %4468 = vmatprep.subr.mxu0 0.0
        %4469 = vmatpush1.msra.mxu0 0.0
        %4470 = vmatprep.subr.mxu0 0.0
        %4471 = vmatpush1.msra.mxu0 0.0
        %4472 = vmatprep.subr.mxu0 0.0
        %4473 = vmatpush1.msra.mxu0 0.0
        %4474 = vmatprep.subr.mxu0 0.0
        %4475 = vmatpush1.msra.mxu0 0.0
        %4476 = vmatprep.subr.mxu0 0.0
        %4477 = vmatpush1.msra.mxu0 0.0
        %4478 = vmatprep.subr.mxu0 0.0
        %4479 = vmatpush1.msra.mxu0 0.0
        %4480 = vmatprep.subr.mxu0 0.0
        %4481 = vmatpush1.msra.mxu0 0.0
        %4482 = vmatprep.subr.mxu0 0.0
        %4483 = vmatpush1.msra.mxu0 0.0
        %4484 = vmatprep.subr.mxu0 0.0
        %4485 = vmatpush1.msra.mxu0 0.0
        %4486 = vmatprep.subr.mxu0 0.0
        %4487 = vmatpush1.msra.mxu0 0.0
        %4488 = vmatprep.subr.mxu0 0.0
        %4489 = vmatpush1.msra.mxu0 0.0
        %4490 = vmatprep.subr.mxu0 0.0
        %4491 = vmatpush1.msra.mxu0 0.0
        %4492 = vmatprep.subr.mxu0 0.0
        %4493 = vmatpush1.msra.mxu0 0.0
        %4494 = vmatprep.subr.mxu0 0.0
        %4495 = vmatpush1.msra.mxu0 0.0
        %4496 = vmatprep.subr.mxu0 0.0
        %4497 = vmatpush1.msra.mxu0 0.0
        %4498 = vmatprep.subr.mxu0 0.0
        %4499 = vmatpush1.msra.mxu0 0.0
        %4500 = vmatprep.subr.mxu0 0.0
        %4501 = vmatpush1.msra.mxu0 0.0
        %4502 = vmatprep.subr.mxu0 0.0
        %4503 = vmatpush1.msra.mxu0 0.0
        %4504 = vmatprep.subr.mxu0 0.0
        %4505 = vmatpush1.msra.mxu0 0.0
        %4506 = vmatprep.subr.mxu0 0.0
        %4507 = vmatpush1.msra.mxu0 0.0
        %4508 = vmatprep.subr.mxu0 0.0
        %4509 = vmatpush1.msra.mxu0 0.0
        %4510 = vmatprep.subr.mxu0 0.0
        %4511 = vmatpush1.msra.mxu0 0.0
        %4512 = vmatprep.subr.mxu0 0.0
        %4513 = vmatpush1.msra.mxu0 0.0
        %4514 = vmatprep.subr.mxu0 0.0
        %4515 = vmatpush1.msra.mxu0 0.0
        %4516 = vmatprep.subr.mxu0 0.0
        %4517 = vmatpush1.msra.mxu0 0.0
        %4518 = vmatprep.mubr.f32.mxu0 0.0
        %4519 = vmatmul.mubr.f32.gmra.mrb[0].mxu0 %v4452
        %v4520 = vpop.f32.mrb[0].mxu0
        %v4521 = vadd.f32 0.0, %v4520
        %v4522 = vpop.f32.mrb[0].mxu0
        %4523 = vdwg.mxu0
        %vm4524 = vcmask 519168
        %4525 = vst.msk [vmem:[%s1640] sm:$0xf] %vm4524, %v4521
        %s4526 = sand.u32 %s949, 1
        %s4527 = scalar_lea.sflag [#allocation4], %s4526
        %s4528 = sand.u32 %s949, 1
        %s4529 = smul.addr %s4528, 8
        %s4530 = scalar_lea.vmem [#allocation49], %s4529
        %s4531 = sand.u32 %s975, 1
        %s4532 = scalar_lea.sflag [#allocation51], %s4531
        %s4533 = sand.u32 %s975, 1
        %s4534 = smul.addr %s4533, 4
        %s4535 = scalar_lea.vmem [#allocation50], %s4534
        // Predicated region
        $region297: #{tpu_custom_call.1} parent=175 // pred_check
          %p4536 = pneg %p959
        $region298: #{tpu_custom_call.1} parent=175 // pred_check_branch
          %4538 = sbr.rel (%p4536) target = $region300
        $region299: #{tpu_custom_call.1} parent=175 // pred_region
          %s4540 = ssub.s32 128, 128
          %4541 = vsyncadd %s4527, %s4540
          %s4542 = smul.addr %s117, 128
          %s4543 = scalar_lea.hbm %s79, %s4542
          %s4545 = sshll.u32 %s4530, 4
          %s4546 = int_to_ptr.vmem [resolvable:$true] %s4545
          %4548 = dma.vmem_to_hbm [thread:$0]  %s4546, 128, %s4543, %s4527
        $region300: #{tpu_custom_call.1} parent=175 // pred_fallthru
          _
        // Predicated region
        $region301: #{tpu_custom_call.1} parent=175 // pred_check
          %p4549 = pneg %p985
        $region302: #{tpu_custom_call.1} parent=175 // pred_check_branch
          %4551 = sbr.rel (%p4549) target = $region304
        $region303: #{tpu_custom_call.1} parent=175 // pred_region
          %s4553 = ssub.s32 64, 64
          %4554 = vsyncadd %s4532, %s4553
          %s4555 = smul.addr %s117, 64
          %s4556 = scalar_lea.hbm %s81, %s4555
          %s4558 = sshll.u32 %s4535, 4
          %s4559 = int_to_ptr.vmem [resolvable:$true] %s4558
          %4561 = dma.vmem_to_hbm [thread:$0]  %s4559, 64, %s4556, %s4532
        $region304: #{tpu_custom_call.1} parent=175 // pred_fallthru
          _
      $region176: #{tpu_custom_call.1} parent=5 // pred_fallthru
        _
      %p4562 = scmp.le.s32.totalorder 2, %s112
      // Predicated region
      $region305: #{tpu_custom_call.1} parent=5 // pred_check
        %p4563 = pneg %p4562
      $region306: #{tpu_custom_call.1} parent=5 // pred_check_branch
        %4565 = sbr.rel (%p4563) target = $region308
      $region307: #{tpu_custom_call.1} parent=5 // pred_region
        %s4566 = ssub.s32 %s112, 2
        // Predicated region
        $region309: #{tpu_custom_call.1} parent=307 // pred_check
          %p4567 = pneg %p965
        $region310: #{tpu_custom_call.1} parent=307 // pred_check_branch
          %4569 = sbr.rel (%p4567) target = $region312
        $region311: #{tpu_custom_call.1} parent=307 // pred_region
          %s4570 = sand.u32 %s950, 1
          %s4571 = scalar_lea.sflag [#allocation4], %s4570
          %s4572 = sand.u32 %s950, 1
          %s4573 = smul.addr %s4572, 8
          %s4574 = scalar_lea.vmem [#allocation49], %s4573
          %4575 = dma.done %s4571, 128
        $region312: #{tpu_custom_call.1} parent=307 // pred_fallthru
          _
        // Predicated region
        $region313: #{tpu_custom_call.1} parent=307 // pred_check
          %p4576 = pneg %p991
        $region314: #{tpu_custom_call.1} parent=307 // pred_check_branch
          %4578 = sbr.rel (%p4576) target = $region316
        $region315: #{tpu_custom_call.1} parent=307 // pred_region
          %s4579 = sand.u32 %s976, 1
          %s4580 = scalar_lea.sflag [#allocation51], %s4579
          %s4581 = sand.u32 %s976, 1
          %s4582 = smul.addr %s4581, 4
          %s4583 = scalar_lea.vmem [#allocation50], %s4582
          %4584 = dma.done %s4580, 64
        $region316: #{tpu_custom_call.1} parent=307 // pred_fallthru
          _
      $region308: #{tpu_custom_call.1} parent=5 // pred_fallthru
        _
    $region6: #{tpu_custom_call.1} parent=1 // loop_footer
      %s116 = sadd.s32 1, %s112
    $region7: #{tpu_custom_call.1} parent=1 // loop_footer_branch
      %111 = sbr.rel target = $region3
    $region8: #{tpu_custom_call.1} parent=1 // loop_exit
      _
    %4585 = vsyncpa [#allocation3], 1
    %s4586 = scalar_lea.sflag [#allocation3], 1
    %4587 = vsyncpa %s4586, 1
    %4588 = vsyncpa [#allocation6], 1
    %4589 = vsyncpa [#allocation9], 1
    %4590 = vsyncpa [#allocation12], 1
    %4591 = vsyncpa [#allocation15], 1
    %4592 = vsyncpa [#allocation18], 1
    %4593 = vsyncpa [#allocation21], 1
    %4594 = vsyncpa [#allocation24], 1
    %4595 = vsyncpa [#allocation27], 1
    %4596 = vsyncpa [#allocation30], 1
    %4597 = vsyncpa [#allocation33], 1
    %4598 = vsyncpa [#allocation36], 1
    %4599 = vsyncpa [#allocation39], 1
    %4600 = vsyncpa [#allocation42], 1
    %4601 = vsyncpa [#allocation45], 1
    %4602 = vsyncpa [#allocation48], 1
    %4603 = vsyncpa [#allocation4], 1
    %s4604 = scalar_lea.sflag [#allocation4], 1
    %4605 = vsyncpa %s4604, 1
    %4606 = vsyncpa [#allocation51], 1
    %s4607 = scalar_lea.sflag [#allocation51], 1
    %4608 = vsyncpa %s4607, 1

</llo_original>
